<compile_context>
chip_gen: v6e
topology: v6e:2x2x1
jax: 0.10.0
libtpu: 0.0.40
codegen_flags: <defaults>
</compile_context>

<pallas_src>
import functools

import numpy as np

import jax
import jax.numpy as jnp
from jax.experimental import pallas as pl
from jax.experimental.pallas import tpu as pltpu


# ----------------------------------------------------------------------------
# Fused kernel: conv1+ReLU -> conv2+ReLU -> flatten -> linear, all in VMEM.
#
# Layouts:
#   lhs1_ref: (H*B, 3*(W+2)*Cin)   bf16, rows = h*B + b, cols = kh*(W+2)*Cin + w_pad*Cin + ci
#   m1_ref  : (3*(W+2)*Cin, (W+2)*C1)  bf16, kh-concatenated conv1 band matrix (padded out cols)
#   b1_ref  : (1, (W+2)*C1)        f32, zero on the w-pad columns
#   m2_ref  : (3*(W+2)*C1, W*C2)   bf16, kh-concatenated conv2 band matrix
#   b2_ref  : (1, W*C2)            f32
#   wl_ref  : (W*C2, H*nc)         bf16, block-column linear weight (PyTorch flatten folded in)
#   bl_ref  : (1, nc)              f32
#   o_ref   : (B, nc)              f32 logits
# ----------------------------------------------------------------------------
def _classifier_kernel(lhs1_ref, m1_ref, b1_ref, m2_ref, b2_ref, wl_ref, bl_ref,
                       o_ref, *, B, H, W, C1, C2):
    HB = H * B
    nc = o_ref.shape[1]

    # ---- conv1 + ReLU: one MXU dot (kh bands K-concatenated at prep time) ---
    acc1 = jnp.dot(lhs1_ref[...], m1_ref[...],
                   preferred_element_type=jnp.float32)          # (HB, (W+2)*C1)
    y1 = jnp.maximum(acc1 + b1_ref[...], 0.0)                   # zero w-pad cols preserved
    y1b = y1.astype(jnp.bfloat16)

    # ---- conv2 LHS: three h-shifted windows of (implicitly h-padded) y1 -----
    zrows = jnp.zeros((B, (W + 2) * C1), jnp.bfloat16)
    w0 = jnp.concatenate([zrows, y1b[:HB - B, :]], axis=0)      # kh = 0 window
    w1 = y1b                                                    # kh = 1 window
    w2 = jnp.concatenate([y1b[B:, :], zrows], axis=0)           # kh = 2 window
    lhs2 = jnp.concatenate([w0, w1, w2], axis=1)                # (HB, 3*(W+2)*C1)

    # ---- conv2 + ReLU: one MXU dot ------------------------------------------
    acc2 = jnp.dot(lhs2, m2_ref[...], preferred_element_type=jnp.float32)  # (HB, W*C2)
    y2 = jnp.maximum(acc2 + b2_ref[...], 0.0)

    # ---- linear: one MXU dot against lane-dense block-column weight ---------
    # p[h*B + b, h'*nc + n] = <y2 row (h,b), lin weights of height-row h'>;
    # only h == h' blocks are wanted -> diagonal-block reduce over h.
    p = jnp.dot(y2.astype(jnp.bfloat16), wl_ref[...],
                preferred_element_type=jnp.float32)             # (HB, H*nc)
    acc3 = jnp.zeros((B, nc), jnp.float32)
    for h in range(H):
        acc3 = acc3 + p[h * B:(h + 1) * B, h * nc:(h + 1) * nc]
    o_ref[...] = (acc3 + bl_ref[...]).astype(o_ref.dtype)


# ----------------------------------------------------------------------------
# One-time host-side (numpy) repacking of PyTorch-layout parameters.
# ----------------------------------------------------------------------------
def _conv_band_matrices(w, spatial, pad_out_cols):
    """Repack (Cout, Cin, 3, 3) conv weights into band matrices M[kh] so that,
    for activations laid out as rows=(h, b) / cols=(w_pad, cin), the conv is
        out = sum_kh  rows_shifted_by_kh(x) @ M[kh]."""
    w = np.asarray(w, np.float32)
    cout, cin, kh_sz, kw_sz = w.shape
    win = spatial + 2
    off = 1 if pad_out_cols else 0
    wout = spatial + 2 if pad_out_cols else spatial
    m = np.zeros((kh_sz, win * cin, wout * cout), np.float32)
    for kh in range(kh_sz):
        for kw in range(kw_sz):
            blk = w[:, :, kh, kw].T  # (Cin, Cout)
            for wo in range(spatial):
                wi = wo + kw
                m[kh, wi * cin:(wi + 1) * cin,
                  (wo + off) * cout:(wo + off + 1) * cout] = blk
    return m


def prepare_params(params, H=9, W=9):
    c1w = np.asarray(params["conv1_w"], np.float32)
    c1b = np.asarray(params["conv1_b"], np.float32)
    c2w = np.asarray(params["conv2_w"], np.float32)
    c2b = np.asarray(params["conv2_b"], np.float32)
    lw = np.asarray(params["lin1_w"], np.float32)
    lb = np.asarray(params["lin1_b"], np.float32)
    C1, C2, nc = c1w.shape[0], c2w.shape[0], lw.shape[0]

    # kh-concatenated band matrices (single dot per conv inside the kernel).
    m1 = _conv_band_matrices(c1w, W, pad_out_cols=True)    # (3, (W+2)*Cin, (W+2)*C1)
    m2 = _conv_band_matrices(c2w, W, pad_out_cols=False)   # (3, (W+2)*C1, W*C2)
    m1cat = np.concatenate([m1[0], m1[1], m1[2]], axis=0)  # (3*(W+2)*Cin, (W+2)*C1)
    m2cat = np.concatenate([m2[0], m2[1], m2[2]], axis=0)  # (3*(W+2)*C1, W*C2)

    b1 = np.zeros((1, (W + 2) * C1), np.float32)
    b1[0, C1:(W + 1) * C1] = np.tile(c1b, W)               # bias only on valid w columns
    b2 = np.tile(c2b, W)[None, :]                          # (1, W*C2)

    # Lane-dense block-column linear weight:
    #   wl[w*C2 + c, h*nc + n] = lin1_w[n, c*H*W + h*W + w]  (folds flatten + transpose)
    wl = lw.reshape(nc, C2, H, W).transpose(3, 1, 2, 0).reshape(W * C2, H * nc)
    bl = lb[None, :]

    return {
        "m1": jnp.asarray(m1cat, jnp.bfloat16),
        "b1": jnp.asarray(b1, jnp.float32),
        "m2": jnp.asarray(m2cat, jnp.bfloat16),
        "b2": jnp.asarray(b2, jnp.float32),
        "wl": jnp.asarray(np.ascontiguousarray(wl), jnp.bfloat16),
        "bl": jnp.asarray(bl, jnp.float32),
    }


# ----------------------------------------------------------------------------
# Forward pass (jitted): tiny input-layout prep + one fused pallas_call.
# ----------------------------------------------------------------------------
def _fused_forward(x, prepped):
    B, Cin, H, W = x.shape
    C1 = prepped["b1"].shape[1] // (W + 2)
    C2 = prepped["b2"].shape[1] // W
    nc = prepped["bl"].shape[1]
    HB = H * B

    # NCHW -> padded rows (h_pad*B + b) x cols (w_pad*Cin + ci), then pre-stage
    # the three kh-shifted windows side-by-side along columns (conv1 LHS).
    xn = jnp.transpose(x, (0, 2, 3, 1))                       # (B, H, W, Cin)
    xp = jnp.pad(xn, ((0, 0), (1, 1), (1, 1), (0, 0)))        # (B, H+2, W+2, Cin)
    x2d = jnp.transpose(xp, (1, 0, 2, 3)).reshape((H + 2) * B, (W + 2) * Cin)
    lhs1 = jnp.concatenate([x2d[kh * B:kh * B + HB, :] for kh in range(3)],
                           axis=1).astype(jnp.bfloat16)       # (HB, 3*(W+2)*Cin)

    kernel = functools.partial(_classifier_kernel, B=B, H=H, W=W, C1=C1, C2=C2)
    vmem = pl.BlockSpec(memory_space=pltpu.MemorySpace.VMEM)
    return pl.pallas_call(
        kernel,
        out_shape=jax.ShapeDtypeStruct((B, nc), jnp.float32),
        in_specs=[vmem] * 7,
        out_specs=vmem,
    )(lhs1, prepped["m1"], prepped["b1"], prepped["m2"], prepped["b2"],
      prepped["wl"], prepped["bl"])


classifier_forward = jax.jit(_fused_forward)


# ----------------------------------------------------------------------------
# PyTorch-like init and a plain-XLA reference for parity checking.
# ----------------------------------------------------------------------------
def init_params(key, in_channels=4, num_classes=2):
    ks = jax.random.split(key, 6)

    def u(k, shape, fan_in):
        bound = 1.0 / jnp.sqrt(fan_in)
        return jax.random.uniform(k, shape, jnp.float32, -bound, bound)

    return {
        "conv1_w": u(ks[0], (32, in_channels, 3, 3), in_channels * 9),
        "conv1_b": u(ks[1], (32,), in_channels * 9),
        "conv2_w": u(ks[2], (64, 32, 3, 3), 32 * 9),
        "conv2_b": u(ks[3], (64,), 32 * 9),
        "lin1_w": u(ks[4], (num_classes, 64 * 9 * 9), 64 * 9 * 9),
        "lin1_b": u(ks[5], (num_classes,), 64 * 9 * 9),
    }


def _reference_forward(x, params):
    dn = ("NCHW", "OIHW", "NCHW")
    hi = jax.lax.Precision.HIGHEST
    h = jax.lax.conv_general_dilated(x, params["conv1_w"], (1, 1), "SAME",
                                     dimension_numbers=dn, precision=hi)
    h = jnp.maximum(h + params["conv1_b"][None, :, None, None], 0.0)
    h = jax.lax.conv_general_dilated(h, params["conv2_w"], (1, 1), "SAME",
                                     dimension_numbers=dn, precision=hi)
    h = jnp.maximum(h + params["conv2_b"][None, :, None, None], 0.0)
    hf = h.reshape(x.shape[0], -1)
    return jnp.dot(hf, params["lin1_w"].T, precision=hi) + params["lin1_b"]


if __name__ == "__main__":
    key = jax.random.PRNGKey(0)
    k_params, k_x = jax.random.split(key)

    # Linear(64*9*9, 2) implies 9x9 spatial inputs.
    B, C, H, W = 2, 4, 9, 9
    x = jax.random.normal(k_x, (B, C, H, W), dtype=jnp.float32)

    params = init_params(k_params, in_channels=C, num_classes=2)
    prepped = prepare_params(params, H=H, W=W)

    logits = classifier_forward(x, prepped)
    jax.block_until_ready(logits)
    assert logits.shape == (B, 2), logits.shape

    # Parity vs. a HIGHEST-precision f32 reference. Kernel uses bf16 matmul
    # operands with f32 accumulation (MXU-native), so allow bf16-level tolerance.
    ref = _reference_forward(x, params)
    np.testing.assert_allclose(np.asarray(logits), np.asarray(ref),
                               rtol=2e-2, atol=2e-2)

    print("KERNEL_OK")
</pallas_src>

<mosaic_0001>
module attributes {stable_mosaic.version = 11 : i64} {
  func.func @_classifier_kernel(%arg0: memref<18x132xbf16, #tpu.memory_space<vmem>>, %arg1: memref<132x352xbf16, #tpu.memory_space<vmem>>, %arg2: memref<1x352xf32, #tpu.memory_space<vmem>>, %arg3: memref<1056x576xbf16, #tpu.memory_space<vmem>>, %arg4: memref<1x576xf32, #tpu.memory_space<vmem>>, %arg5: memref<576x18xbf16, #tpu.memory_space<vmem>>, %arg6: memref<1x2xf32, #tpu.memory_space<vmem>>, %arg7: memref<2x2xf32, #tpu.memory_space<vmem>>) attributes {dimension_semantics = [], scalar_prefetch = 0 : i64, scratch_operands = 0 : i64, tpu.core_type = #tpu.core_type<tc>} {
    %c0 = arith.constant 0 : index
    %c0_0 = arith.constant 0 : index
    %0 = vector.load %arg0[%c0, %c0_0] : memref<18x132xbf16, #tpu.memory_space<vmem>>, vector<18x132xbf16>
    %c0_1 = arith.constant 0 : index
    %c0_2 = arith.constant 0 : index
    %1 = vector.load %arg1[%c0_1, %c0_2] : memref<132x352xbf16, #tpu.memory_space<vmem>>, vector<132x352xbf16>
    %cst = arith.constant dense<0.000000e+00> : vector<18x352xf32>
    %2 = tpu.matmul %0, %1, %cst {dimension_numbers = #tpu.dot_dimension_numbers<[1], [0], [0], [1], [0, 0, 1, 1], [], []>} : vector<18x132xbf16>, vector<132x352xbf16>, vector<18x352xf32> -> vector<18x352xf32>
    %c0_3 = arith.constant 0 : index
    %c0_4 = arith.constant 0 : index
    %3 = vector.load %arg2[%c0_3, %c0_4] : memref<1x352xf32, #tpu.memory_space<vmem>>, vector<1x352xf32>
    %4 = vector.broadcast %3 : vector<1x352xf32> to vector<18x352xf32>
    %5 = arith.addf %2, %4 : vector<18x352xf32>
    %cst_5 = arith.constant 0.000000e+00 : f32
    %6 = vector.broadcast %cst_5 : f32 to vector<18x352xf32>
    %7 = arith.maximumf %5, %6 : vector<18x352xf32>
    %8 = arith.truncf %7 : vector<18x352xf32> to vector<18x352xbf16>
    %cst_6 = arith.constant 0.000000e+00 : bf16
    %9 = vector.broadcast %cst_6 : bf16 to vector<2x352xbf16>
    %10 = vector.extract_strided_slice %8 {offsets = [0, 0], sizes = [16, 352], strides = [1, 1]} : vector<18x352xbf16> to vector<16x352xbf16>
    %11 = tpu.concatenate %9, %10 in 0 : vector<2x352xbf16>, vector<16x352xbf16> -> vector<18x352xbf16>
    %12 = vector.extract_strided_slice %8 {offsets = [2, 0], sizes = [16, 352], strides = [1, 1]} : vector<18x352xbf16> to vector<16x352xbf16>
    %13 = tpu.concatenate %12, %9 in 0 : vector<16x352xbf16>, vector<2x352xbf16> -> vector<18x352xbf16>
    %14 = tpu.concatenate %11, %8, %13 in 1 : vector<18x352xbf16>, vector<18x352xbf16>, vector<18x352xbf16> -> vector<18x1056xbf16>
    %c0_7 = arith.constant 0 : index
    %c0_8 = arith.constant 0 : index
    %15 = vector.load %arg3[%c0_7, %c0_8] : memref<1056x576xbf16, #tpu.memory_space<vmem>>, vector<1056x576xbf16>
    %cst_9 = arith.constant dense<0.000000e+00> : vector<18x576xf32>
    %16 = tpu.matmul %14, %15, %cst_9 {dimension_numbers = #tpu.dot_dimension_numbers<[1], [0], [0], [1], [0, 0, 1, 1], [], []>} : vector<18x1056xbf16>, vector<1056x576xbf16>, vector<18x576xf32> -> vector<18x576xf32>
    %c0_10 = arith.constant 0 : index
    %c0_11 = arith.constant 0 : index
    %17 = vector.load %arg4[%c0_10, %c0_11] : memref<1x576xf32, #tpu.memory_space<vmem>>, vector<1x576xf32>
    %18 = vector.broadcast %17 : vector<1x576xf32> to vector<18x576xf32>
    %19 = arith.addf %16, %18 : vector<18x576xf32>
    %cst_12 = arith.constant 0.000000e+00 : f32
    %20 = vector.broadcast %cst_12 : f32 to vector<18x576xf32>
    %21 = arith.maximumf %19, %20 : vector<18x576xf32>
    %22 = arith.truncf %21 : vector<18x576xf32> to vector<18x576xbf16>
    %c0_13 = arith.constant 0 : index
    %c0_14 = arith.constant 0 : index
    %23 = vector.load %arg5[%c0_13, %c0_14] : memref<576x18xbf16, #tpu.memory_space<vmem>>, vector<576x18xbf16>
    %cst_15 = arith.constant dense<0.000000e+00> : vector<18x18xf32>
    %24 = tpu.matmul %22, %23, %cst_15 {dimension_numbers = #tpu.dot_dimension_numbers<[1], [0], [0], [1], [0, 0, 1, 1], [], []>} : vector<18x576xbf16>, vector<576x18xbf16>, vector<18x18xf32> -> vector<18x18xf32>
    %cst_16 = arith.constant 0.000000e+00 : f32
    %25 = vector.broadcast %cst_16 : f32 to vector<2x2xf32>
    %26 = vector.extract_strided_slice %24 {offsets = [0, 0], sizes = [2, 2], strides = [1, 1]} : vector<18x18xf32> to vector<2x2xf32>
    %27 = arith.addf %25, %26 : vector<2x2xf32>
    %28 = vector.extract_strided_slice %24 {offsets = [2, 2], sizes = [2, 2], strides = [1, 1]} : vector<18x18xf32> to vector<2x2xf32>
    %29 = arith.addf %27, %28 : vector<2x2xf32>
    %30 = vector.extract_strided_slice %24 {offsets = [4, 4], sizes = [2, 2], strides = [1, 1]} : vector<18x18xf32> to vector<2x2xf32>
    %31 = arith.addf %29, %30 : vector<2x2xf32>
    %32 = vector.extract_strided_slice %24 {offsets = [6, 6], sizes = [2, 2], strides = [1, 1]} : vector<18x18xf32> to vector<2x2xf32>
    %33 = arith.addf %31, %32 : vector<2x2xf32>
    %34 = vector.extract_strided_slice %24 {offsets = [8, 8], sizes = [2, 2], strides = [1, 1]} : vector<18x18xf32> to vector<2x2xf32>
    %35 = arith.addf %33, %34 : vector<2x2xf32>
    %36 = vector.extract_strided_slice %24 {offsets = [10, 10], sizes = [2, 2], strides = [1, 1]} : vector<18x18xf32> to vector<2x2xf32>
    %37 = arith.addf %35, %36 : vector<2x2xf32>
    %38 = vector.extract_strided_slice %24 {offsets = [12, 12], sizes = [2, 2], strides = [1, 1]} : vector<18x18xf32> to vector<2x2xf32>
    %39 = arith.addf %37, %38 : vector<2x2xf32>
    %40 = vector.extract_strided_slice %24 {offsets = [14, 14], sizes = [2, 2], strides = [1, 1]} : vector<18x18xf32> to vector<2x2xf32>
    %41 = arith.addf %39, %40 : vector<2x2xf32>
    %42 = vector.extract_strided_slice %24 {offsets = [16, 16], sizes = [2, 2], strides = [1, 1]} : vector<18x18xf32> to vector<2x2xf32>
    %43 = arith.addf %41, %42 : vector<2x2xf32>
    %c0_17 = arith.constant 0 : index
    %c0_18 = arith.constant 0 : index
    %44 = vector.load %arg6[%c0_17, %c0_18] : memref<1x2xf32, #tpu.memory_space<vmem>>, vector<1x2xf32>
    %45 = vector.broadcast %44 : vector<1x2xf32> to vector<2x2xf32>
    %46 = arith.addf %43, %45 : vector<2x2xf32>
    %c0_19 = arith.constant 0 : index
    %c0_20 = arith.constant 0 : index
    %47 = vector.load %arg7[%c0_19, %c0_20] : memref<2x2xf32, #tpu.memory_space<vmem>>, vector<2x2xf32>
    tpu.vector_store %arg7[%c0_19, %c0_20], %46 {strides = array<i32>} : memref<2x2xf32, #tpu.memory_space<vmem>>, vector<2x2xf32>,
    return
  }
}

</mosaic_0001>

<llo_original>
// kernel: _fused_forward.1
$region0: #{_fused_forward.1}
  #allocation0 [shape = 'u32[]', space=smem, size = 0x4, offset = 0x4, fixed_abs, tag = 'smem constant byte address 0x4 - core index']
  #allocation1 [shape = 'u32[144,128]{1,0:T(1,128)}', space=vmem, size = 0x12000, scoped, tag = 'internal scratch']
  %s0 = inlined_call_operand.vmem [shape: bf16[18,132], index: 0, kind: input, shape index: {}]
  %s1 = inlined_call_operand.vmem [shape: bf16[132,352], index: 1, kind: input, shape index: {}]
  %s2 = inlined_call_operand.vmem [shape: f32[1,352], index: 2, kind: input, shape index: {}]
  %s3 = inlined_call_operand.vmem [shape: bf16[1056,576], index: 3, kind: input, shape index: {}]
  %s4 = inlined_call_operand.vmem [shape: f32[1,576], index: 4, kind: input, shape index: {}]
  %s5 = inlined_call_operand.vmem [shape: bf16[576,18], index: 5, kind: input, shape index: {}]
  %s6 = inlined_call_operand.vmem [shape: f32[1,2], index: 6, kind: input, shape index: {}]
  %s7 = inlined_call_operand.hbm [shape: f32[2,2], index: 7, kind: output, shape index: {}]
  %s8 = sld [smem:[#allocation0]]
  $region38: #{_fused_forward.1} parent=0
    _
  %s10 = ssub.s32 1, %s8
  %s11 = scalar_select 0, %s10, %s8
  $region1: #{_fused_forward.1} parent=0
    #allocation2 [shape = 'u8[1024]{0}', space=vmem, size = 0x400, scoped, tag = 'output window, operand 0, single buffered']
    #allocation3 [shape = 's32[1]{0}', space=sflag, size = 0x4, scoped, tag = 'scoped memory for _fused_forward.1']
    %12 = vsyncpa [#allocation3], 0
    // Predicated region
    $region2: #{_fused_forward.1} parent=1 // pred_check
      _
    $region3: #{_fused_forward.1} parent=1 // pred_check_branch
      %14 = sbr.rel (0) target = $region5
    $region4: #{_fused_forward.1} parent=1 // pred_region
      _
    $region5: #{_fused_forward.1} parent=1 // pred_fallthru
      _
    // Predicated region
    $region6: #{_fused_forward.1} parent=1 // pred_check
      _
    $region7: #{_fused_forward.1} parent=1 // pred_check_branch
      %16 = sbr.rel (0) target = $region9
    $region8: #{_fused_forward.1} parent=1 // pred_region
      _
    $region9: #{_fused_forward.1} parent=1 // pred_fallthru
      _
    // Predicated region
    $region10: #{_fused_forward.1} parent=1 // pred_check
      _
    $region11: #{_fused_forward.1} parent=1 // pred_check_branch
      %18 = sbr.rel (0) target = $region13
    $region12: #{_fused_forward.1} parent=1 // pred_region
      _
    $region13: #{_fused_forward.1} parent=1 // pred_fallthru
      _
    // Predicated region
    $region14: #{_fused_forward.1} parent=1 // pred_check
      _
    $region15: #{_fused_forward.1} parent=1 // pred_check_branch
      %20 = sbr.rel (0) target = $region17
    $region16: #{_fused_forward.1} parent=1 // pred_region
      _
    $region17: #{_fused_forward.1} parent=1 // pred_fallthru
      _
    // Predicated region
    $region18: #{_fused_forward.1} parent=1 // pred_check
      _
    $region19: #{_fused_forward.1} parent=1 // pred_check_branch
      %22 = sbr.rel (0) target = $region21
    $region20: #{_fused_forward.1} parent=1 // pred_region
      _
    $region21: #{_fused_forward.1} parent=1 // pred_fallthru
      _
    // Predicated region
    $region22: #{_fused_forward.1} parent=1 // pred_check
      _
    $region23: #{_fused_forward.1} parent=1 // pred_check_branch
      %24 = sbr.rel (0) target = $region25
    $region24: #{_fused_forward.1} parent=1 // pred_region
      _
    $region25: #{_fused_forward.1} parent=1 // pred_fallthru
      _
    // Predicated region
    $region26: #{_fused_forward.1} parent=1 // pred_check
      _
    $region27: #{_fused_forward.1} parent=1 // pred_check_branch
      %26 = sbr.rel (0) target = $region29
    $region28: #{_fused_forward.1} parent=1 // pred_region
      _
    $region29: #{_fused_forward.1} parent=1 // pred_fallthru
      _
    %v28 = vld [vmem:[%s0] sm:$0xff]
    %v29 = vld [vmem:[%s0 + $0x8] sm:$0xff]
    %v30 = vld [vmem:[%s0 + $0x10] sm:$0x11]
    %v31 = vld [vmem:[%s1] sm:$0xff]
    %v32 = vld [vmem:[%s1 + $0x8] sm:$0xf]
    %v33 = vld [vmem:[%s1 + $0xc] sm:$0xff]
    %v34 = vld [vmem:[%s1 + $0x14] sm:$0xf]
    %v35 = vld [vmem:[%s1 + $0x18] sm:$0xff]
    %v36 = vld [vmem:[%s1 + $0x20] sm:$0xf]
    %v37 = vld [vmem:[%s1 + $0x24] sm:$0xff]
    %v38 = vld [vmem:[%s1 + $0x2c] sm:$0xf]
    %v39 = vld [vmem:[%s1 + $0x30] sm:$0xff]
    %v40 = vld [vmem:[%s1 + $0x38] sm:$0xf]
    %v41 = vld [vmem:[%s1 + $0x3c] sm:$0xff]
    %v42 = vld [vmem:[%s1 + $0x44] sm:$0xf]
    %v43 = vld [vmem:[%s1 + $0x48] sm:$0xff]
    %v44 = vld [vmem:[%s1 + $0x50] sm:$0xf]
    %v45 = vld [vmem:[%s1 + $0x54] sm:$0xff]
    %v46 = vld [vmem:[%s1 + $0x5c] sm:$0xf]
    %v47 = vld [vmem:[%s1 + $0x60] sm:$0xff]
    %v48 = vld [vmem:[%s1 + $0x68] sm:$0xf]
    %v49 = vld [vmem:[%s1 + $0x6c] sm:$0xff]
    %v50 = vld [vmem:[%s1 + $0x74] sm:$0xf]
    %v51 = vld [vmem:[%s1 + $0x78] sm:$0xff]
    %v52 = vld [vmem:[%s1 + $0x80] sm:$0xf]
    %v53 = vld [vmem:[%s1 + $0x84] sm:$0xff]
    %v54 = vld [vmem:[%s1 + $0x8c] sm:$0xf]
    %v55 = vld [vmem:[%s1 + $0x90] sm:$0xff]
    %v56 = vld [vmem:[%s1 + $0x98] sm:$0xf]
    %v57 = vld [vmem:[%s1 + $0x9c] sm:$0xff]
    %v58 = vld [vmem:[%s1 + $0xa4] sm:$0xf]
    %v59 = vld [vmem:[%s1 + $0xa8] sm:$0xff]
    %v60 = vld [vmem:[%s1 + $0xb0] sm:$0xf]
    %v61 = vld [vmem:[%s1 + $0xb4] sm:$0xff]
    %v62 = vld [vmem:[%s1 + $0xbc] sm:$0xf]
    %v63 = vld [vmem:[%s1 + $0xc0] sm:$0x33]
    %v64 = vld [vmem:[%s1 + $0xc8] sm:$0x3]
    %v65 = vld [vmem:[%s2] sm:$0x7]
    %v67 = vlaneseq
    %v68 = vshrl.u32 %v67, 7
    %v69 = vsub.s32 0, %v68
    %v70 = vrot.slane %v65, %v69
    %v71 = vlaneseq
    %v72 = vshrl.u32 %v71, 7
    %v73 = vsub.s32 1, %v72
    %v74 = vrot.slane %v65, %v73
    %v75 = vlaneseq
    %v76 = vshrl.u32 %v75, 7
    %v77 = vsub.s32 2, %v76
    %v78 = vrot.slane %v65, %v77
    %v85 = vunpack.c.l.b16 %v28
    %v86 = vunpack.c.h.b16 %v28
    %v87 = vunpack.c.l.b16 %v29
    %v88 = vunpack.c.h.b16 %v29
    %v89 = vunpack.c.l.b16 %v30
    %v90 = vunpack.c.h.b16 %v30
    %v91 = vpack.c.b16 %v87, %v85
    %v92 = vpack.c.b16 %v88, %v86
    %v93 = vpack.c.b16 %v89, %v89
    %v94 = vpack.c.b16 %v90, %v90
    %v131 = vunpack.c.l.b16 %v31
    %v132 = vunpack.c.h.b16 %v31
    %v133 = vunpack.c.l.b16 %v32
    %v134 = vunpack.c.l.b16 %v33
    %v135 = vunpack.c.h.b16 %v33
    %v136 = vunpack.c.l.b16 %v34
    %v137 = vunpack.c.l.b16 %v35
    %v138 = vunpack.c.h.b16 %v35
    %v139 = vunpack.c.l.b16 %v36
    %v140 = vunpack.c.l.b16 %v37
    %v141 = vunpack.c.h.b16 %v37
    %v142 = vunpack.c.l.b16 %v38
    %v143 = vunpack.c.l.b16 %v39
    %v144 = vunpack.c.h.b16 %v39
    %v145 = vunpack.c.l.b16 %v40
    %v146 = vunpack.c.l.b16 %v41
    %v147 = vunpack.c.h.b16 %v41
    %v148 = vunpack.c.l.b16 %v42
    %v149 = vunpack.c.l.b16 %v43
    %v150 = vunpack.c.h.b16 %v43
    %v151 = vunpack.c.l.b16 %v44
    %v152 = vunpack.c.l.b16 %v45
    %v153 = vunpack.c.h.b16 %v45
    %v154 = vunpack.c.l.b16 %v46
    %v155 = vunpack.c.l.b16 %v47
    %v156 = vunpack.c.h.b16 %v47
    %v157 = vunpack.c.l.b16 %v48
    %v158 = vunpack.c.l.b16 %v49
    %v159 = vunpack.c.h.b16 %v49
    %v160 = vunpack.c.l.b16 %v50
    %v161 = vunpack.c.l.b16 %v51
    %v162 = vunpack.c.h.b16 %v51
    %v163 = vunpack.c.l.b16 %v52
    %v164 = vunpack.c.l.b16 %v53
    %v165 = vunpack.c.h.b16 %v53
    %v166 = vunpack.c.l.b16 %v54
    %v167 = vunpack.c.l.b16 %v55
    %v168 = vunpack.c.h.b16 %v55
    %v169 = vunpack.c.l.b16 %v56
    %v170 = vunpack.c.l.b16 %v57
    %v171 = vunpack.c.h.b16 %v57
    %v172 = vunpack.c.l.b16 %v58
    %v173 = vunpack.c.l.b16 %v59
    %v174 = vunpack.c.h.b16 %v59
    %v175 = vunpack.c.l.b16 %v60
    %v176 = vunpack.c.l.b16 %v61
    %v177 = vunpack.c.h.b16 %v61
    %v178 = vunpack.c.l.b16 %v62
    %v179 = vunpack.c.l.b16 %v63
    %v180 = vunpack.c.h.b16 %v63
    %v181 = vunpack.c.l.b16 %v64
    %v182 = vpack.c.b16 %v134, %v131
    %v183 = vpack.c.b16 %v135, %v132
    %v184 = vpack.c.b16 %v136, %v133
    %v185 = vpack.c.b16 %v140, %v137
    %v186 = vpack.c.b16 %v141, %v138
    %v187 = vpack.c.b16 %v142, %v139
    %v188 = vpack.c.b16 %v146, %v143
    %v189 = vpack.c.b16 %v147, %v144
    %v190 = vpack.c.b16 %v148, %v145
    %v191 = vpack.c.b16 %v152, %v149
    %v192 = vpack.c.b16 %v153, %v150
    %v193 = vpack.c.b16 %v154, %v151
    %v194 = vpack.c.b16 %v158, %v155
    %v195 = vpack.c.b16 %v159, %v156
    %v196 = vpack.c.b16 %v160, %v157
    %v197 = vpack.c.b16 %v164, %v161
    %v198 = vpack.c.b16 %v165, %v162
    %v199 = vpack.c.b16 %v166, %v163
    %v200 = vpack.c.b16 %v170, %v167
    %v201 = vpack.c.b16 %v171, %v168
    %v202 = vpack.c.b16 %v172, %v169
    %v203 = vpack.c.b16 %v176, %v173
    %v204 = vpack.c.b16 %v177, %v174
    %v205 = vpack.c.b16 %v178, %v175
    %v206 = vpack.c.b16 %v179, %v179
    %v207 = vpack.c.b16 %v180, %v180
    %v208 = vpack.c.b16 %v181, %v181
    %vm233 = vcmask 31744
    %v235 = vsel %vm233, %v92, 0
    %v238 = vsel %vm233, %v94, 0
    %vm240 = vcmask 1041408
    %v242 = vsel %vm240, %v206, 0
    %v245 = vsel %vm240, %v207, 0
    %v248 = vsel %vm240, %v208, 0
    %250 = vmatprep.subr.bf16.mxu0 %v204
    %251 = vmatpush1.bf16.msra.mxu0 %v203
    %252 = vmatprep.subr.bf16.mxu0 %v201
    %253 = vmatpush1.bf16.msra.mxu0 %v200
    %254 = vmatprep.subr.bf16.mxu0 %v198
    %255 = vmatpush1.bf16.msra.mxu0 %v197
    %256 = vmatprep.subr.bf16.mxu0 %v195
    %257 = vmatpush1.bf16.msra.mxu0 %v194
    %258 = vmatprep.subr.bf16.mxu0 %v192
    %259 = vmatpush1.bf16.msra.mxu0 %v191
    %260 = vmatprep.subr.bf16.mxu0 %v189
    %261 = vmatpush1.bf16.msra.mxu0 %v188
    %262 = vmatprep.subr.bf16.mxu0 %v186
    %263 = vmatpush1.bf16.msra.mxu0 %v185
    %264 = vmatprep.subr.bf16.mxu0 %v183
    %265 = vmatpush1.bf16.msra.mxu0 %v182
    %266 = vmatprep.subr.bf16.mxu0 0
    %267 = vmatpush2.bf16.msra.mxu0 0
    %268 = vmatprep.subr.bf16.mxu0 0
    %269 = vmatpush2.bf16.msra.mxu0 0
    %270 = vmatprep.subr.bf16.mxu0 0
    %271 = vmatpush2.bf16.msra.mxu0 0
    %272 = vmatprep.subr.bf16.mxu0 0
    %273 = vmatpush2.bf16.msra.mxu0 0
    %274 = vmatprep.subr.bf16.mxu0 0
    %275 = vmatpush2.bf16.msra.mxu0 0
    %276 = vmatprep.subr.bf16.mxu0 0
    %277 = vmatpush2.bf16.msra.mxu0 0
    %278 = vmatprep.subr.bf16.mxu0 0
    %279 = vmatpush2.bf16.msra.mxu0 0
    %280 = vmatprep.subr.bf16.mxu0 %v245
    %281 = vmatpush2.bf16.msra.mxu0 %v242
    %282 = vmatprep.mubr.bf16.mxu0 %v235
    %283 = vmatmul.mubr.bf16.gmra.mxu0 %v91
    %v284 = vpop.f32.mrf.mxu0
    %v285 = vadd.f32 %v70, %v284
    %v286 = vpop.f32.mrf.mxu0
    %v287 = vadd.f32 %v74, %v286
    %v288 = vpop.f32.mrf.mxu0
    %v289 = vadd.f32 %v70, %v288
    %v290 = vpop.f32.mrf.mxu0
    %v291 = vadd.f32 %v74, %v290
    %292 = vmatprep.mubr.bf16.mxu0 %v238
    %293 = vmatmul.mubr.bf16.gmra.mxu0 %v93
    %v294 = vpop.f32.mrf.mxu0
    %v295 = vadd.f32 %v70, %v294
    %v296 = vpop.f32.mrf.mxu0
    %v297 = vadd.f32 %v74, %v296
    %v298 = vpop.f32.mrf.mxu0
    %v299 = vpop.f32.mrf.mxu0
    %300 = vdwg.mxu0
    %301 = vmatprep.subr.bf16.mxu0 0
    %302 = vmatpush1.bf16.msra.mxu0 %v205
    %303 = vmatprep.subr.bf16.mxu0 0
    %304 = vmatpush1.bf16.msra.mxu0 %v202
    %305 = vmatprep.subr.bf16.mxu0 0
    %306 = vmatpush1.bf16.msra.mxu0 %v199
    %307 = vmatprep.subr.bf16.mxu0 0
    %308 = vmatpush1.bf16.msra.mxu0 %v196
    %309 = vmatprep.subr.bf16.mxu0 0
    %310 = vmatpush1.bf16.msra.mxu0 %v193
    %311 = vmatprep.subr.bf16.mxu0 0
    %312 = vmatpush1.bf16.msra.mxu0 %v190
    %313 = vmatprep.subr.bf16.mxu0 0
    %314 = vmatpush1.bf16.msra.mxu0 %v187
    %315 = vmatprep.subr.bf16.mxu0 0
    %316 = vmatpush1.bf16.msra.mxu0 %v184
    %317 = vmatprep.subr.bf16.mxu0 0
    %318 = vmatpush2.bf16.msra.mxu0 0
    %319 = vmatprep.subr.bf16.mxu0 0
    %320 = vmatpush2.bf16.msra.mxu0 0
    %321 = vmatprep.subr.bf16.mxu0 0
    %322 = vmatpush2.bf16.msra.mxu0 0
    %323 = vmatprep.subr.bf16.mxu0 0
    %324 = vmatpush2.bf16.msra.mxu0 0
    %325 = vmatprep.subr.bf16.mxu0 0
    %326 = vmatpush2.bf16.msra.mxu0 0
    %327 = vmatprep.subr.bf16.mxu0 0
    %328 = vmatpush2.bf16.msra.mxu0 0
    %329 = vmatprep.subr.bf16.mxu0 0
    %330 = vmatpush2.bf16.msra.mxu0 0
    %331 = vmatprep.subr.bf16.mxu0 0
    %332 = vmatpush2.bf16.msra.mxu0 %v248
    %333 = vmatprep.mubr.bf16.mxu0 %v235
    %334 = vmatmul.mubr.bf16.gmra.mxu0 %v91
    %v335 = vpop.f32.mrf.mxu0
    %v336 = vadd.f32 %v78, %v335
    %v337 = vpop.f32.mrf.mxu0
    %v338 = vpop.f32.mrf.mxu0
    %v339 = vadd.f32 %v78, %v338
    %v340 = vpop.f32.mrf.mxu0
    %341 = vmatprep.mubr.bf16.mxu0 %v238
    %342 = vmatmul.mubr.bf16.gmra.mxu0 %v93
    %v343 = vpop.f32.mrf.mxu0
    %v344 = vadd.f32 %v78, %v343
    %v345 = vpop.f32.mrf.mxu0
    %v346 = vpop.f32.mrf.mxu0
    %v347 = vpop.f32.mrf.mxu0
    %348 = vdwg.mxu0
    %v349 = vmax.f32 %v285, 0.0
    %v350 = vmax.f32 %v287, 0.0
    %v351 = vmax.f32 %v336, 0.0
    %v352 = vmax.f32 %v289, 0.0
    %v353 = vmax.f32 %v291, 0.0
    %v354 = vmax.f32 %v339, 0.0
    %v355 = vmax.f32 %v295, 0.0
    %v356 = vmax.f32 %v297, 0.0
    %v357 = vmax.f32 %v344, 0.0
    %v358 = vpack.c.bf16 %v352, %v349
    %v359 = vpack.c.bf16 %v353, %v350
    %v360 = vpack.c.bf16 %v354, %v351
    %v361 = vpack.c.bf16 %v355, %v355
    %v362 = vpack.c.bf16 %v356, %v356
    %v363 = vpack.c.bf16 %v357, %v357
    %v367 = vrot.slane %v358, 7
    %v368 = vrot.slane %v359, 7
    %v369 = vrot.slane %v360, 7
    %vm372 = vcmask 1040384
    %v375 = vsel %vm372, 0, %v367
    %v378 = vsel %vm372, 0, %v368
    %v381 = vsel %vm372, 0, %v369
    %vm385 = vcmask 1046528
    %v386 = vrot.slane %v358, 1
    %v387 = vrot.slane %v361, 1
    %v388 = vsel %vm385, %v386, %v387
    %v389 = vrot.slane %v359, 1
    %v390 = vrot.slane %v362, 1
    %v391 = vsel %vm385, %v389, %v390
    %v392 = vrot.slane %v360, 1
    %v393 = vrot.slane %v363, 1
    %v394 = vsel %vm385, %v392, %v393
    %395 = vrot.lane.b32.xlu0 %v358, 96
    %v396 = vpop.permute.xlu0 %395
    %397 = vrot.lane.b32.xlu0 %v359, 96
    %v398 = vpop.permute.xlu0 %397
    %399 = vrot.lane.b32.xlu0 %v360, 96
    %v400 = vpop.permute.xlu0 %399
    %401 = vrot.lane.b32.xlu0 %v361, 96
    %v402 = vpop.permute.xlu0 %401
    %403 = vrot.lane.b32.xlu0 %v362, 96
    %v404 = vpop.permute.xlu0 %403
    %405 = vrot.lane.b32.xlu0 %v363, 96
    %v406 = vpop.permute.xlu0 %405
    %vm407 = vcmask 785408
    %v408 = vsel %vm407, %v396, %v398
    %v409 = vsel %vm407, %v398, %v400
    %v410 = vsel %vm407, %v402, %v404
    %v411 = vsel %vm407, %v404, %v406
    %417 = vrot.lane.b32.xlu0 %v388, 64
    %v418 = vpop.permute.xlu0 %417
    %419 = vrot.lane.b32.xlu0 %v391, 64
    %v420 = vpop.permute.xlu0 %419
    %421 = vrot.lane.b32.xlu0 %v394, 64
    %v422 = vpop.permute.xlu0 %421
    %423 = vrot.lane.b32.xlu0 0, 64
    %v424 = vpop.permute.xlu0 %423
    %vm425 = vcmask 523264
    %v426 = vsel %vm425, %v418, %v420
    %v427 = vsel %vm425, %v420, %v422
    %vm431 = vcmask 785408
    %v433 = vsel %vm431, %v381, %v396
    %v436 = vsel %vm431, %v369, %v402
    %vm438 = vcmask 523264
    %v441 = vsel %vm438, %v400, %v418
    %v445 = vsel %vm438, %v406, %v424
    %v447 = vld [vmem:[%s3] sm:$0xff]
    %v448 = vld [vmem:[%s3 + $0x8] sm:$0xff]
    %v449 = vld [vmem:[%s3 + $0x10] sm:$0xf]
    %v450 = vld [vmem:[%s3 + $0x14] sm:$0xff]
    %v451 = vld [vmem:[%s3 + $0x1c] sm:$0xff]
    %v452 = vld [vmem:[%s3 + $0x24] sm:$0xf]
    %v453 = vld [vmem:[%s3 + $0x28] sm:$0xff]
    %v454 = vld [vmem:[%s3 + $0x30] sm:$0xff]
    %v455 = vld [vmem:[%s3 + $0x38] sm:$0xf]
    %v456 = vld [vmem:[%s3 + $0x3c] sm:$0xff]
    %v457 = vld [vmem:[%s3 + $0x44] sm:$0xff]
    %v458 = vld [vmem:[%s3 + $0x4c] sm:$0xf]
    %v459 = vld [vmem:[%s3 + $0x50] sm:$0xff]
    %v460 = vld [vmem:[%s3 + $0x58] sm:$0xff]
    %v461 = vld [vmem:[%s3 + $0x60] sm:$0xf]
    %v462 = vld [vmem:[%s3 + $0x64] sm:$0xff]
    %v463 = vld [vmem:[%s3 + $0x6c] sm:$0xff]
    %v464 = vld [vmem:[%s3 + $0x74] sm:$0xf]
    %v465 = vld [vmem:[%s3 + $0x78] sm:$0xff]
    %v466 = vld [vmem:[%s3 + $0x80] sm:$0xff]
    %v467 = vld [vmem:[%s3 + $0x88] sm:$0xf]
    %v468 = vld [vmem:[%s3 + $0x8c] sm:$0xff]
    %v469 = vld [vmem:[%s3 + $0x94] sm:$0xff]
    %v470 = vld [vmem:[%s3 + $0x9c] sm:$0xf]
    %v471 = vld [vmem:[%s3 + $0xa0] sm:$0xff]
    %v472 = vld [vmem:[%s3 + $0xa8] sm:$0xff]
    %v473 = vld [vmem:[%s3 + $0xb0] sm:$0xf]
    %v474 = vld [vmem:[%s3 + $0xb4] sm:$0xff]
    %v475 = vld [vmem:[%s3 + $0xbc] sm:$0xff]
    %v476 = vld [vmem:[%s3 + $0xc4] sm:$0xf]
    %v477 = vld [vmem:[%s3 + $0xc8] sm:$0xff]
    %v478 = vld [vmem:[%s3 + $0xd0] sm:$0xff]
    %v479 = vld [vmem:[%s3 + $0xd8] sm:$0xf]
    %v480 = vld [vmem:[%s3 + $0xdc] sm:$0xff]
    %v481 = vld [vmem:[%s3 + $0xe4] sm:$0xff]
    %v482 = vld [vmem:[%s3 + $0xec] sm:$0xf]
    %v483 = vld [vmem:[%s3 + $0xf0] sm:$0xff]
    %v484 = vld [vmem:[%s3 + $0xf8] sm:$0xff]
    %v485 = vld [vmem:[%s3 + $0x100] sm:$0xf]
    %v486 = vld [vmem:[%s3 + $0x104] sm:$0xff]
    %v487 = vld [vmem:[%s3 + $0x10c] sm:$0xff]
    %v488 = vld [vmem:[%s3 + $0x114] sm:$0xf]
    %v489 = vld [vmem:[%s3 + $0x118] sm:$0xff]
    %v490 = vld [vmem:[%s3 + $0x120] sm:$0xff]
    %v491 = vld [vmem:[%s3 + $0x128] sm:$0xf]
    %v492 = vld [vmem:[%s3 + $0x12c] sm:$0xff]
    %v493 = vld [vmem:[%s3 + $0x134] sm:$0xff]
    %v494 = vld [vmem:[%s3 + $0x13c] sm:$0xf]
    %v495 = vld [vmem:[%s3 + $0x140] sm:$0xff]
    %v496 = vld [vmem:[%s3 + $0x148] sm:$0xff]
    %v497 = vld [vmem:[%s3 + $0x150] sm:$0xf]
    %v498 = vld [vmem:[%s3 + $0x154] sm:$0xff]
    %v499 = vld [vmem:[%s3 + $0x15c] sm:$0xff]
    %v500 = vld [vmem:[%s3 + $0x164] sm:$0xf]
    %v501 = vld [vmem:[%s3 + $0x168] sm:$0xff]
    %v502 = vld [vmem:[%s3 + $0x170] sm:$0xff]
    %v503 = vld [vmem:[%s3 + $0x178] sm:$0xf]
    %v504 = vld [vmem:[%s3 + $0x17c] sm:$0xff]
    %v505 = vld [vmem:[%s3 + $0x184] sm:$0xff]
    %v506 = vld [vmem:[%s3 + $0x18c] sm:$0xf]
    %v507 = vld [vmem:[%s3 + $0x190] sm:$0xff]
    %v508 = vld [vmem:[%s3 + $0x198] sm:$0xff]
    %v509 = vld [vmem:[%s3 + $0x1a0] sm:$0xf]
    %v510 = vld [vmem:[%s3 + $0x1a4] sm:$0xff]
    %v511 = vld [vmem:[%s3 + $0x1ac] sm:$0xff]
    %v512 = vld [vmem:[%s3 + $0x1b4] sm:$0xf]
    %v513 = vld [vmem:[%s3 + $0x1b8] sm:$0xff]
    %v514 = vld [vmem:[%s3 + $0x1c0] sm:$0xff]
    %v515 = vld [vmem:[%s3 + $0x1c8] sm:$0xf]
    %v516 = vld [vmem:[%s3 + $0x1cc] sm:$0xff]
    %v517 = vld [vmem:[%s3 + $0x1d4] sm:$0xff]
    %v518 = vld [vmem:[%s3 + $0x1dc] sm:$0xf]
    %v519 = vld [vmem:[%s3 + $0x1e0] sm:$0xff]
    %v520 = vld [vmem:[%s3 + $0x1e8] sm:$0xff]
    %v521 = vld [vmem:[%s3 + $0x1f0] sm:$0xf]
    %v522 = vld [vmem:[%s3 + $0x1f4] sm:$0xff]
    %v523 = vld [vmem:[%s3 + $0x1fc] sm:$0xff]
    %v524 = vld [vmem:[%s3 + $0x204] sm:$0xf]
    %v525 = vld [vmem:[%s3 + $0x208] sm:$0xff]
    %v526 = vld [vmem:[%s3 + $0x210] sm:$0xff]
    %v527 = vld [vmem:[%s3 + $0x218] sm:$0xf]
    %v528 = vld [vmem:[%s3 + $0x21c] sm:$0xff]
    %v529 = vld [vmem:[%s3 + $0x224] sm:$0xff]
    %v530 = vld [vmem:[%s3 + $0x22c] sm:$0xf]
    %v531 = vld [vmem:[%s3 + $0x230] sm:$0xff]
    %v532 = vld [vmem:[%s3 + $0x238] sm:$0xff]
    %v533 = vld [vmem:[%s3 + $0x240] sm:$0xf]
    %v534 = vld [vmem:[%s3 + $0x244] sm:$0xff]
    %v535 = vld [vmem:[%s3 + $0x24c] sm:$0xff]
    %v536 = vld [vmem:[%s3 + $0x254] sm:$0xf]
    %v537 = vld [vmem:[%s3 + $0x258] sm:$0xff]
    %v538 = vld [vmem:[%s3 + $0x260] sm:$0xff]
    %v539 = vld [vmem:[%s3 + $0x268] sm:$0xf]
    %v540 = vld [vmem:[%s3 + $0x26c] sm:$0xff]
    %v541 = vld [vmem:[%s3 + $0x274] sm:$0xff]
    %v542 = vld [vmem:[%s3 + $0x27c] sm:$0xf]
    %v543 = vld [vmem:[%s3 + $0x280] sm:$0xff]
    %v544 = vld [vmem:[%s3 + $0x288] sm:$0xff]
    %v545 = vld [vmem:[%s3 + $0x290] sm:$0xf]
    %v546 = vld [vmem:[%s3 + $0x294] sm:$0xff]
    %v547 = vld [vmem:[%s3 + $0x29c] sm:$0xff]
    %v548 = vld [vmem:[%s3 + $0x2a4] sm:$0xf]
    %v549 = vld [vmem:[%s3 + $0x2a8] sm:$0xff]
    %v550 = vld [vmem:[%s3 + $0x2b0] sm:$0xff]
    %v551 = vld [vmem:[%s3 + $0x2b8] sm:$0xf]
    %v552 = vld [vmem:[%s3 + $0x2bc] sm:$0xff]
    %v553 = vld [vmem:[%s3 + $0x2c4] sm:$0xff]
    %v554 = vld [vmem:[%s3 + $0x2cc] sm:$0xf]
    %v555 = vld [vmem:[%s3 + $0x2d0] sm:$0xff]
    %v556 = vld [vmem:[%s3 + $0x2d8] sm:$0xff]
    %v557 = vld [vmem:[%s3 + $0x2e0] sm:$0xf]
    %v558 = vld [vmem:[%s3 + $0x2e4] sm:$0xff]
    %v559 = vld [vmem:[%s3 + $0x2ec] sm:$0xff]
    %v560 = vld [vmem:[%s3 + $0x2f4] sm:$0xf]
    %v561 = vld [vmem:[%s3 + $0x2f8] sm:$0xff]
    %v562 = vld [vmem:[%s3 + $0x300] sm:$0xff]
    %v563 = vld [vmem:[%s3 + $0x308] sm:$0xf]
    %v564 = vld [vmem:[%s3 + $0x30c] sm:$0xff]
    %v565 = vld [vmem:[%s3 + $0x314] sm:$0xff]
    %v566 = vld [vmem:[%s3 + $0x31c] sm:$0xf]
    %v567 = vld [vmem:[%s3 + $0x320] sm:$0xff]
    %v568 = vld [vmem:[%s3 + $0x328] sm:$0xff]
    %v569 = vld [vmem:[%s3 + $0x330] sm:$0xf]
    %v570 = vld [vmem:[%s3 + $0x334] sm:$0xff]
    %v571 = vld [vmem:[%s3 + $0x33c] sm:$0xff]
    %v572 = vld [vmem:[%s3 + $0x344] sm:$0xf]
    %v573 = vld [vmem:[%s3 + $0x348] sm:$0xff]
    %v574 = vld [vmem:[%s3 + $0x350] sm:$0xff]
    %v575 = vld [vmem:[%s3 + $0x358] sm:$0xf]
    %v576 = vld [vmem:[%s3 + $0x35c] sm:$0xff]
    %v577 = vld [vmem:[%s3 + $0x364] sm:$0xff]
    %v578 = vld [vmem:[%s3 + $0x36c] sm:$0xf]
    %v579 = vld [vmem:[%s3 + $0x370] sm:$0xff]
    %v580 = vld [vmem:[%s3 + $0x378] sm:$0xff]
    %v581 = vld [vmem:[%s3 + $0x380] sm:$0xf]
    %v582 = vld [vmem:[%s3 + $0x384] sm:$0xff]
    %v583 = vld [vmem:[%s3 + $0x38c] sm:$0xff]
    %v584 = vld [vmem:[%s3 + $0x394] sm:$0xf]
    %v585 = vld [vmem:[%s3 + $0x398] sm:$0xff]
    %v586 = vld [vmem:[%s3 + $0x3a0] sm:$0xff]
    %v587 = vld [vmem:[%s3 + $0x3a8] sm:$0xf]
    %v588 = vld [vmem:[%s3 + $0x3ac] sm:$0xff]
    %v589 = vld [vmem:[%s3 + $0x3b4] sm:$0xff]
    %v590 = vld [vmem:[%s3 + $0x3bc] sm:$0xf]
    %v591 = vld [vmem:[%s3 + $0x3c0] sm:$0xff]
    %v592 = vld [vmem:[%s3 + $0x3c8] sm:$0xff]
    %v593 = vld [vmem:[%s3 + $0x3d0] sm:$0xf]
    %v594 = vld [vmem:[%s3 + $0x3d4] sm:$0xff]
    %v595 = vld [vmem:[%s3 + $0x3dc] sm:$0xff]
    %v596 = vld [vmem:[%s3 + $0x3e4] sm:$0xf]
    %v597 = vld [vmem:[%s3 + $0x3e8] sm:$0xff]
    %v598 = vld [vmem:[%s3 + $0x3f0] sm:$0xff]
    %v599 = vld [vmem:[%s3 + $0x3f8] sm:$0xf]
    %v600 = vld [vmem:[%s3 + $0x3fc] sm:$0xff]
    %v601 = vld [vmem:[%s3 + $0x404] sm:$0xff]
    %v602 = vld [vmem:[%s3 + $0x40c] sm:$0xf]
    %v603 = vld [vmem:[%s3 + $0x410] sm:$0xff]
    %v604 = vld [vmem:[%s3 + $0x418] sm:$0xff]
    %v605 = vld [vmem:[%s3 + $0x420] sm:$0xf]
    %v606 = vld [vmem:[%s3 + $0x424] sm:$0xff]
    %v607 = vld [vmem:[%s3 + $0x42c] sm:$0xff]
    %v608 = vld [vmem:[%s3 + $0x434] sm:$0xf]
    %v609 = vld [vmem:[%s3 + $0x438] sm:$0xff]
    %v610 = vld [vmem:[%s3 + $0x440] sm:$0xff]
    %v611 = vld [vmem:[%s3 + $0x448] sm:$0xf]
    %v612 = vld [vmem:[%s3 + $0x44c] sm:$0xff]
    %v613 = vld [vmem:[%s3 + $0x454] sm:$0xff]
    %v614 = vld [vmem:[%s3 + $0x45c] sm:$0xf]
    %v615 = vld [vmem:[%s3 + $0x460] sm:$0xff]
    %v616 = vld [vmem:[%s3 + $0x468] sm:$0xff]
    %v617 = vld [vmem:[%s3 + $0x470] sm:$0xf]
    %v618 = vld [vmem:[%s3 + $0x474] sm:$0xff]
    %v619 = vld [vmem:[%s3 + $0x47c] sm:$0xff]
    %v620 = vld [vmem:[%s3 + $0x484] sm:$0xf]
    %v621 = vld [vmem:[%s3 + $0x488] sm:$0xff]
    %v622 = vld [vmem:[%s3 + $0x490] sm:$0xff]
    %v623 = vld [vmem:[%s3 + $0x498] sm:$0xf]
    %v624 = vld [vmem:[%s3 + $0x49c] sm:$0xff]
    %v625 = vld [vmem:[%s3 + $0x4a4] sm:$0xff]
    %v626 = vld [vmem:[%s3 + $0x4ac] sm:$0xf]
    %v627 = vld [vmem:[%s3 + $0x4b0] sm:$0xff]
    %v628 = vld [vmem:[%s3 + $0x4b8] sm:$0xff]
    %v629 = vld [vmem:[%s3 + $0x4c0] sm:$0xf]
    %v630 = vld [vmem:[%s3 + $0x4c4] sm:$0xff]
    %v631 = vld [vmem:[%s3 + $0x4cc] sm:$0xff]
    %v632 = vld [vmem:[%s3 + $0x4d4] sm:$0xf]
    %v633 = vld [vmem:[%s3 + $0x4d8] sm:$0xff]
    %v634 = vld [vmem:[%s3 + $0x4e0] sm:$0xff]
    %v635 = vld [vmem:[%s3 + $0x4e8] sm:$0xf]
    %v636 = vld [vmem:[%s3 + $0x4ec] sm:$0xff]
    %v637 = vld [vmem:[%s3 + $0x4f4] sm:$0xff]
    %v638 = vld [vmem:[%s3 + $0x4fc] sm:$0xf]
    %v639 = vld [vmem:[%s3 + $0x500] sm:$0xff]
    %v640 = vld [vmem:[%s3 + $0x508] sm:$0xff]
    %v641 = vld [vmem:[%s3 + $0x510] sm:$0xf]
    %v642 = vld [vmem:[%s3 + $0x514] sm:$0xff]
    %v643 = vld [vmem:[%s3 + $0x51c] sm:$0xff]
    %v644 = vld [vmem:[%s3 + $0x524] sm:$0xf]
    %v645 = vld [vmem:[%s3 + $0x528] sm:$0xff]
    %v646 = vld [vmem:[%s3 + $0x530] sm:$0xff]
    %v647 = vld [vmem:[%s3 + $0x538] sm:$0xf]
    %v648 = vld [vmem:[%s3 + $0x53c] sm:$0xff]
    %v649 = vld [vmem:[%s3 + $0x544] sm:$0xff]
    %v650 = vld [vmem:[%s3 + $0x54c] sm:$0xf]
    %v651 = vld [vmem:[%s3 + $0x550] sm:$0xff]
    %v652 = vld [vmem:[%s3 + $0x558] sm:$0xff]
    %v653 = vld [vmem:[%s3 + $0x560] sm:$0xf]
    %v654 = vld [vmem:[%s3 + $0x564] sm:$0xff]
    %v655 = vld [vmem:[%s3 + $0x56c] sm:$0xff]
    %v656 = vld [vmem:[%s3 + $0x574] sm:$0xf]
    %v657 = vld [vmem:[%s3 + $0x578] sm:$0xff]
    %v658 = vld [vmem:[%s3 + $0x580] sm:$0xff]
    %v659 = vld [vmem:[%s3 + $0x588] sm:$0xf]
    %v660 = vld [vmem:[%s3 + $0x58c] sm:$0xff]
    %v661 = vld [vmem:[%s3 + $0x594] sm:$0xff]
    %v662 = vld [vmem:[%s3 + $0x59c] sm:$0xf]
    %v663 = vld [vmem:[%s3 + $0x5a0] sm:$0xff]
    %v664 = vld [vmem:[%s3 + $0x5a8] sm:$0xff]
    %v665 = vld [vmem:[%s3 + $0x5b0] sm:$0xf]
    %v666 = vld [vmem:[%s3 + $0x5b4] sm:$0xff]
    %v667 = vld [vmem:[%s3 + $0x5bc] sm:$0xff]
    %v668 = vld [vmem:[%s3 + $0x5c4] sm:$0xf]
    %v669 = vld [vmem:[%s3 + $0x5c8] sm:$0xff]
    %v670 = vld [vmem:[%s3 + $0x5d0] sm:$0xff]
    %v671 = vld [vmem:[%s3 + $0x5d8] sm:$0xf]
    %v672 = vld [vmem:[%s3 + $0x5dc] sm:$0xff]
    %v673 = vld [vmem:[%s3 + $0x5e4] sm:$0xff]
    %v674 = vld [vmem:[%s3 + $0x5ec] sm:$0xf]
    %v675 = vld [vmem:[%s3 + $0x5f0] sm:$0xff]
    %v676 = vld [vmem:[%s3 + $0x5f8] sm:$0xff]
    %v677 = vld [vmem:[%s3 + $0x600] sm:$0xf]
    %v678 = vld [vmem:[%s3 + $0x604] sm:$0xff]
    %v679 = vld [vmem:[%s3 + $0x60c] sm:$0xff]
    %v680 = vld [vmem:[%s3 + $0x614] sm:$0xf]
    %v681 = vld [vmem:[%s3 + $0x618] sm:$0xff]
    %v682 = vld [vmem:[%s3 + $0x620] sm:$0xff]
    %v683 = vld [vmem:[%s3 + $0x628] sm:$0xf]
    %v684 = vld [vmem:[%s3 + $0x62c] sm:$0xff]
    %v685 = vld [vmem:[%s3 + $0x634] sm:$0xff]
    %v686 = vld [vmem:[%s3 + $0x63c] sm:$0xf]
    %v687 = vld [vmem:[%s3 + $0x640] sm:$0xff]
    %v688 = vld [vmem:[%s3 + $0x648] sm:$0xff]
    %v689 = vld [vmem:[%s3 + $0x650] sm:$0xf]
    %v690 = vld [vmem:[%s3 + $0x654] sm:$0xff]
    %v691 = vld [vmem:[%s3 + $0x65c] sm:$0xff]
    %v692 = vld [vmem:[%s3 + $0x664] sm:$0xf]
    %v693 = vld [vmem:[%s3 + $0x668] sm:$0xff]
    %v694 = vld [vmem:[%s3 + $0x670] sm:$0xff]
    %v695 = vld [vmem:[%s3 + $0x678] sm:$0xf]
    %v696 = vld [vmem:[%s3 + $0x67c] sm:$0xff]
    %v697 = vld [vmem:[%s3 + $0x684] sm:$0xff]
    %v698 = vld [vmem:[%s3 + $0x68c] sm:$0xf]
    %v699 = vld [vmem:[%s3 + $0x690] sm:$0xff]
    %v700 = vld [vmem:[%s3 + $0x698] sm:$0xff]
    %v701 = vld [vmem:[%s3 + $0x6a0] sm:$0xf]
    %v702 = vld [vmem:[%s3 + $0x6a4] sm:$0xff]
    %v703 = vld [vmem:[%s3 + $0x6ac] sm:$0xff]
    %v704 = vld [vmem:[%s3 + $0x6b4] sm:$0xf]
    %v705 = vld [vmem:[%s3 + $0x6b8] sm:$0xff]
    %v706 = vld [vmem:[%s3 + $0x6c0] sm:$0xff]
    %v707 = vld [vmem:[%s3 + $0x6c8] sm:$0xf]
    %v708 = vld [vmem:[%s3 + $0x6cc] sm:$0xff]
    %v709 = vld [vmem:[%s3 + $0x6d4] sm:$0xff]
    %v710 = vld [vmem:[%s3 + $0x6dc] sm:$0xf]
    %v711 = vld [vmem:[%s3 + $0x6e0] sm:$0xff]
    %v712 = vld [vmem:[%s3 + $0x6e8] sm:$0xff]
    %v713 = vld [vmem:[%s3 + $0x6f0] sm:$0xf]
    %v714 = vld [vmem:[%s3 + $0x6f4] sm:$0xff]
    %v715 = vld [vmem:[%s3 + $0x6fc] sm:$0xff]
    %v716 = vld [vmem:[%s3 + $0x704] sm:$0xf]
    %v717 = vld [vmem:[%s3 + $0x708] sm:$0xff]
    %v718 = vld [vmem:[%s3 + $0x710] sm:$0xff]
    %v719 = vld [vmem:[%s3 + $0x718] sm:$0xf]
    %v720 = vld [vmem:[%s3 + $0x71c] sm:$0xff]
    %v721 = vld [vmem:[%s3 + $0x724] sm:$0xff]
    %v722 = vld [vmem:[%s3 + $0x72c] sm:$0xf]
    %v723 = vld [vmem:[%s3 + $0x730] sm:$0xff]
    %v724 = vld [vmem:[%s3 + $0x738] sm:$0xff]
    %v725 = vld [vmem:[%s3 + $0x740] sm:$0xf]
    %v726 = vld [vmem:[%s3 + $0x744] sm:$0xff]
    %v727 = vld [vmem:[%s3 + $0x74c] sm:$0xff]
    %v728 = vld [vmem:[%s3 + $0x754] sm:$0xf]
    %v729 = vld [vmem:[%s3 + $0x758] sm:$0xff]
    %v730 = vld [vmem:[%s3 + $0x760] sm:$0xff]
    %v731 = vld [vmem:[%s3 + $0x768] sm:$0xf]
    %v732 = vld [vmem:[%s3 + $0x76c] sm:$0xff]
    %v733 = vld [vmem:[%s3 + $0x774] sm:$0xff]
    %v734 = vld [vmem:[%s3 + $0x77c] sm:$0xf]
    %v735 = vld [vmem:[%s3 + $0x780] sm:$0xff]
    %v736 = vld [vmem:[%s3 + $0x788] sm:$0xff]
    %v737 = vld [vmem:[%s3 + $0x790] sm:$0xf]
    %v738 = vld [vmem:[%s3 + $0x794] sm:$0xff]
    %v739 = vld [vmem:[%s3 + $0x79c] sm:$0xff]
    %v740 = vld [vmem:[%s3 + $0x7a4] sm:$0xf]
    %v741 = vld [vmem:[%s3 + $0x7a8] sm:$0xff]
    %v742 = vld [vmem:[%s3 + $0x7b0] sm:$0xff]
    %v743 = vld [vmem:[%s3 + $0x7b8] sm:$0xf]
    %v744 = vld [vmem:[%s3 + $0x7bc] sm:$0xff]
    %v745 = vld [vmem:[%s3 + $0x7c4] sm:$0xff]
    %v746 = vld [vmem:[%s3 + $0x7cc] sm:$0xf]
    %v747 = vld [vmem:[%s3 + $0x7d0] sm:$0xff]
    %v748 = vld [vmem:[%s3 + $0x7d8] sm:$0xff]
    %v749 = vld [vmem:[%s3 + $0x7e0] sm:$0xf]
    %v750 = vld [vmem:[%s3 + $0x7e4] sm:$0xff]
    %v751 = vld [vmem:[%s3 + $0x7ec] sm:$0xff]
    %v752 = vld [vmem:[%s3 + $0x7f4] sm:$0xf]
    %v753 = vld [vmem:[%s3 + $0x7f8] sm:$0xff]
    %v754 = vld [vmem:[%s3 + $0x800] sm:$0xff]
    %v755 = vld [vmem:[%s3 + $0x808] sm:$0xf]
    %v756 = vld [vmem:[%s3 + $0x80c] sm:$0xff]
    %v757 = vld [vmem:[%s3 + $0x814] sm:$0xff]
    %v758 = vld [vmem:[%s3 + $0x81c] sm:$0xf]
    %v759 = vld [vmem:[%s3 + $0x820] sm:$0xff]
    %v760 = vld [vmem:[%s3 + $0x828] sm:$0xff]
    %v761 = vld [vmem:[%s3 + $0x830] sm:$0xf]
    %v762 = vld [vmem:[%s3 + $0x834] sm:$0xff]
    %v763 = vld [vmem:[%s3 + $0x83c] sm:$0xff]
    %v764 = vld [vmem:[%s3 + $0x844] sm:$0xf]
    %v765 = vld [vmem:[%s3 + $0x848] sm:$0xff]
    %v766 = vld [vmem:[%s3 + $0x850] sm:$0xff]
    %v767 = vld [vmem:[%s3 + $0x858] sm:$0xf]
    %v768 = vld [vmem:[%s3 + $0x85c] sm:$0xff]
    %v769 = vld [vmem:[%s3 + $0x864] sm:$0xff]
    %v770 = vld [vmem:[%s3 + $0x86c] sm:$0xf]
    %v771 = vld [vmem:[%s3 + $0x870] sm:$0xff]
    %v772 = vld [vmem:[%s3 + $0x878] sm:$0xff]
    %v773 = vld [vmem:[%s3 + $0x880] sm:$0xf]
    %v774 = vld [vmem:[%s3 + $0x884] sm:$0xff]
    %v775 = vld [vmem:[%s3 + $0x88c] sm:$0xff]
    %v776 = vld [vmem:[%s3 + $0x894] sm:$0xf]
    %v777 = vld [vmem:[%s3 + $0x898] sm:$0xff]
    %v778 = vld [vmem:[%s3 + $0x8a0] sm:$0xff]
    %v779 = vld [vmem:[%s3 + $0x8a8] sm:$0xf]
    %v780 = vld [vmem:[%s3 + $0x8ac] sm:$0xff]
    %v781 = vld [vmem:[%s3 + $0x8b4] sm:$0xff]
    %v782 = vld [vmem:[%s3 + $0x8bc] sm:$0xf]
    %v783 = vld [vmem:[%s3 + $0x8c0] sm:$0xff]
    %v784 = vld [vmem:[%s3 + $0x8c8] sm:$0xff]
    %v785 = vld [vmem:[%s3 + $0x8d0] sm:$0xf]
    %v786 = vld [vmem:[%s3 + $0x8d4] sm:$0xff]
    %v787 = vld [vmem:[%s3 + $0x8dc] sm:$0xff]
    %v788 = vld [vmem:[%s3 + $0x8e4] sm:$0xf]
    %v789 = vld [vmem:[%s3 + $0x8e8] sm:$0xff]
    %v790 = vld [vmem:[%s3 + $0x8f0] sm:$0xff]
    %v791 = vld [vmem:[%s3 + $0x8f8] sm:$0xf]
    %v792 = vld [vmem:[%s3 + $0x8fc] sm:$0xff]
    %v793 = vld [vmem:[%s3 + $0x904] sm:$0xff]
    %v794 = vld [vmem:[%s3 + $0x90c] sm:$0xf]
    %v795 = vld [vmem:[%s3 + $0x910] sm:$0xff]
    %v796 = vld [vmem:[%s3 + $0x918] sm:$0xff]
    %v797 = vld [vmem:[%s3 + $0x920] sm:$0xf]
    %v798 = vld [vmem:[%s3 + $0x924] sm:$0xff]
    %v799 = vld [vmem:[%s3 + $0x92c] sm:$0xff]
    %v800 = vld [vmem:[%s3 + $0x934] sm:$0xf]
    %v801 = vld [vmem:[%s3 + $0x938] sm:$0xff]
    %v802 = vld [vmem:[%s3 + $0x940] sm:$0xff]
    %v803 = vld [vmem:[%s3 + $0x948] sm:$0xf]
    %v804 = vld [vmem:[%s3 + $0x94c] sm:$0xff]
    %v805 = vld [vmem:[%s3 + $0x954] sm:$0xff]
    %v806 = vld [vmem:[%s3 + $0x95c] sm:$0xf]
    %v807 = vld [vmem:[%s3 + $0x960] sm:$0xff]
    %v808 = vld [vmem:[%s3 + $0x968] sm:$0xff]
    %v809 = vld [vmem:[%s3 + $0x970] sm:$0xf]
    %v810 = vld [vmem:[%s3 + $0x974] sm:$0xff]
    %v811 = vld [vmem:[%s3 + $0x97c] sm:$0xff]
    %v812 = vld [vmem:[%s3 + $0x984] sm:$0xf]
    %v813 = vld [vmem:[%s3 + $0x988] sm:$0xff]
    %v814 = vld [vmem:[%s3 + $0x990] sm:$0xff]
    %v815 = vld [vmem:[%s3 + $0x998] sm:$0xf]
    %v816 = vld [vmem:[%s3 + $0x99c] sm:$0xff]
    %v817 = vld [vmem:[%s3 + $0x9a4] sm:$0xff]
    %v818 = vld [vmem:[%s3 + $0x9ac] sm:$0xf]
    %v819 = vld [vmem:[%s3 + $0x9b0] sm:$0xff]
    %v820 = vld [vmem:[%s3 + $0x9b8] sm:$0xff]
    %v821 = vld [vmem:[%s3 + $0x9c0] sm:$0xf]
    %v822 = vld [vmem:[%s3 + $0x9c4] sm:$0xff]
    %v823 = vld [vmem:[%s3 + $0x9cc] sm:$0xff]
    %v824 = vld [vmem:[%s3 + $0x9d4] sm:$0xf]
    %v825 = vld [vmem:[%s3 + $0x9d8] sm:$0xff]
    %v826 = vld [vmem:[%s3 + $0x9e0] sm:$0xff]
    %v827 = vld [vmem:[%s3 + $0x9e8] sm:$0xf]
    %v828 = vld [vmem:[%s3 + $0x9ec] sm:$0xff]
    %v829 = vld [vmem:[%s3 + $0x9f4] sm:$0xff]
    %v830 = vld [vmem:[%s3 + $0x9fc] sm:$0xf]
    %v831 = vld [vmem:[%s3 + $0xa00] sm:$0xff]
    %v832 = vld [vmem:[%s3 + $0xa08] sm:$0xff]
    %v833 = vld [vmem:[%s3 + $0xa10] sm:$0xf]
    %v834 = vld [vmem:[%s3 + $0xa14] sm:$0xff]
    %v835 = vld [vmem:[%s3 + $0xa1c] sm:$0xff]
    %v836 = vld [vmem:[%s3 + $0xa24] sm:$0xf]
    %v837 = vld [vmem:[%s3 + $0xa28] sm:$0xff]
    %v838 = vld [vmem:[%s3 + $0xa30] sm:$0xff]
    %v839 = vld [vmem:[%s3 + $0xa38] sm:$0xf]
    %v840 = vld [vmem:[%s3 + $0xa3c] sm:$0xff]
    %v841 = vld [vmem:[%s3 + $0xa44] sm:$0xff]
    %v842 = vld [vmem:[%s3 + $0xa4c] sm:$0xf]
    %v843 = vld [vmem:[%s4] sm:$0x1f]
    %v845 = vlaneseq
    %v846 = vshrl.u32 %v845, 7
    %v847 = vsub.s32 0, %v846
    %v848 = vrot.slane %v843, %v847
    %v849 = vlaneseq
    %v850 = vshrl.u32 %v849, 7
    %v851 = vsub.s32 1, %v850
    %v852 = vrot.slane %v843, %v851
    %v853 = vlaneseq
    %v854 = vshrl.u32 %v853, 7
    %v855 = vsub.s32 2, %v854
    %v856 = vrot.slane %v843, %v855
    %v857 = vlaneseq
    %v858 = vshrl.u32 %v857, 7
    %v859 = vsub.s32 3, %v858
    %v860 = vrot.slane %v843, %v859
    %v861 = vlaneseq
    %v862 = vshrl.u32 %v861, 7
    %v863 = vsub.s32 4, %v862
    %v864 = vrot.slane %v843, %v863
    %v1266 = vunpack.c.l.b16 %v447
    %v1267 = vunpack.c.h.b16 %v447
    %v1268 = vunpack.c.l.b16 %v448
    %v1269 = vunpack.c.h.b16 %v448
    %v1270 = vunpack.c.l.b16 %v449
    %v1271 = vunpack.c.l.b16 %v450
    %v1272 = vunpack.c.h.b16 %v450
    %v1273 = vunpack.c.l.b16 %v451
    %v1274 = vunpack.c.h.b16 %v451
    %v1275 = vunpack.c.l.b16 %v452
    %v1276 = vunpack.c.l.b16 %v453
    %v1277 = vunpack.c.h.b16 %v453
    %v1278 = vunpack.c.l.b16 %v454
    %v1279 = vunpack.c.h.b16 %v454
    %v1280 = vunpack.c.l.b16 %v455
    %v1281 = vunpack.c.l.b16 %v456
    %v1282 = vunpack.c.h.b16 %v456
    %v1283 = vunpack.c.l.b16 %v457
    %v1284 = vunpack.c.h.b16 %v457
    %v1285 = vunpack.c.l.b16 %v458
    %v1286 = vunpack.c.l.b16 %v459
    %v1287 = vunpack.c.h.b16 %v459
    %v1288 = vunpack.c.l.b16 %v460
    %v1289 = vunpack.c.h.b16 %v460
    %v1290 = vunpack.c.l.b16 %v461
    %v1291 = vunpack.c.l.b16 %v462
    %v1292 = vunpack.c.h.b16 %v462
    %v1293 = vunpack.c.l.b16 %v463
    %v1294 = vunpack.c.h.b16 %v463
    %v1295 = vunpack.c.l.b16 %v464
    %v1296 = vunpack.c.l.b16 %v465
    %v1297 = vunpack.c.h.b16 %v465
    %v1298 = vunpack.c.l.b16 %v466
    %v1299 = vunpack.c.h.b16 %v466
    %v1300 = vunpack.c.l.b16 %v467
    %v1301 = vunpack.c.l.b16 %v468
    %v1302 = vunpack.c.h.b16 %v468
    %v1303 = vunpack.c.l.b16 %v469
    %v1304 = vunpack.c.h.b16 %v469
    %v1305 = vunpack.c.l.b16 %v470
    %v1306 = vunpack.c.l.b16 %v471
    %v1307 = vunpack.c.h.b16 %v471
    %v1308 = vunpack.c.l.b16 %v472
    %v1309 = vunpack.c.h.b16 %v472
    %v1310 = vunpack.c.l.b16 %v473
    %v1311 = vunpack.c.l.b16 %v474
    %v1312 = vunpack.c.h.b16 %v474
    %v1313 = vunpack.c.l.b16 %v475
    %v1314 = vunpack.c.h.b16 %v475
    %v1315 = vunpack.c.l.b16 %v476
    %v1316 = vunpack.c.l.b16 %v477
    %v1317 = vunpack.c.h.b16 %v477
    %v1318 = vunpack.c.l.b16 %v478
    %v1319 = vunpack.c.h.b16 %v478
    %v1320 = vunpack.c.l.b16 %v479
    %v1321 = vunpack.c.l.b16 %v480
    %v1322 = vunpack.c.h.b16 %v480
    %v1323 = vunpack.c.l.b16 %v481
    %v1324 = vunpack.c.h.b16 %v481
    %v1325 = vunpack.c.l.b16 %v482
    %v1326 = vunpack.c.l.b16 %v483
    %v1327 = vunpack.c.h.b16 %v483
    %v1328 = vunpack.c.l.b16 %v484
    %v1329 = vunpack.c.h.b16 %v484
    %v1330 = vunpack.c.l.b16 %v485
    %v1331 = vunpack.c.l.b16 %v486
    %v1332 = vunpack.c.h.b16 %v486
    %v1333 = vunpack.c.l.b16 %v487
    %v1334 = vunpack.c.h.b16 %v487
    %v1335 = vunpack.c.l.b16 %v488
    %v1336 = vunpack.c.l.b16 %v489
    %v1337 = vunpack.c.h.b16 %v489
    %v1338 = vunpack.c.l.b16 %v490
    %v1339 = vunpack.c.h.b16 %v490
    %v1340 = vunpack.c.l.b16 %v491
    %v1341 = vunpack.c.l.b16 %v492
    %v1342 = vunpack.c.h.b16 %v492
    %v1343 = vunpack.c.l.b16 %v493
    %v1344 = vunpack.c.h.b16 %v493
    %v1345 = vunpack.c.l.b16 %v494
    %v1346 = vunpack.c.l.b16 %v495
    %v1347 = vunpack.c.h.b16 %v495
    %v1348 = vunpack.c.l.b16 %v496
    %v1349 = vunpack.c.h.b16 %v496
    %v1350 = vunpack.c.l.b16 %v497
    %v1351 = vunpack.c.l.b16 %v498
    %v1352 = vunpack.c.h.b16 %v498
    %v1353 = vunpack.c.l.b16 %v499
    %v1354 = vunpack.c.h.b16 %v499
    %v1355 = vunpack.c.l.b16 %v500
    %v1356 = vunpack.c.l.b16 %v501
    %v1357 = vunpack.c.h.b16 %v501
    %v1358 = vunpack.c.l.b16 %v502
    %v1359 = vunpack.c.h.b16 %v502
    %v1360 = vunpack.c.l.b16 %v503
    %v1361 = vunpack.c.l.b16 %v504
    %v1362 = vunpack.c.h.b16 %v504
    %v1363 = vunpack.c.l.b16 %v505
    %v1364 = vunpack.c.h.b16 %v505
    %v1365 = vunpack.c.l.b16 %v506
    %v1366 = vunpack.c.l.b16 %v507
    %v1367 = vunpack.c.h.b16 %v507
    %v1368 = vunpack.c.l.b16 %v508
    %v1369 = vunpack.c.h.b16 %v508
    %v1370 = vunpack.c.l.b16 %v509
    %v1371 = vunpack.c.l.b16 %v510
    %v1372 = vunpack.c.h.b16 %v510
    %v1373 = vunpack.c.l.b16 %v511
    %v1374 = vunpack.c.h.b16 %v511
    %v1375 = vunpack.c.l.b16 %v512
    %v1376 = vunpack.c.l.b16 %v513
    %v1377 = vunpack.c.h.b16 %v513
    %v1378 = vunpack.c.l.b16 %v514
    %v1379 = vunpack.c.h.b16 %v514
    %v1380 = vunpack.c.l.b16 %v515
    %v1381 = vunpack.c.l.b16 %v516
    %v1382 = vunpack.c.h.b16 %v516
    %v1383 = vunpack.c.l.b16 %v517
    %v1384 = vunpack.c.h.b16 %v517
    %v1385 = vunpack.c.l.b16 %v518
    %v1386 = vunpack.c.l.b16 %v519
    %v1387 = vunpack.c.h.b16 %v519
    %v1388 = vunpack.c.l.b16 %v520
    %v1389 = vunpack.c.h.b16 %v520
    %v1390 = vunpack.c.l.b16 %v521
    %v1391 = vunpack.c.l.b16 %v522
    %v1392 = vunpack.c.h.b16 %v522
    %v1393 = vunpack.c.l.b16 %v523
    %v1394 = vunpack.c.h.b16 %v523
    %v1395 = vunpack.c.l.b16 %v524
    %v1396 = vunpack.c.l.b16 %v525
    %v1397 = vunpack.c.h.b16 %v525
    %v1398 = vunpack.c.l.b16 %v526
    %v1399 = vunpack.c.h.b16 %v526
    %v1400 = vunpack.c.l.b16 %v527
    %v1401 = vunpack.c.l.b16 %v528
    %v1402 = vunpack.c.h.b16 %v528
    %v1403 = vunpack.c.l.b16 %v529
    %v1404 = vunpack.c.h.b16 %v529
    %v1405 = vunpack.c.l.b16 %v530
    %v1406 = vunpack.c.l.b16 %v531
    %v1407 = vunpack.c.h.b16 %v531
    %v1408 = vunpack.c.l.b16 %v532
    %v1409 = vunpack.c.h.b16 %v532
    %v1410 = vunpack.c.l.b16 %v533
    %v1411 = vunpack.c.l.b16 %v534
    %v1412 = vunpack.c.h.b16 %v534
    %v1413 = vunpack.c.l.b16 %v535
    %v1414 = vunpack.c.h.b16 %v535
    %v1415 = vunpack.c.l.b16 %v536
    %v1416 = vunpack.c.l.b16 %v537
    %v1417 = vunpack.c.h.b16 %v537
    %v1418 = vunpack.c.l.b16 %v538
    %v1419 = vunpack.c.h.b16 %v538
    %v1420 = vunpack.c.l.b16 %v539
    %v1421 = vunpack.c.l.b16 %v540
    %v1422 = vunpack.c.h.b16 %v540
    %v1423 = vunpack.c.l.b16 %v541
    %v1424 = vunpack.c.h.b16 %v541
    %v1425 = vunpack.c.l.b16 %v542
    %v1426 = vunpack.c.l.b16 %v543
    %v1427 = vunpack.c.h.b16 %v543
    %v1428 = vunpack.c.l.b16 %v544
    %v1429 = vunpack.c.h.b16 %v544
    %v1430 = vunpack.c.l.b16 %v545
    %v1431 = vunpack.c.l.b16 %v546
    %v1432 = vunpack.c.h.b16 %v546
    %v1433 = vunpack.c.l.b16 %v547
    %v1434 = vunpack.c.h.b16 %v547
    %v1435 = vunpack.c.l.b16 %v548
    %v1436 = vunpack.c.l.b16 %v549
    %v1437 = vunpack.c.h.b16 %v549
    %v1438 = vunpack.c.l.b16 %v550
    %v1439 = vunpack.c.h.b16 %v550
    %v1440 = vunpack.c.l.b16 %v551
    %v1441 = vunpack.c.l.b16 %v552
    %v1442 = vunpack.c.h.b16 %v552
    %v1443 = vunpack.c.l.b16 %v553
    %v1444 = vunpack.c.h.b16 %v553
    %v1445 = vunpack.c.l.b16 %v554
    %v1446 = vunpack.c.l.b16 %v555
    %v1447 = vunpack.c.h.b16 %v555
    %v1448 = vunpack.c.l.b16 %v556
    %v1449 = vunpack.c.h.b16 %v556
    %v1450 = vunpack.c.l.b16 %v557
    %v1451 = vunpack.c.l.b16 %v558
    %v1452 = vunpack.c.h.b16 %v558
    %v1453 = vunpack.c.l.b16 %v559
    %v1454 = vunpack.c.h.b16 %v559
    %v1455 = vunpack.c.l.b16 %v560
    %v1456 = vunpack.c.l.b16 %v561
    %v1457 = vunpack.c.h.b16 %v561
    %v1458 = vunpack.c.l.b16 %v562
    %v1459 = vunpack.c.h.b16 %v562
    %v1460 = vunpack.c.l.b16 %v563
    %v1461 = vunpack.c.l.b16 %v564
    %v1462 = vunpack.c.h.b16 %v564
    %v1463 = vunpack.c.l.b16 %v565
    %v1464 = vunpack.c.h.b16 %v565
    %v1465 = vunpack.c.l.b16 %v566
    %v1466 = vunpack.c.l.b16 %v567
    %v1467 = vunpack.c.h.b16 %v567
    %v1468 = vunpack.c.l.b16 %v568
    %v1469 = vunpack.c.h.b16 %v568
    %v1470 = vunpack.c.l.b16 %v569
    %v1471 = vunpack.c.l.b16 %v570
    %v1472 = vunpack.c.h.b16 %v570
    %v1473 = vunpack.c.l.b16 %v571
    %v1474 = vunpack.c.h.b16 %v571
    %v1475 = vunpack.c.l.b16 %v572
    %v1476 = vunpack.c.l.b16 %v573
    %v1477 = vunpack.c.h.b16 %v573
    %v1478 = vunpack.c.l.b16 %v574
    %v1479 = vunpack.c.h.b16 %v574
    %v1480 = vunpack.c.l.b16 %v575
    %v1481 = vunpack.c.l.b16 %v576
    %v1482 = vunpack.c.h.b16 %v576
    %v1483 = vunpack.c.l.b16 %v577
    %v1484 = vunpack.c.h.b16 %v577
    %v1485 = vunpack.c.l.b16 %v578
    %v1486 = vunpack.c.l.b16 %v579
    %v1487 = vunpack.c.h.b16 %v579
    %v1488 = vunpack.c.l.b16 %v580
    %v1489 = vunpack.c.h.b16 %v580
    %v1490 = vunpack.c.l.b16 %v581
    %v1491 = vunpack.c.l.b16 %v582
    %v1492 = vunpack.c.h.b16 %v582
    %v1493 = vunpack.c.l.b16 %v583
    %v1494 = vunpack.c.h.b16 %v583
    %v1495 = vunpack.c.l.b16 %v584
    %v1496 = vunpack.c.l.b16 %v585
    %v1497 = vunpack.c.h.b16 %v585
    %v1498 = vunpack.c.l.b16 %v586
    %v1499 = vunpack.c.h.b16 %v586
    %v1500 = vunpack.c.l.b16 %v587
    %v1501 = vunpack.c.l.b16 %v588
    %v1502 = vunpack.c.h.b16 %v588
    %v1503 = vunpack.c.l.b16 %v589
    %v1504 = vunpack.c.h.b16 %v589
    %v1505 = vunpack.c.l.b16 %v590
    %v1506 = vunpack.c.l.b16 %v591
    %v1507 = vunpack.c.h.b16 %v591
    %v1508 = vunpack.c.l.b16 %v592
    %v1509 = vunpack.c.h.b16 %v592
    %v1510 = vunpack.c.l.b16 %v593
    %v1511 = vunpack.c.l.b16 %v594
    %v1512 = vunpack.c.h.b16 %v594
    %v1513 = vunpack.c.l.b16 %v595
    %v1514 = vunpack.c.h.b16 %v595
    %v1515 = vunpack.c.l.b16 %v596
    %v1516 = vunpack.c.l.b16 %v597
    %v1517 = vunpack.c.h.b16 %v597
    %v1518 = vunpack.c.l.b16 %v598
    %v1519 = vunpack.c.h.b16 %v598
    %v1520 = vunpack.c.l.b16 %v599
    %v1521 = vunpack.c.l.b16 %v600
    %v1522 = vunpack.c.h.b16 %v600
    %v1523 = vunpack.c.l.b16 %v601
    %v1524 = vunpack.c.h.b16 %v601
    %v1525 = vunpack.c.l.b16 %v602
    %v1526 = vunpack.c.l.b16 %v603
    %v1527 = vunpack.c.h.b16 %v603
    %v1528 = vunpack.c.l.b16 %v604
    %v1529 = vunpack.c.h.b16 %v604
    %v1530 = vunpack.c.l.b16 %v605
    %v1531 = vunpack.c.l.b16 %v606
    %v1532 = vunpack.c.h.b16 %v606
    %v1533 = vunpack.c.l.b16 %v607
    %v1534 = vunpack.c.h.b16 %v607
    %v1535 = vunpack.c.l.b16 %v608
    %v1536 = vunpack.c.l.b16 %v609
    %v1537 = vunpack.c.h.b16 %v609
    %v1538 = vunpack.c.l.b16 %v610
    %v1539 = vunpack.c.h.b16 %v610
    %v1540 = vunpack.c.l.b16 %v611
    %v1541 = vunpack.c.l.b16 %v612
    %v1542 = vunpack.c.h.b16 %v612
    %v1543 = vunpack.c.l.b16 %v613
    %v1544 = vunpack.c.h.b16 %v613
    %v1545 = vunpack.c.l.b16 %v614
    %v1546 = vunpack.c.l.b16 %v615
    %v1547 = vunpack.c.h.b16 %v615
    %v1548 = vunpack.c.l.b16 %v616
    %v1549 = vunpack.c.h.b16 %v616
    %v1550 = vunpack.c.l.b16 %v617
    %v1551 = vunpack.c.l.b16 %v618
    %v1552 = vunpack.c.h.b16 %v618
    %v1553 = vunpack.c.l.b16 %v619
    %v1554 = vunpack.c.h.b16 %v619
    %v1555 = vunpack.c.l.b16 %v620
    %v1556 = vunpack.c.l.b16 %v621
    %v1557 = vunpack.c.h.b16 %v621
    %v1558 = vunpack.c.l.b16 %v622
    %v1559 = vunpack.c.h.b16 %v622
    %v1560 = vunpack.c.l.b16 %v623
    %v1561 = vunpack.c.l.b16 %v624
    %v1562 = vunpack.c.h.b16 %v624
    %v1563 = vunpack.c.l.b16 %v625
    %v1564 = vunpack.c.h.b16 %v625
    %v1565 = vunpack.c.l.b16 %v626
    %v1566 = vunpack.c.l.b16 %v627
    %v1567 = vunpack.c.h.b16 %v627
    %v1568 = vunpack.c.l.b16 %v628
    %v1569 = vunpack.c.h.b16 %v628
    %v1570 = vunpack.c.l.b16 %v629
    %v1571 = vunpack.c.l.b16 %v630
    %v1572 = vunpack.c.h.b16 %v630
    %v1573 = vunpack.c.l.b16 %v631
    %v1574 = vunpack.c.h.b16 %v631
    %v1575 = vunpack.c.l.b16 %v632
    %v1576 = vunpack.c.l.b16 %v633
    %v1577 = vunpack.c.h.b16 %v633
    %v1578 = vunpack.c.l.b16 %v634
    %v1579 = vunpack.c.h.b16 %v634
    %v1580 = vunpack.c.l.b16 %v635
    %v1581 = vunpack.c.l.b16 %v636
    %v1582 = vunpack.c.h.b16 %v636
    %v1583 = vunpack.c.l.b16 %v637
    %v1584 = vunpack.c.h.b16 %v637
    %v1585 = vunpack.c.l.b16 %v638
    %v1586 = vunpack.c.l.b16 %v639
    %v1587 = vunpack.c.h.b16 %v639
    %v1588 = vunpack.c.l.b16 %v640
    %v1589 = vunpack.c.h.b16 %v640
    %v1590 = vunpack.c.l.b16 %v641
    %v1591 = vunpack.c.l.b16 %v642
    %v1592 = vunpack.c.h.b16 %v642
    %v1593 = vunpack.c.l.b16 %v643
    %v1594 = vunpack.c.h.b16 %v643
    %v1595 = vunpack.c.l.b16 %v644
    %v1596 = vunpack.c.l.b16 %v645
    %v1597 = vunpack.c.h.b16 %v645
    %v1598 = vunpack.c.l.b16 %v646
    %v1599 = vunpack.c.h.b16 %v646
    %v1600 = vunpack.c.l.b16 %v647
    %v1601 = vunpack.c.l.b16 %v648
    %v1602 = vunpack.c.h.b16 %v648
    %v1603 = vunpack.c.l.b16 %v649
    %v1604 = vunpack.c.h.b16 %v649
    %v1605 = vunpack.c.l.b16 %v650
    %v1606 = vunpack.c.l.b16 %v651
    %v1607 = vunpack.c.h.b16 %v651
    %v1608 = vunpack.c.l.b16 %v652
    %v1609 = vunpack.c.h.b16 %v652
    %v1610 = vunpack.c.l.b16 %v653
    %v1611 = vunpack.c.l.b16 %v654
    %v1612 = vunpack.c.h.b16 %v654
    %v1613 = vunpack.c.l.b16 %v655
    %v1614 = vunpack.c.h.b16 %v655
    %v1615 = vunpack.c.l.b16 %v656
    %v1616 = vunpack.c.l.b16 %v657
    %v1617 = vunpack.c.h.b16 %v657
    %v1618 = vunpack.c.l.b16 %v658
    %v1619 = vunpack.c.h.b16 %v658
    %v1620 = vunpack.c.l.b16 %v659
    %v1621 = vunpack.c.l.b16 %v660
    %v1622 = vunpack.c.h.b16 %v660
    %v1623 = vunpack.c.l.b16 %v661
    %v1624 = vunpack.c.h.b16 %v661
    %v1625 = vunpack.c.l.b16 %v662
    %v1626 = vunpack.c.l.b16 %v663
    %v1627 = vunpack.c.h.b16 %v663
    %v1628 = vunpack.c.l.b16 %v664
    %v1629 = vunpack.c.h.b16 %v664
    %v1630 = vunpack.c.l.b16 %v665
    %v1631 = vunpack.c.l.b16 %v666
    %v1632 = vunpack.c.h.b16 %v666
    %v1633 = vunpack.c.l.b16 %v667
    %v1634 = vunpack.c.h.b16 %v667
    %v1635 = vunpack.c.l.b16 %v668
    %v1636 = vunpack.c.l.b16 %v669
    %v1637 = vunpack.c.h.b16 %v669
    %v1638 = vunpack.c.l.b16 %v670
    %v1639 = vunpack.c.h.b16 %v670
    %v1640 = vunpack.c.l.b16 %v671
    %v1641 = vunpack.c.l.b16 %v672
    %v1642 = vunpack.c.h.b16 %v672
    %v1643 = vunpack.c.l.b16 %v673
    %v1644 = vunpack.c.h.b16 %v673
    %v1645 = vunpack.c.l.b16 %v674
    %v1646 = vunpack.c.l.b16 %v675
    %v1647 = vunpack.c.h.b16 %v675
    %v1648 = vunpack.c.l.b16 %v676
    %v1649 = vunpack.c.h.b16 %v676
    %v1650 = vunpack.c.l.b16 %v677
    %v1651 = vunpack.c.l.b16 %v678
    %v1652 = vunpack.c.h.b16 %v678
    %v1653 = vunpack.c.l.b16 %v679
    %v1654 = vunpack.c.h.b16 %v679
    %v1655 = vunpack.c.l.b16 %v680
    %v1656 = vunpack.c.l.b16 %v681
    %v1657 = vunpack.c.h.b16 %v681
    %v1658 = vunpack.c.l.b16 %v682
    %v1659 = vunpack.c.h.b16 %v682
    %v1660 = vunpack.c.l.b16 %v683
    %v1661 = vunpack.c.l.b16 %v684
    %v1662 = vunpack.c.h.b16 %v684
    %v1663 = vunpack.c.l.b16 %v685
    %v1664 = vunpack.c.h.b16 %v685
    %v1665 = vunpack.c.l.b16 %v686
    %v1666 = vunpack.c.l.b16 %v687
    %v1667 = vunpack.c.h.b16 %v687
    %v1668 = vunpack.c.l.b16 %v688
    %v1669 = vunpack.c.h.b16 %v688
    %v1670 = vunpack.c.l.b16 %v689
    %v1671 = vunpack.c.l.b16 %v690
    %v1672 = vunpack.c.h.b16 %v690
    %v1673 = vunpack.c.l.b16 %v691
    %v1674 = vunpack.c.h.b16 %v691
    %v1675 = vunpack.c.l.b16 %v692
    %v1676 = vunpack.c.l.b16 %v693
    %v1677 = vunpack.c.h.b16 %v693
    %v1678 = vunpack.c.l.b16 %v694
    %v1679 = vunpack.c.h.b16 %v694
    %v1680 = vunpack.c.l.b16 %v695
    %v1681 = vunpack.c.l.b16 %v696
    %v1682 = vunpack.c.h.b16 %v696
    %v1683 = vunpack.c.l.b16 %v697
    %v1684 = vunpack.c.h.b16 %v697
    %v1685 = vunpack.c.l.b16 %v698
    %v1686 = vunpack.c.l.b16 %v699
    %v1687 = vunpack.c.h.b16 %v699
    %v1688 = vunpack.c.l.b16 %v700
    %v1689 = vunpack.c.h.b16 %v700
    %v1690 = vunpack.c.l.b16 %v701
    %v1691 = vunpack.c.l.b16 %v702
    %v1692 = vunpack.c.h.b16 %v702
    %v1693 = vunpack.c.l.b16 %v703
    %v1694 = vunpack.c.h.b16 %v703
    %v1695 = vunpack.c.l.b16 %v704
    %v1696 = vunpack.c.l.b16 %v705
    %v1697 = vunpack.c.h.b16 %v705
    %v1698 = vunpack.c.l.b16 %v706
    %v1699 = vunpack.c.h.b16 %v706
    %v1700 = vunpack.c.l.b16 %v707
    %v1701 = vunpack.c.l.b16 %v708
    %v1702 = vunpack.c.h.b16 %v708
    %v1703 = vunpack.c.l.b16 %v709
    %v1704 = vunpack.c.h.b16 %v709
    %v1705 = vunpack.c.l.b16 %v710
    %v1706 = vunpack.c.l.b16 %v711
    %v1707 = vunpack.c.h.b16 %v711
    %v1708 = vunpack.c.l.b16 %v712
    %v1709 = vunpack.c.h.b16 %v712
    %v1710 = vunpack.c.l.b16 %v713
    %v1711 = vunpack.c.l.b16 %v714
    %v1712 = vunpack.c.h.b16 %v714
    %v1713 = vunpack.c.l.b16 %v715
    %v1714 = vunpack.c.h.b16 %v715
    %v1715 = vunpack.c.l.b16 %v716
    %v1716 = vunpack.c.l.b16 %v717
    %v1717 = vunpack.c.h.b16 %v717
    %v1718 = vunpack.c.l.b16 %v718
    %v1719 = vunpack.c.h.b16 %v718
    %v1720 = vunpack.c.l.b16 %v719
    %v1721 = vunpack.c.l.b16 %v720
    %v1722 = vunpack.c.h.b16 %v720
    %v1723 = vunpack.c.l.b16 %v721
    %v1724 = vunpack.c.h.b16 %v721
    %v1725 = vunpack.c.l.b16 %v722
    %v1726 = vunpack.c.l.b16 %v723
    %v1727 = vunpack.c.h.b16 %v723
    %v1728 = vunpack.c.l.b16 %v724
    %v1729 = vunpack.c.h.b16 %v724
    %v1730 = vunpack.c.l.b16 %v725
    %v1731 = vunpack.c.l.b16 %v726
    %v1732 = vunpack.c.h.b16 %v726
    %v1733 = vunpack.c.l.b16 %v727
    %v1734 = vunpack.c.h.b16 %v727
    %v1735 = vunpack.c.l.b16 %v728
    %v1736 = vunpack.c.l.b16 %v729
    %v1737 = vunpack.c.h.b16 %v729
    %v1738 = vunpack.c.l.b16 %v730
    %v1739 = vunpack.c.h.b16 %v730
    %v1740 = vunpack.c.l.b16 %v731
    %v1741 = vunpack.c.l.b16 %v732
    %v1742 = vunpack.c.h.b16 %v732
    %v1743 = vunpack.c.l.b16 %v733
    %v1744 = vunpack.c.h.b16 %v733
    %v1745 = vunpack.c.l.b16 %v734
    %v1746 = vunpack.c.l.b16 %v735
    %v1747 = vunpack.c.h.b16 %v735
    %v1748 = vunpack.c.l.b16 %v736
    %v1749 = vunpack.c.h.b16 %v736
    %v1750 = vunpack.c.l.b16 %v737
    %v1751 = vunpack.c.l.b16 %v738
    %v1752 = vunpack.c.h.b16 %v738
    %v1753 = vunpack.c.l.b16 %v739
    %v1754 = vunpack.c.h.b16 %v739
    %v1755 = vunpack.c.l.b16 %v740
    %v1756 = vunpack.c.l.b16 %v741
    %v1757 = vunpack.c.h.b16 %v741
    %v1758 = vunpack.c.l.b16 %v742
    %v1759 = vunpack.c.h.b16 %v742
    %v1760 = vunpack.c.l.b16 %v743
    %v1761 = vunpack.c.l.b16 %v744
    %v1762 = vunpack.c.h.b16 %v744
    %v1763 = vunpack.c.l.b16 %v745
    %v1764 = vunpack.c.h.b16 %v745
    %v1765 = vunpack.c.l.b16 %v746
    %v1766 = vunpack.c.l.b16 %v747
    %v1767 = vunpack.c.h.b16 %v747
    %v1768 = vunpack.c.l.b16 %v748
    %v1769 = vunpack.c.h.b16 %v748
    %v1770 = vunpack.c.l.b16 %v749
    %v1771 = vunpack.c.l.b16 %v750
    %v1772 = vunpack.c.h.b16 %v750
    %v1773 = vunpack.c.l.b16 %v751
    %v1774 = vunpack.c.h.b16 %v751
    %v1775 = vunpack.c.l.b16 %v752
    %v1776 = vunpack.c.l.b16 %v753
    %v1777 = vunpack.c.h.b16 %v753
    %v1778 = vunpack.c.l.b16 %v754
    %v1779 = vunpack.c.h.b16 %v754
    %v1780 = vunpack.c.l.b16 %v755
    %v1781 = vunpack.c.l.b16 %v756
    %v1782 = vunpack.c.h.b16 %v756
    %v1783 = vunpack.c.l.b16 %v757
    %v1784 = vunpack.c.h.b16 %v757
    %v1785 = vunpack.c.l.b16 %v758
    %v1786 = vunpack.c.l.b16 %v759
    %v1787 = vunpack.c.h.b16 %v759
    %v1788 = vunpack.c.l.b16 %v760
    %v1789 = vunpack.c.h.b16 %v760
    %v1790 = vunpack.c.l.b16 %v761
    %v1791 = vunpack.c.l.b16 %v762
    %v1792 = vunpack.c.h.b16 %v762
    %v1793 = vunpack.c.l.b16 %v763
    %v1794 = vunpack.c.h.b16 %v763
    %v1795 = vunpack.c.l.b16 %v764
    %v1796 = vunpack.c.l.b16 %v765
    %v1797 = vunpack.c.h.b16 %v765
    %v1798 = vunpack.c.l.b16 %v766
    %v1799 = vunpack.c.h.b16 %v766
    %v1800 = vunpack.c.l.b16 %v767
    %v1801 = vunpack.c.l.b16 %v768
    %v1802 = vunpack.c.h.b16 %v768
    %v1803 = vunpack.c.l.b16 %v769
    %v1804 = vunpack.c.h.b16 %v769
    %v1805 = vunpack.c.l.b16 %v770
    %v1806 = vunpack.c.l.b16 %v771
    %v1807 = vunpack.c.h.b16 %v771
    %v1808 = vunpack.c.l.b16 %v772
    %v1809 = vunpack.c.h.b16 %v772
    %v1810 = vunpack.c.l.b16 %v773
    %v1811 = vunpack.c.l.b16 %v774
    %v1812 = vunpack.c.h.b16 %v774
    %v1813 = vunpack.c.l.b16 %v775
    %v1814 = vunpack.c.h.b16 %v775
    %v1815 = vunpack.c.l.b16 %v776
    %v1816 = vunpack.c.l.b16 %v777
    %v1817 = vunpack.c.h.b16 %v777
    %v1818 = vunpack.c.l.b16 %v778
    %v1819 = vunpack.c.h.b16 %v778
    %v1820 = vunpack.c.l.b16 %v779
    %v1821 = vunpack.c.l.b16 %v780
    %v1822 = vunpack.c.h.b16 %v780
    %v1823 = vunpack.c.l.b16 %v781
    %v1824 = vunpack.c.h.b16 %v781
    %v1825 = vunpack.c.l.b16 %v782
    %v1826 = vunpack.c.l.b16 %v783
    %v1827 = vunpack.c.h.b16 %v783
    %v1828 = vunpack.c.l.b16 %v784
    %v1829 = vunpack.c.h.b16 %v784
    %v1830 = vunpack.c.l.b16 %v785
    %v1831 = vunpack.c.l.b16 %v786
    %v1832 = vunpack.c.h.b16 %v786
    %v1833 = vunpack.c.l.b16 %v787
    %v1834 = vunpack.c.h.b16 %v787
    %v1835 = vunpack.c.l.b16 %v788
    %v1836 = vunpack.c.l.b16 %v789
    %v1837 = vunpack.c.h.b16 %v789
    %v1838 = vunpack.c.l.b16 %v790
    %v1839 = vunpack.c.h.b16 %v790
    %v1840 = vunpack.c.l.b16 %v791
    %v1841 = vunpack.c.l.b16 %v792
    %v1842 = vunpack.c.h.b16 %v792
    %v1843 = vunpack.c.l.b16 %v793
    %v1844 = vunpack.c.h.b16 %v793
    %v1845 = vunpack.c.l.b16 %v794
    %v1846 = vunpack.c.l.b16 %v795
    %v1847 = vunpack.c.h.b16 %v795
    %v1848 = vunpack.c.l.b16 %v796
    %v1849 = vunpack.c.h.b16 %v796
    %v1850 = vunpack.c.l.b16 %v797
    %v1851 = vunpack.c.l.b16 %v798
    %v1852 = vunpack.c.h.b16 %v798
    %v1853 = vunpack.c.l.b16 %v799
    %v1854 = vunpack.c.h.b16 %v799
    %v1855 = vunpack.c.l.b16 %v800
    %v1856 = vunpack.c.l.b16 %v801
    %v1857 = vunpack.c.h.b16 %v801
    %v1858 = vunpack.c.l.b16 %v802
    %v1859 = vunpack.c.h.b16 %v802
    %v1860 = vunpack.c.l.b16 %v803
    %v1861 = vunpack.c.l.b16 %v804
    %v1862 = vunpack.c.h.b16 %v804
    %v1863 = vunpack.c.l.b16 %v805
    %v1864 = vunpack.c.h.b16 %v805
    %v1865 = vunpack.c.l.b16 %v806
    %v1866 = vunpack.c.l.b16 %v807
    %v1867 = vunpack.c.h.b16 %v807
    %v1868 = vunpack.c.l.b16 %v808
    %v1869 = vunpack.c.h.b16 %v808
    %v1870 = vunpack.c.l.b16 %v809
    %v1871 = vunpack.c.l.b16 %v810
    %v1872 = vunpack.c.h.b16 %v810
    %v1873 = vunpack.c.l.b16 %v811
    %v1874 = vunpack.c.h.b16 %v811
    %v1875 = vunpack.c.l.b16 %v812
    %v1876 = vunpack.c.l.b16 %v813
    %v1877 = vunpack.c.h.b16 %v813
    %v1878 = vunpack.c.l.b16 %v814
    %v1879 = vunpack.c.h.b16 %v814
    %v1880 = vunpack.c.l.b16 %v815
    %v1881 = vunpack.c.l.b16 %v816
    %v1882 = vunpack.c.h.b16 %v816
    %v1883 = vunpack.c.l.b16 %v817
    %v1884 = vunpack.c.h.b16 %v817
    %v1885 = vunpack.c.l.b16 %v818
    %v1886 = vunpack.c.l.b16 %v819
    %v1887 = vunpack.c.h.b16 %v819
    %v1888 = vunpack.c.l.b16 %v820
    %v1889 = vunpack.c.h.b16 %v820
    %v1890 = vunpack.c.l.b16 %v821
    %v1891 = vunpack.c.l.b16 %v822
    %v1892 = vunpack.c.h.b16 %v822
    %v1893 = vunpack.c.l.b16 %v823
    %v1894 = vunpack.c.h.b16 %v823
    %v1895 = vunpack.c.l.b16 %v824
    %v1896 = vunpack.c.l.b16 %v825
    %v1897 = vunpack.c.h.b16 %v825
    %v1898 = vunpack.c.l.b16 %v826
    %v1899 = vunpack.c.h.b16 %v826
    %v1900 = vunpack.c.l.b16 %v827
    %v1901 = vunpack.c.l.b16 %v828
    %v1902 = vunpack.c.h.b16 %v828
    %v1903 = vunpack.c.l.b16 %v829
    %v1904 = vunpack.c.h.b16 %v829
    %v1905 = vunpack.c.l.b16 %v830
    %v1906 = vunpack.c.l.b16 %v831
    %v1907 = vunpack.c.h.b16 %v831
    %v1908 = vunpack.c.l.b16 %v832
    %v1909 = vunpack.c.h.b16 %v832
    %v1910 = vunpack.c.l.b16 %v833
    %v1911 = vunpack.c.l.b16 %v834
    %v1912 = vunpack.c.h.b16 %v834
    %v1913 = vunpack.c.l.b16 %v835
    %v1914 = vunpack.c.h.b16 %v835
    %v1915 = vunpack.c.l.b16 %v836
    %v1916 = vunpack.c.l.b16 %v837
    %v1917 = vunpack.c.h.b16 %v837
    %v1918 = vunpack.c.l.b16 %v838
    %v1919 = vunpack.c.h.b16 %v838
    %v1920 = vunpack.c.l.b16 %v839
    %v1921 = vunpack.c.l.b16 %v840
    %v1922 = vunpack.c.h.b16 %v840
    %v1923 = vunpack.c.l.b16 %v841
    %v1924 = vunpack.c.h.b16 %v841
    %v1925 = vunpack.c.l.b16 %v842
    %v1926 = vpack.c.b16 %v1271, %v1266
    %v1927 = vpack.c.b16 %v1272, %v1267
    %v1928 = vpack.c.b16 %v1273, %v1268
    %v1929 = vpack.c.b16 %v1274, %v1269
    %v1930 = vpack.c.b16 %v1275, %v1270
    %v1931 = vpack.c.b16 %v1281, %v1276
    %v1932 = vpack.c.b16 %v1282, %v1277
    %v1933 = vpack.c.b16 %v1283, %v1278
    %v1934 = vpack.c.b16 %v1284, %v1279
    %v1935 = vpack.c.b16 %v1285, %v1280
    %v1936 = vpack.c.b16 %v1291, %v1286
    %v1937 = vpack.c.b16 %v1292, %v1287
    %v1938 = vpack.c.b16 %v1293, %v1288
    %v1939 = vpack.c.b16 %v1294, %v1289
    %v1940 = vpack.c.b16 %v1295, %v1290
    %v1941 = vpack.c.b16 %v1301, %v1296
    %v1942 = vpack.c.b16 %v1302, %v1297
    %v1943 = vpack.c.b16 %v1303, %v1298
    %v1944 = vpack.c.b16 %v1304, %v1299
    %v1945 = vpack.c.b16 %v1305, %v1300
    %v1946 = vpack.c.b16 %v1311, %v1306
    %v1947 = vpack.c.b16 %v1312, %v1307
    %v1948 = vpack.c.b16 %v1313, %v1308
    %v1949 = vpack.c.b16 %v1314, %v1309
    %v1950 = vpack.c.b16 %v1315, %v1310
    %v1951 = vpack.c.b16 %v1321, %v1316
    %v1952 = vpack.c.b16 %v1322, %v1317
    %v1953 = vpack.c.b16 %v1323, %v1318
    %v1954 = vpack.c.b16 %v1324, %v1319
    %v1955 = vpack.c.b16 %v1325, %v1320
    %v1956 = vpack.c.b16 %v1331, %v1326
    %v1957 = vpack.c.b16 %v1332, %v1327
    %v1958 = vpack.c.b16 %v1333, %v1328
    %v1959 = vpack.c.b16 %v1334, %v1329
    %v1960 = vpack.c.b16 %v1335, %v1330
    %v1961 = vpack.c.b16 %v1341, %v1336
    %v1962 = vpack.c.b16 %v1342, %v1337
    %v1963 = vpack.c.b16 %v1343, %v1338
    %v1964 = vpack.c.b16 %v1344, %v1339
    %v1965 = vpack.c.b16 %v1345, %v1340
    %v1966 = vpack.c.b16 %v1351, %v1346
    %v1967 = vpack.c.b16 %v1352, %v1347
    %v1968 = vpack.c.b16 %v1353, %v1348
    %v1969 = vpack.c.b16 %v1354, %v1349
    %v1970 = vpack.c.b16 %v1355, %v1350
    %v1971 = vpack.c.b16 %v1361, %v1356
    %v1972 = vpack.c.b16 %v1362, %v1357
    %v1973 = vpack.c.b16 %v1363, %v1358
    %v1974 = vpack.c.b16 %v1364, %v1359
    %v1975 = vpack.c.b16 %v1365, %v1360
    %v1976 = vpack.c.b16 %v1371, %v1366
    %v1977 = vpack.c.b16 %v1372, %v1367
    %v1978 = vpack.c.b16 %v1373, %v1368
    %v1979 = vpack.c.b16 %v1374, %v1369
    %v1980 = vpack.c.b16 %v1375, %v1370
    %v1981 = vpack.c.b16 %v1381, %v1376
    %v1982 = vpack.c.b16 %v1382, %v1377
    %v1983 = vpack.c.b16 %v1383, %v1378
    %v1984 = vpack.c.b16 %v1384, %v1379
    %v1985 = vpack.c.b16 %v1385, %v1380
    %v1986 = vpack.c.b16 %v1391, %v1386
    %v1987 = vpack.c.b16 %v1392, %v1387
    %v1988 = vpack.c.b16 %v1393, %v1388
    %v1989 = vpack.c.b16 %v1394, %v1389
    %v1990 = vpack.c.b16 %v1395, %v1390
    %v1991 = vpack.c.b16 %v1401, %v1396
    %v1992 = vpack.c.b16 %v1402, %v1397
    %v1993 = vpack.c.b16 %v1403, %v1398
    %v1994 = vpack.c.b16 %v1404, %v1399
    %v1995 = vpack.c.b16 %v1405, %v1400
    %v1996 = vpack.c.b16 %v1411, %v1406
    %v1997 = vpack.c.b16 %v1412, %v1407
    %v1998 = vpack.c.b16 %v1413, %v1408
    %v1999 = vpack.c.b16 %v1414, %v1409
    %v2000 = vpack.c.b16 %v1415, %v1410
    %v2001 = vpack.c.b16 %v1421, %v1416
    %v2002 = vpack.c.b16 %v1422, %v1417
    %v2003 = vpack.c.b16 %v1423, %v1418
    %v2004 = vpack.c.b16 %v1424, %v1419
    %v2005 = vpack.c.b16 %v1425, %v1420
    %v2006 = vpack.c.b16 %v1431, %v1426
    %v2007 = vpack.c.b16 %v1432, %v1427
    %v2008 = vpack.c.b16 %v1433, %v1428
    %v2009 = vpack.c.b16 %v1434, %v1429
    %v2010 = vpack.c.b16 %v1435, %v1430
    %v2011 = vpack.c.b16 %v1441, %v1436
    %v2012 = vpack.c.b16 %v1442, %v1437
    %v2013 = vpack.c.b16 %v1443, %v1438
    %v2014 = vpack.c.b16 %v1444, %v1439
    %v2015 = vpack.c.b16 %v1445, %v1440
    %v2016 = vpack.c.b16 %v1451, %v1446
    %v2017 = vpack.c.b16 %v1452, %v1447
    %v2018 = vpack.c.b16 %v1453, %v1448
    %v2019 = vpack.c.b16 %v1454, %v1449
    %v2020 = vpack.c.b16 %v1455, %v1450
    %v2021 = vpack.c.b16 %v1461, %v1456
    %v2022 = vpack.c.b16 %v1462, %v1457
    %v2023 = vpack.c.b16 %v1463, %v1458
    %v2024 = vpack.c.b16 %v1464, %v1459
    %v2025 = vpack.c.b16 %v1465, %v1460
    %v2026 = vpack.c.b16 %v1471, %v1466
    %v2027 = vpack.c.b16 %v1472, %v1467
    %v2028 = vpack.c.b16 %v1473, %v1468
    %v2029 = vpack.c.b16 %v1474, %v1469
    %v2030 = vpack.c.b16 %v1475, %v1470
    %v2031 = vpack.c.b16 %v1481, %v1476
    %v2032 = vpack.c.b16 %v1482, %v1477
    %v2033 = vpack.c.b16 %v1483, %v1478
    %v2034 = vpack.c.b16 %v1484, %v1479
    %v2035 = vpack.c.b16 %v1485, %v1480
    %v2036 = vpack.c.b16 %v1491, %v1486
    %v2037 = vpack.c.b16 %v1492, %v1487
    %v2038 = vpack.c.b16 %v1493, %v1488
    %v2039 = vpack.c.b16 %v1494, %v1489
    %v2040 = vpack.c.b16 %v1495, %v1490
    %v2041 = vpack.c.b16 %v1501, %v1496
    %v2042 = vpack.c.b16 %v1502, %v1497
    %v2043 = vpack.c.b16 %v1503, %v1498
    %v2044 = vpack.c.b16 %v1504, %v1499
    %v2045 = vpack.c.b16 %v1505, %v1500
    %v2046 = vpack.c.b16 %v1511, %v1506
    %v2047 = vpack.c.b16 %v1512, %v1507
    %v2048 = vpack.c.b16 %v1513, %v1508
    %v2049 = vpack.c.b16 %v1514, %v1509
    %v2050 = vpack.c.b16 %v1515, %v1510
    %v2051 = vpack.c.b16 %v1521, %v1516
    %v2052 = vpack.c.b16 %v1522, %v1517
    %v2053 = vpack.c.b16 %v1523, %v1518
    %v2054 = vpack.c.b16 %v1524, %v1519
    %v2055 = vpack.c.b16 %v1525, %v1520
    %v2056 = vpack.c.b16 %v1531, %v1526
    %v2057 = vpack.c.b16 %v1532, %v1527
    %v2058 = vpack.c.b16 %v1533, %v1528
    %v2059 = vpack.c.b16 %v1534, %v1529
    %v2060 = vpack.c.b16 %v1535, %v1530
    %v2061 = vpack.c.b16 %v1541, %v1536
    %v2062 = vpack.c.b16 %v1542, %v1537
    %v2063 = vpack.c.b16 %v1543, %v1538
    %v2064 = vpack.c.b16 %v1544, %v1539
    %v2065 = vpack.c.b16 %v1545, %v1540
    %v2066 = vpack.c.b16 %v1551, %v1546
    %v2067 = vpack.c.b16 %v1552, %v1547
    %v2068 = vpack.c.b16 %v1553, %v1548
    %v2069 = vpack.c.b16 %v1554, %v1549
    %v2070 = vpack.c.b16 %v1555, %v1550
    %v2071 = vpack.c.b16 %v1561, %v1556
    %v2072 = vpack.c.b16 %v1562, %v1557
    %v2073 = vpack.c.b16 %v1563, %v1558
    %v2074 = vpack.c.b16 %v1564, %v1559
    %v2075 = vpack.c.b16 %v1565, %v1560
    %v2076 = vpack.c.b16 %v1571, %v1566
    %v2077 = vpack.c.b16 %v1572, %v1567
    %v2078 = vpack.c.b16 %v1573, %v1568
    %v2079 = vpack.c.b16 %v1574, %v1569
    %v2080 = vpack.c.b16 %v1575, %v1570
    %v2081 = vpack.c.b16 %v1581, %v1576
    %v2082 = vpack.c.b16 %v1582, %v1577
    %v2083 = vpack.c.b16 %v1583, %v1578
    %v2084 = vpack.c.b16 %v1584, %v1579
    %v2085 = vpack.c.b16 %v1585, %v1580
    %v2086 = vpack.c.b16 %v1591, %v1586
    %v2087 = vpack.c.b16 %v1592, %v1587
    %v2088 = vpack.c.b16 %v1593, %v1588
    %v2089 = vpack.c.b16 %v1594, %v1589
    %v2090 = vpack.c.b16 %v1595, %v1590
    %v2091 = vpack.c.b16 %v1601, %v1596
    %v2092 = vpack.c.b16 %v1602, %v1597
    %v2093 = vpack.c.b16 %v1603, %v1598
    %v2094 = vpack.c.b16 %v1604, %v1599
    %v2095 = vpack.c.b16 %v1605, %v1600
    %v2096 = vpack.c.b16 %v1611, %v1606
    %v2097 = vpack.c.b16 %v1612, %v1607
    %v2098 = vpack.c.b16 %v1613, %v1608
    %v2099 = vpack.c.b16 %v1614, %v1609
    %v2100 = vpack.c.b16 %v1615, %v1610
    %v2101 = vpack.c.b16 %v1621, %v1616
    %v2102 = vpack.c.b16 %v1622, %v1617
    %v2103 = vpack.c.b16 %v1623, %v1618
    %v2104 = vpack.c.b16 %v1624, %v1619
    %v2105 = vpack.c.b16 %v1625, %v1620
    %v2106 = vpack.c.b16 %v1631, %v1626
    %v2107 = vpack.c.b16 %v1632, %v1627
    %v2108 = vpack.c.b16 %v1633, %v1628
    %v2109 = vpack.c.b16 %v1634, %v1629
    %v2110 = vpack.c.b16 %v1635, %v1630
    %v2111 = vpack.c.b16 %v1641, %v1636
    %v2112 = vpack.c.b16 %v1642, %v1637
    %v2113 = vpack.c.b16 %v1643, %v1638
    %v2114 = vpack.c.b16 %v1644, %v1639
    %v2115 = vpack.c.b16 %v1645, %v1640
    %v2116 = vpack.c.b16 %v1651, %v1646
    %v2117 = vpack.c.b16 %v1652, %v1647
    %v2118 = vpack.c.b16 %v1653, %v1648
    %v2119 = vpack.c.b16 %v1654, %v1649
    %v2120 = vpack.c.b16 %v1655, %v1650
    %v2121 = vpack.c.b16 %v1661, %v1656
    %v2122 = vpack.c.b16 %v1662, %v1657
    %v2123 = vpack.c.b16 %v1663, %v1658
    %v2124 = vpack.c.b16 %v1664, %v1659
    %v2125 = vpack.c.b16 %v1665, %v1660
    %v2126 = vpack.c.b16 %v1671, %v1666
    %v2127 = vpack.c.b16 %v1672, %v1667
    %v2128 = vpack.c.b16 %v1673, %v1668
    %v2129 = vpack.c.b16 %v1674, %v1669
    %v2130 = vpack.c.b16 %v1675, %v1670
    %v2131 = vpack.c.b16 %v1681, %v1676
    %v2132 = vpack.c.b16 %v1682, %v1677
    %v2133 = vpack.c.b16 %v1683, %v1678
    %v2134 = vpack.c.b16 %v1684, %v1679
    %v2135 = vpack.c.b16 %v1685, %v1680
    %v2136 = vpack.c.b16 %v1691, %v1686
    %v2137 = vpack.c.b16 %v1692, %v1687
    %v2138 = vpack.c.b16 %v1693, %v1688
    %v2139 = vpack.c.b16 %v1694, %v1689
    %v2140 = vpack.c.b16 %v1695, %v1690
    %v2141 = vpack.c.b16 %v1701, %v1696
    %v2142 = vpack.c.b16 %v1702, %v1697
    %v2143 = vpack.c.b16 %v1703, %v1698
    %v2144 = vpack.c.b16 %v1704, %v1699
    %v2145 = vpack.c.b16 %v1705, %v1700
    %v2146 = vpack.c.b16 %v1711, %v1706
    %v2147 = vpack.c.b16 %v1712, %v1707
    %v2148 = vpack.c.b16 %v1713, %v1708
    %v2149 = vpack.c.b16 %v1714, %v1709
    %v2150 = vpack.c.b16 %v1715, %v1710
    %v2151 = vpack.c.b16 %v1721, %v1716
    %v2152 = vpack.c.b16 %v1722, %v1717
    %v2153 = vpack.c.b16 %v1723, %v1718
    %v2154 = vpack.c.b16 %v1724, %v1719
    %v2155 = vpack.c.b16 %v1725, %v1720
    %v2156 = vpack.c.b16 %v1731, %v1726
    %v2157 = vpack.c.b16 %v1732, %v1727
    %v2158 = vpack.c.b16 %v1733, %v1728
    %v2159 = vpack.c.b16 %v1734, %v1729
    %v2160 = vpack.c.b16 %v1735, %v1730
    %v2161 = vpack.c.b16 %v1741, %v1736
    %v2162 = vpack.c.b16 %v1742, %v1737
    %v2163 = vpack.c.b16 %v1743, %v1738
    %v2164 = vpack.c.b16 %v1744, %v1739
    %v2165 = vpack.c.b16 %v1745, %v1740
    %v2166 = vpack.c.b16 %v1751, %v1746
    %v2167 = vpack.c.b16 %v1752, %v1747
    %v2168 = vpack.c.b16 %v1753, %v1748
    %v2169 = vpack.c.b16 %v1754, %v1749
    %v2170 = vpack.c.b16 %v1755, %v1750
    %v2171 = vpack.c.b16 %v1761, %v1756
    %v2172 = vpack.c.b16 %v1762, %v1757
    %v2173 = vpack.c.b16 %v1763, %v1758
    %v2174 = vpack.c.b16 %v1764, %v1759
    %v2175 = vpack.c.b16 %v1765, %v1760
    %v2176 = vpack.c.b16 %v1771, %v1766
    %v2177 = vpack.c.b16 %v1772, %v1767
    %v2178 = vpack.c.b16 %v1773, %v1768
    %v2179 = vpack.c.b16 %v1774, %v1769
    %v2180 = vpack.c.b16 %v1775, %v1770
    %v2181 = vpack.c.b16 %v1781, %v1776
    %v2182 = vpack.c.b16 %v1782, %v1777
    %v2183 = vpack.c.b16 %v1783, %v1778
    %v2184 = vpack.c.b16 %v1784, %v1779
    %v2185 = vpack.c.b16 %v1785, %v1780
    %v2186 = vpack.c.b16 %v1791, %v1786
    %v2187 = vpack.c.b16 %v1792, %v1787
    %v2188 = vpack.c.b16 %v1793, %v1788
    %v2189 = vpack.c.b16 %v1794, %v1789
    %v2190 = vpack.c.b16 %v1795, %v1790
    %v2191 = vpack.c.b16 %v1801, %v1796
    %v2192 = vpack.c.b16 %v1802, %v1797
    %v2193 = vpack.c.b16 %v1803, %v1798
    %v2194 = vpack.c.b16 %v1804, %v1799
    %v2195 = vpack.c.b16 %v1805, %v1800
    %v2196 = vpack.c.b16 %v1811, %v1806
    %v2197 = vpack.c.b16 %v1812, %v1807
    %v2198 = vpack.c.b16 %v1813, %v1808
    %v2199 = vpack.c.b16 %v1814, %v1809
    %v2200 = vpack.c.b16 %v1815, %v1810
    %v2201 = vpack.c.b16 %v1821, %v1816
    %v2202 = vpack.c.b16 %v1822, %v1817
    %v2203 = vpack.c.b16 %v1823, %v1818
    %v2204 = vpack.c.b16 %v1824, %v1819
    %v2205 = vpack.c.b16 %v1825, %v1820
    %v2206 = vpack.c.b16 %v1831, %v1826
    %v2207 = vpack.c.b16 %v1832, %v1827
    %v2208 = vpack.c.b16 %v1833, %v1828
    %v2209 = vpack.c.b16 %v1834, %v1829
    %v2210 = vpack.c.b16 %v1835, %v1830
    %v2211 = vpack.c.b16 %v1841, %v1836
    %v2212 = vpack.c.b16 %v1842, %v1837
    %v2213 = vpack.c.b16 %v1843, %v1838
    %v2214 = vpack.c.b16 %v1844, %v1839
    %v2215 = vpack.c.b16 %v1845, %v1840
    %v2216 = vpack.c.b16 %v1851, %v1846
    %v2217 = vpack.c.b16 %v1852, %v1847
    %v2218 = vpack.c.b16 %v1853, %v1848
    %v2219 = vpack.c.b16 %v1854, %v1849
    %v2220 = vpack.c.b16 %v1855, %v1850
    %v2221 = vpack.c.b16 %v1861, %v1856
    %v2222 = vpack.c.b16 %v1862, %v1857
    %v2223 = vpack.c.b16 %v1863, %v1858
    %v2224 = vpack.c.b16 %v1864, %v1859
    %v2225 = vpack.c.b16 %v1865, %v1860
    %v2226 = vpack.c.b16 %v1871, %v1866
    %v2227 = vpack.c.b16 %v1872, %v1867
    %v2228 = vpack.c.b16 %v1873, %v1868
    %v2229 = vpack.c.b16 %v1874, %v1869
    %v2230 = vpack.c.b16 %v1875, %v1870
    %v2231 = vpack.c.b16 %v1881, %v1876
    %v2232 = vpack.c.b16 %v1882, %v1877
    %v2233 = vpack.c.b16 %v1883, %v1878
    %v2234 = vpack.c.b16 %v1884, %v1879
    %v2235 = vpack.c.b16 %v1885, %v1880
    %v2236 = vpack.c.b16 %v1891, %v1886
    %v2237 = vpack.c.b16 %v1892, %v1887
    %v2238 = vpack.c.b16 %v1893, %v1888
    %v2239 = vpack.c.b16 %v1894, %v1889
    %v2240 = vpack.c.b16 %v1895, %v1890
    %v2241 = vpack.c.b16 %v1901, %v1896
    %v2242 = vpack.c.b16 %v1902, %v1897
    %v2243 = vpack.c.b16 %v1903, %v1898
    %v2244 = vpack.c.b16 %v1904, %v1899
    %v2245 = vpack.c.b16 %v1905, %v1900
    %v2246 = vpack.c.b16 %v1911, %v1906
    %v2247 = vpack.c.b16 %v1912, %v1907
    %v2248 = vpack.c.b16 %v1913, %v1908
    %v2249 = vpack.c.b16 %v1914, %v1909
    %v2250 = vpack.c.b16 %v1915, %v1910
    %v2251 = vpack.c.b16 %v1921, %v1916
    %v2252 = vpack.c.b16 %v1922, %v1917
    %v2253 = vpack.c.b16 %v1923, %v1918
    %v2254 = vpack.c.b16 %v1924, %v1919
    %v2255 = vpack.c.b16 %v1925, %v1920
    %vm2586 = vcmask 261120
    %v2588 = vsel %vm2586, %v422, 0
    %v2590 = vsel %vm2586, %v424, 0
    %2592 = vmatprep.subr.bf16.mxu0 %v1962
    %2593 = vmatpush1.bf16.msra.mxu0 %v1961
    %2594 = vmatprep.subr.bf16.mxu0 %v1957
    %2595 = vmatpush1.bf16.msra.mxu0 %v1956
    %2596 = vmatprep.subr.bf16.mxu0 %v1952
    %2597 = vmatpush1.bf16.msra.mxu0 %v1951
    %2598 = vmatprep.subr.bf16.mxu0 %v1947
    %2599 = vmatpush1.bf16.msra.mxu0 %v1946
    %2600 = vmatprep.subr.bf16.mxu0 %v1942
    %2601 = vmatpush1.bf16.msra.mxu0 %v1941
    %2602 = vmatprep.subr.bf16.mxu0 %v1937
    %2603 = vmatpush1.bf16.msra.mxu0 %v1936
    %2604 = vmatprep.subr.bf16.mxu0 %v1932
    %2605 = vmatpush1.bf16.msra.mxu0 %v1931
    %2606 = vmatprep.subr.bf16.mxu0 %v1927
    %2607 = vmatpush1.bf16.msra.mxu0 %v1926
    %2608 = vmatprep.subr.bf16.mxu0 %v2002
    %2609 = vmatpush2.bf16.msra.mxu0 %v2001
    %2610 = vmatprep.subr.bf16.mxu0 %v1997
    %2611 = vmatpush2.bf16.msra.mxu0 %v1996
    %2612 = vmatprep.subr.bf16.mxu0 %v1992
    %2613 = vmatpush2.bf16.msra.mxu0 %v1991
    %2614 = vmatprep.subr.bf16.mxu0 %v1987
    %2615 = vmatpush2.bf16.msra.mxu0 %v1986
    %2616 = vmatprep.subr.bf16.mxu0 %v1982
    %2617 = vmatpush2.bf16.msra.mxu0 %v1981
    %2618 = vmatprep.subr.bf16.mxu0 %v1977
    %2619 = vmatpush2.bf16.msra.mxu0 %v1976
    %2620 = vmatprep.subr.bf16.mxu0 %v1972
    %2621 = vmatpush2.bf16.msra.mxu0 %v1971
    %2622 = vmatprep.subr.bf16.mxu0 %v1967
    %2623 = vmatpush2.bf16.msra.mxu0 %v1966
    %2624 = vmatprep.mubr.bf16.mxu0 %v378
    %2625 = vmatmul.mubr.bf16.gmra.mxu0 %v375
    %v2626 = vpop.f32.mrf.mxu0
    %v2627 = vadd.f32 %v848, %v2626
    %v2628 = vpop.f32.mrf.mxu0
    %v2629 = vadd.f32 %v852, %v2628
    %v2630 = vpop.f32.mrf.mxu0
    %v2631 = vadd.f32 %v848, %v2630
    %v2632 = vpop.f32.mrf.mxu0
    %v2633 = vadd.f32 %v852, %v2632
    %2634 = vmatprep.mubr.bf16.mxu0 %v368
    %2635 = vmatmul.mubr.bf16.gmra.mxu0 %v367
    %v2636 = vpop.f32.mrf.mxu0
    %v2637 = vadd.f32 %v848, %v2636
    %v2638 = vpop.f32.mrf.mxu0
    %v2639 = vadd.f32 %v852, %v2638
    %v2640 = vpop.f32.mrf.mxu0
    %v2641 = vpop.f32.mrf.mxu0
    %2642 = vdwg.mxu0
    %2643 = vmatprep.subr.bf16.mxu0 %v2042
    %2644 = vmatpush1.bf16.msra.mxu0 %v2041
    %2645 = vmatprep.subr.bf16.mxu0 %v2037
    %2646 = vmatpush1.bf16.msra.mxu0 %v2036
    %2647 = vmatprep.subr.bf16.mxu0 %v2032
    %2648 = vmatpush1.bf16.msra.mxu0 %v2031
    %2649 = vmatprep.subr.bf16.mxu0 %v2027
    %2650 = vmatpush1.bf16.msra.mxu0 %v2026
    %2651 = vmatprep.subr.bf16.mxu0 %v2022
    %2652 = vmatpush1.bf16.msra.mxu0 %v2021
    %2653 = vmatprep.subr.bf16.mxu0 %v2017
    %2654 = vmatpush1.bf16.msra.mxu0 %v2016
    %2655 = vmatprep.subr.bf16.mxu0 %v2012
    %2656 = vmatpush1.bf16.msra.mxu0 %v2011
    %2657 = vmatprep.subr.bf16.mxu0 %v2007
    %2658 = vmatpush1.bf16.msra.mxu0 %v2006
    %2659 = vmatprep.subr.bf16.mxu0 %v2082
    %2660 = vmatpush2.bf16.msra.mxu0 %v2081
    %2661 = vmatprep.subr.bf16.mxu0 %v2077
    %2662 = vmatpush2.bf16.msra.mxu0 %v2076
    %2663 = vmatprep.subr.bf16.mxu0 %v2072
    %2664 = vmatpush2.bf16.msra.mxu0 %v2071
    %2665 = vmatprep.subr.bf16.mxu0 %v2067
    %2666 = vmatpush2.bf16.msra.mxu0 %v2066
    %2667 = vmatprep.subr.bf16.mxu0 %v2062
    %2668 = vmatpush2.bf16.msra.mxu0 %v2061
    %2669 = vmatprep.subr.bf16.mxu0 %v2057
    %2670 = vmatpush2.bf16.msra.mxu0 %v2056
    %2671 = vmatprep.subr.bf16.mxu0 %v2052
    %2672 = vmatpush2.bf16.msra.mxu0 %v2051
    %2673 = vmatprep.subr.bf16.mxu0 %v2047
    %2674 = vmatpush2.bf16.msra.mxu0 %v2046
    %2675 = vmatprep.mubr.bf16.mxu0 %v408
    %2676 = vmatmul.mubr.bf16.gmra.mxu0 %v433
    %v2677 = vpop.f32.mrf.mxu0
    %v2678 = vadd.f32 %v2627, %v2677
    %v2679 = vpop.f32.mrf.mxu0
    %v2680 = vadd.f32 %v2629, %v2679
    %v2681 = vpop.f32.mrf.mxu0
    %v2682 = vadd.f32 %v2631, %v2681
    %v2683 = vpop.f32.mrf.mxu0
    %v2684 = vadd.f32 %v2633, %v2683
    %2685 = vmatprep.mubr.bf16.mxu0 %v410
    %2686 = vmatmul.mubr.bf16.gmra.mxu0 %v436
    %v2687 = vpop.f32.mrf.mxu0
    %v2688 = vadd.f32 %v2637, %v2687
    %v2689 = vpop.f32.mrf.mxu0
    %v2690 = vadd.f32 %v2639, %v2689
    %v2691 = vpop.f32.mrf.mxu0
    %v2692 = vpop.f32.mrf.mxu0
    %2693 = vdwg.mxu0
    %2694 = vmatprep.subr.bf16.mxu0 %v2122
    %2695 = vmatpush1.bf16.msra.mxu0 %v2121
    %2696 = vmatprep.subr.bf16.mxu0 %v2117
    %2697 = vmatpush1.bf16.msra.mxu0 %v2116
    %2698 = vmatprep.subr.bf16.mxu0 %v2112
    %2699 = vmatpush1.bf16.msra.mxu0 %v2111
    %2700 = vmatprep.subr.bf16.mxu0 %v2107
    %2701 = vmatpush1.bf16.msra.mxu0 %v2106
    %2702 = vmatprep.subr.bf16.mxu0 %v2102
    %2703 = vmatpush1.bf16.msra.mxu0 %v2101
    %2704 = vmatprep.subr.bf16.mxu0 %v2097
    %2705 = vmatpush1.bf16.msra.mxu0 %v2096
    %2706 = vmatprep.subr.bf16.mxu0 %v2092
    %2707 = vmatpush1.bf16.msra.mxu0 %v2091
    %2708 = vmatprep.subr.bf16.mxu0 %v2087
    %2709 = vmatpush1.bf16.msra.mxu0 %v2086
    %2710 = vmatprep.subr.bf16.mxu0 %v2162
    %2711 = vmatpush2.bf16.msra.mxu0 %v2161
    %2712 = vmatprep.subr.bf16.mxu0 %v2157
    %2713 = vmatpush2.bf16.msra.mxu0 %v2156
    %2714 = vmatprep.subr.bf16.mxu0 %v2152
    %2715 = vmatpush2.bf16.msra.mxu0 %v2151
    %2716 = vmatprep.subr.bf16.mxu0 %v2147
    %2717 = vmatpush2.bf16.msra.mxu0 %v2146
    %2718 = vmatprep.subr.bf16.mxu0 %v2142
    %2719 = vmatpush2.bf16.msra.mxu0 %v2141
    %2720 = vmatprep.subr.bf16.mxu0 %v2137
    %2721 = vmatpush2.bf16.msra.mxu0 %v2136
    %2722 = vmatprep.subr.bf16.mxu0 %v2132
    %2723 = vmatpush2.bf16.msra.mxu0 %v2131
    %2724 = vmatprep.subr.bf16.mxu0 %v2127
    %2725 = vmatpush2.bf16.msra.mxu0 %v2126
    %2726 = vmatprep.mubr.bf16.mxu0 %v441
    %2727 = vmatmul.mubr.bf16.gmra.mxu0 %v409
    %v2728 = vpop.f32.mrf.mxu0
    %v2729 = vadd.f32 %v2678, %v2728
    %v2730 = vpop.f32.mrf.mxu0
    %v2731 = vadd.f32 %v2680, %v2730
    %v2732 = vpop.f32.mrf.mxu0
    %v2733 = vadd.f32 %v2682, %v2732
    %v2734 = vpop.f32.mrf.mxu0
    %v2735 = vadd.f32 %v2684, %v2734
    %2736 = vmatprep.mubr.bf16.mxu0 %v445
    %2737 = vmatmul.mubr.bf16.gmra.mxu0 %v411
    %v2738 = vpop.f32.mrf.mxu0
    %v2739 = vadd.f32 %v2688, %v2738
    %v2740 = vpop.f32.mrf.mxu0
    %v2741 = vadd.f32 %v2690, %v2740
    %v2742 = vpop.f32.mrf.mxu0
    %v2743 = vpop.f32.mrf.mxu0
    %2744 = vdwg.mxu0
    %2745 = vmatprep.subr.bf16.mxu0 %v2202
    %2746 = vmatpush1.bf16.msra.mxu0 %v2201
    %2747 = vmatprep.subr.bf16.mxu0 %v2197
    %2748 = vmatpush1.bf16.msra.mxu0 %v2196
    %2749 = vmatprep.subr.bf16.mxu0 %v2192
    %2750 = vmatpush1.bf16.msra.mxu0 %v2191
    %2751 = vmatprep.subr.bf16.mxu0 %v2187
    %2752 = vmatpush1.bf16.msra.mxu0 %v2186
    %2753 = vmatprep.subr.bf16.mxu0 %v2182
    %2754 = vmatpush1.bf16.msra.mxu0 %v2181
    %2755 = vmatprep.subr.bf16.mxu0 %v2177
    %2756 = vmatpush1.bf16.msra.mxu0 %v2176
    %2757 = vmatprep.subr.bf16.mxu0 %v2172
    %2758 = vmatpush1.bf16.msra.mxu0 %v2171
    %2759 = vmatprep.subr.bf16.mxu0 %v2167
    %2760 = vmatpush1.bf16.msra.mxu0 %v2166
    %2761 = vmatprep.subr.bf16.mxu0 %v2242
    %2762 = vmatpush2.bf16.msra.mxu0 %v2241
    %2763 = vmatprep.subr.bf16.mxu0 %v2237
    %2764 = vmatpush2.bf16.msra.mxu0 %v2236
    %2765 = vmatprep.subr.bf16.mxu0 %v2232
    %2766 = vmatpush2.bf16.msra.mxu0 %v2231
    %2767 = vmatprep.subr.bf16.mxu0 %v2227
    %2768 = vmatpush2.bf16.msra.mxu0 %v2226
    %2769 = vmatprep.subr.bf16.mxu0 %v2222
    %2770 = vmatpush2.bf16.msra.mxu0 %v2221
    %2771 = vmatprep.subr.bf16.mxu0 %v2217
    %2772 = vmatpush2.bf16.msra.mxu0 %v2216
    %2773 = vmatprep.subr.bf16.mxu0 %v2212
    %2774 = vmatpush2.bf16.msra.mxu0 %v2211
    %2775 = vmatprep.subr.bf16.mxu0 %v2207
    %2776 = vmatpush2.bf16.msra.mxu0 %v2206
    %2777 = vmatprep.mubr.bf16.mxu0 %v427
    %2778 = vmatmul.mubr.bf16.gmra.mxu0 %v426
    %v2779 = vpop.f32.mrf.mxu0
    %v2780 = vadd.f32 %v2729, %v2779
    %v2781 = vpop.f32.mrf.mxu0
    %v2782 = vadd.f32 %v2731, %v2781
    %v2783 = vpop.f32.mrf.mxu0
    %v2784 = vadd.f32 %v2733, %v2783
    %v2785 = vpop.f32.mrf.mxu0
    %v2786 = vadd.f32 %v2735, %v2785
    %2787 = vmatprep.mubr.bf16.mxu0 %v424
    %2788 = vmatmul.mubr.bf16.gmra.mxu0 %v424
    %v2789 = vpop.f32.mrf.mxu0
    %v2790 = vadd.f32 %v2739, %v2789
    %v2791 = vpop.f32.mrf.mxu0
    %v2792 = vadd.f32 %v2741, %v2791
    %v2793 = vpop.f32.mrf.mxu0
    %v2794 = vpop.f32.mrf.mxu0
    %2795 = vdwg.mxu0
    %2796 = vmatprep.subr.bf16.mxu0 0
    %2797 = vmatpush1.bf16.msra.mxu0 0
    %2798 = vmatprep.subr.bf16.mxu0 0
    %2799 = vmatpush1.bf16.msra.mxu0 0
    %2800 = vmatprep.subr.bf16.mxu0 0
    %2801 = vmatpush1.bf16.msra.mxu0 0
    %2802 = vmatprep.subr.bf16.mxu0 0
    %2803 = vmatpush1.bf16.msra.mxu0 0
    %2804 = vmatprep.subr.bf16.mxu0 0
    %2805 = vmatpush1.bf16.msra.mxu0 0
    %2806 = vmatprep.subr.bf16.mxu0 0
    %2807 = vmatpush1.bf16.msra.mxu0 0
    %2808 = vmatprep.subr.bf16.mxu0 %v2252
    %2809 = vmatpush1.bf16.msra.mxu0 %v2251
    %2810 = vmatprep.subr.bf16.mxu0 %v2247
    %2811 = vmatpush1.bf16.msra.mxu0 %v2246
    %2812 = vmatprep.subr.bf16.mxu0 0
    %2813 = vmatpush2.bf16.msra.mxu0 0
    %2814 = vmatprep.subr.bf16.mxu0 0
    %2815 = vmatpush2.bf16.msra.mxu0 0
    %2816 = vmatprep.subr.bf16.mxu0 0
    %2817 = vmatpush2.bf16.msra.mxu0 0
    %2818 = vmatprep.subr.bf16.mxu0 0
    %2819 = vmatpush2.bf16.msra.mxu0 0
    %2820 = vmatprep.subr.bf16.mxu0 0
    %2821 = vmatpush2.bf16.msra.mxu0 0
    %2822 = vmatprep.subr.bf16.mxu0 0
    %2823 = vmatpush2.bf16.msra.mxu0 0
    %2824 = vmatprep.subr.bf16.mxu0 0
    %2825 = vmatpush2.bf16.msra.mxu0 0
    %2826 = vmatprep.subr.bf16.mxu0 0
    %2827 = vmatpush2.bf16.msra.mxu0 0
    %2828 = vmatprep.mubr.bf16.mxu0 0
    %2829 = vmatmul.mubr.bf16.gmra.mxu0 %v2588
    %v2830 = vpop.f32.mrf.mxu0
    %v2831 = vadd.f32 %v2780, %v2830
    %v2832 = vpop.f32.mrf.mxu0
    %v2833 = vadd.f32 %v2782, %v2832
    %v2834 = vpop.f32.mrf.mxu0
    %v2835 = vadd.f32 %v2784, %v2834
    %v2836 = vpop.f32.mrf.mxu0
    %v2837 = vadd.f32 %v2786, %v2836
    %2838 = vmatprep.mubr.bf16.mxu0 0
    %2839 = vmatmul.mubr.bf16.gmra.mxu0 %v2590
    %v2840 = vpop.f32.mrf.mxu0
    %v2841 = vadd.f32 %v2790, %v2840
    %v2842 = vpop.f32.mrf.mxu0
    %v2843 = vadd.f32 %v2792, %v2842
    %v2844 = vpop.f32.mrf.mxu0
    %v2845 = vpop.f32.mrf.mxu0
    %2846 = vdwg.mxu0
    %2847 = vmatprep.subr.bf16.mxu0 %v1964
    %2848 = vmatpush1.bf16.msra.mxu0 %v1963
    %2849 = vmatprep.subr.bf16.mxu0 %v1959
    %2850 = vmatpush1.bf16.msra.mxu0 %v1958
    %2851 = vmatprep.subr.bf16.mxu0 %v1954
    %2852 = vmatpush1.bf16.msra.mxu0 %v1953
    %2853 = vmatprep.subr.bf16.mxu0 %v1949
    %2854 = vmatpush1.bf16.msra.mxu0 %v1948
    %2855 = vmatprep.subr.bf16.mxu0 %v1944
    %2856 = vmatpush1.bf16.msra.mxu0 %v1943
    %2857 = vmatprep.subr.bf16.mxu0 %v1939
    %2858 = vmatpush1.bf16.msra.mxu0 %v1938
    %2859 = vmatprep.subr.bf16.mxu0 %v1934
    %2860 = vmatpush1.bf16.msra.mxu0 %v1933
    %2861 = vmatprep.subr.bf16.mxu0 %v1929
    %2862 = vmatpush1.bf16.msra.mxu0 %v1928
    %2863 = vmatprep.subr.bf16.mxu0 %v2004
    %2864 = vmatpush2.bf16.msra.mxu0 %v2003
    %2865 = vmatprep.subr.bf16.mxu0 %v1999
    %2866 = vmatpush2.bf16.msra.mxu0 %v1998
    %2867 = vmatprep.subr.bf16.mxu0 %v1994
    %2868 = vmatpush2.bf16.msra.mxu0 %v1993
    %2869 = vmatprep.subr.bf16.mxu0 %v1989
    %2870 = vmatpush2.bf16.msra.mxu0 %v1988
    %2871 = vmatprep.subr.bf16.mxu0 %v1984
    %2872 = vmatpush2.bf16.msra.mxu0 %v1983
    %2873 = vmatprep.subr.bf16.mxu0 %v1979
    %2874 = vmatpush2.bf16.msra.mxu0 %v1978
    %2875 = vmatprep.subr.bf16.mxu0 %v1974
    %2876 = vmatpush2.bf16.msra.mxu0 %v1973
    %2877 = vmatprep.subr.bf16.mxu0 %v1969
    %2878 = vmatpush2.bf16.msra.mxu0 %v1968
    %2879 = vmatprep.mubr.bf16.mxu0 %v378
    %2880 = vmatmul.mubr.bf16.gmra.mxu0 %v375
    %v2881 = vpop.f32.mrf.mxu0
    %v2882 = vadd.f32 %v856, %v2881
    %v2883 = vpop.f32.mrf.mxu0
    %v2884 = vadd.f32 %v860, %v2883
    %v2885 = vpop.f32.mrf.mxu0
    %v2886 = vadd.f32 %v856, %v2885
    %v2887 = vpop.f32.mrf.mxu0
    %v2888 = vadd.f32 %v860, %v2887
    %2889 = vmatprep.mubr.bf16.mxu0 %v368
    %2890 = vmatmul.mubr.bf16.gmra.mxu0 %v367
    %v2891 = vpop.f32.mrf.mxu0
    %v2892 = vadd.f32 %v856, %v2891
    %v2893 = vpop.f32.mrf.mxu0
    %v2894 = vadd.f32 %v860, %v2893
    %v2895 = vpop.f32.mrf.mxu0
    %v2896 = vpop.f32.mrf.mxu0
    %2897 = vdwg.mxu0
    %2898 = vmatprep.subr.bf16.mxu0 %v2044
    %2899 = vmatpush1.bf16.msra.mxu0 %v2043
    %2900 = vmatprep.subr.bf16.mxu0 %v2039
    %2901 = vmatpush1.bf16.msra.mxu0 %v2038
    %2902 = vmatprep.subr.bf16.mxu0 %v2034
    %2903 = vmatpush1.bf16.msra.mxu0 %v2033
    %2904 = vmatprep.subr.bf16.mxu0 %v2029
    %2905 = vmatpush1.bf16.msra.mxu0 %v2028
    %2906 = vmatprep.subr.bf16.mxu0 %v2024
    %2907 = vmatpush1.bf16.msra.mxu0 %v2023
    %2908 = vmatprep.subr.bf16.mxu0 %v2019
    %2909 = vmatpush1.bf16.msra.mxu0 %v2018
    %2910 = vmatprep.subr.bf16.mxu0 %v2014
    %2911 = vmatpush1.bf16.msra.mxu0 %v2013
    %2912 = vmatprep.subr.bf16.mxu0 %v2009
    %2913 = vmatpush1.bf16.msra.mxu0 %v2008
    %2914 = vmatprep.subr.bf16.mxu0 %v2084
    %2915 = vmatpush2.bf16.msra.mxu0 %v2083
    %2916 = vmatprep.subr.bf16.mxu0 %v2079
    %2917 = vmatpush2.bf16.msra.mxu0 %v2078
    %2918 = vmatprep.subr.bf16.mxu0 %v2074
    %2919 = vmatpush2.bf16.msra.mxu0 %v2073
    %2920 = vmatprep.subr.bf16.mxu0 %v2069
    %2921 = vmatpush2.bf16.msra.mxu0 %v2068
    %2922 = vmatprep.subr.bf16.mxu0 %v2064
    %2923 = vmatpush2.bf16.msra.mxu0 %v2063
    %2924 = vmatprep.subr.bf16.mxu0 %v2059
    %2925 = vmatpush2.bf16.msra.mxu0 %v2058
    %2926 = vmatprep.subr.bf16.mxu0 %v2054
    %2927 = vmatpush2.bf16.msra.mxu0 %v2053
    %2928 = vmatprep.subr.bf16.mxu0 %v2049
    %2929 = vmatpush2.bf16.msra.mxu0 %v2048
    %2930 = vmatprep.mubr.bf16.mxu0 %v408
    %2931 = vmatmul.mubr.bf16.gmra.mxu0 %v433
    %v2932 = vpop.f32.mrf.mxu0
    %v2933 = vadd.f32 %v2882, %v2932
    %v2934 = vpop.f32.mrf.mxu0
    %v2935 = vadd.f32 %v2884, %v2934
    %v2936 = vpop.f32.mrf.mxu0
    %v2937 = vadd.f32 %v2886, %v2936
    %v2938 = vpop.f32.mrf.mxu0
    %v2939 = vadd.f32 %v2888, %v2938
    %2940 = vmatprep.mubr.bf16.mxu0 %v410
    %2941 = vmatmul.mubr.bf16.gmra.mxu0 %v436
    %v2942 = vpop.f32.mrf.mxu0
    %v2943 = vadd.f32 %v2892, %v2942
    %v2944 = vpop.f32.mrf.mxu0
    %v2945 = vadd.f32 %v2894, %v2944
    %v2946 = vpop.f32.mrf.mxu0
    %v2947 = vpop.f32.mrf.mxu0
    %2948 = vdwg.mxu0
    %2949 = vmatprep.subr.bf16.mxu0 %v2124
    %2950 = vmatpush1.bf16.msra.mxu0 %v2123
    %2951 = vmatprep.subr.bf16.mxu0 %v2119
    %2952 = vmatpush1.bf16.msra.mxu0 %v2118
    %2953 = vmatprep.subr.bf16.mxu0 %v2114
    %2954 = vmatpush1.bf16.msra.mxu0 %v2113
    %2955 = vmatprep.subr.bf16.mxu0 %v2109
    %2956 = vmatpush1.bf16.msra.mxu0 %v2108
    %2957 = vmatprep.subr.bf16.mxu0 %v2104
    %2958 = vmatpush1.bf16.msra.mxu0 %v2103
    %2959 = vmatprep.subr.bf16.mxu0 %v2099
    %2960 = vmatpush1.bf16.msra.mxu0 %v2098
    %2961 = vmatprep.subr.bf16.mxu0 %v2094
    %2962 = vmatpush1.bf16.msra.mxu0 %v2093
    %2963 = vmatprep.subr.bf16.mxu0 %v2089
    %2964 = vmatpush1.bf16.msra.mxu0 %v2088
    %2965 = vmatprep.subr.bf16.mxu0 %v2164
    %2966 = vmatpush2.bf16.msra.mxu0 %v2163
    %2967 = vmatprep.subr.bf16.mxu0 %v2159
    %2968 = vmatpush2.bf16.msra.mxu0 %v2158
    %2969 = vmatprep.subr.bf16.mxu0 %v2154
    %2970 = vmatpush2.bf16.msra.mxu0 %v2153
    %2971 = vmatprep.subr.bf16.mxu0 %v2149
    %2972 = vmatpush2.bf16.msra.mxu0 %v2148
    %2973 = vmatprep.subr.bf16.mxu0 %v2144
    %2974 = vmatpush2.bf16.msra.mxu0 %v2143
    %2975 = vmatprep.subr.bf16.mxu0 %v2139
    %2976 = vmatpush2.bf16.msra.mxu0 %v2138
    %2977 = vmatprep.subr.bf16.mxu0 %v2134
    %2978 = vmatpush2.bf16.msra.mxu0 %v2133
    %2979 = vmatprep.subr.bf16.mxu0 %v2129
    %2980 = vmatpush2.bf16.msra.mxu0 %v2128
    %2981 = vmatprep.mubr.bf16.mxu0 %v441
    %2982 = vmatmul.mubr.bf16.gmra.mxu0 %v409
    %v2983 = vpop.f32.mrf.mxu0
    %v2984 = vadd.f32 %v2933, %v2983
    %v2985 = vpop.f32.mrf.mxu0
    %v2986 = vadd.f32 %v2935, %v2985
    %v2987 = vpop.f32.mrf.mxu0
    %v2988 = vadd.f32 %v2937, %v2987
    %v2989 = vpop.f32.mrf.mxu0
    %v2990 = vadd.f32 %v2939, %v2989
    %2991 = vmatprep.mubr.bf16.mxu0 %v445
    %2992 = vmatmul.mubr.bf16.gmra.mxu0 %v411
    %v2993 = vpop.f32.mrf.mxu0
    %v2994 = vadd.f32 %v2943, %v2993
    %v2995 = vpop.f32.mrf.mxu0
    %v2996 = vadd.f32 %v2945, %v2995
    %v2997 = vpop.f32.mrf.mxu0
    %v2998 = vpop.f32.mrf.mxu0
    %2999 = vdwg.mxu0
    %3000 = vmatprep.subr.bf16.mxu0 %v2204
    %3001 = vmatpush1.bf16.msra.mxu0 %v2203
    %3002 = vmatprep.subr.bf16.mxu0 %v2199
    %3003 = vmatpush1.bf16.msra.mxu0 %v2198
    %3004 = vmatprep.subr.bf16.mxu0 %v2194
    %3005 = vmatpush1.bf16.msra.mxu0 %v2193
    %3006 = vmatprep.subr.bf16.mxu0 %v2189
    %3007 = vmatpush1.bf16.msra.mxu0 %v2188
    %3008 = vmatprep.subr.bf16.mxu0 %v2184
    %3009 = vmatpush1.bf16.msra.mxu0 %v2183
    %3010 = vmatprep.subr.bf16.mxu0 %v2179
    %3011 = vmatpush1.bf16.msra.mxu0 %v2178
    %3012 = vmatprep.subr.bf16.mxu0 %v2174
    %3013 = vmatpush1.bf16.msra.mxu0 %v2173
    %3014 = vmatprep.subr.bf16.mxu0 %v2169
    %3015 = vmatpush1.bf16.msra.mxu0 %v2168
    %3016 = vmatprep.subr.bf16.mxu0 %v2244
    %3017 = vmatpush2.bf16.msra.mxu0 %v2243
    %3018 = vmatprep.subr.bf16.mxu0 %v2239
    %3019 = vmatpush2.bf16.msra.mxu0 %v2238
    %3020 = vmatprep.subr.bf16.mxu0 %v2234
    %3021 = vmatpush2.bf16.msra.mxu0 %v2233
    %3022 = vmatprep.subr.bf16.mxu0 %v2229
    %3023 = vmatpush2.bf16.msra.mxu0 %v2228
    %3024 = vmatprep.subr.bf16.mxu0 %v2224
    %3025 = vmatpush2.bf16.msra.mxu0 %v2223
    %3026 = vmatprep.subr.bf16.mxu0 %v2219
    %3027 = vmatpush2.bf16.msra.mxu0 %v2218
    %3028 = vmatprep.subr.bf16.mxu0 %v2214
    %3029 = vmatpush2.bf16.msra.mxu0 %v2213
    %3030 = vmatprep.subr.bf16.mxu0 %v2209
    %3031 = vmatpush2.bf16.msra.mxu0 %v2208
    %3032 = vmatprep.mubr.bf16.mxu0 %v427
    %3033 = vmatmul.mubr.bf16.gmra.mxu0 %v426
    %v3034 = vpop.f32.mrf.mxu0
    %v3035 = vadd.f32 %v2984, %v3034
    %v3036 = vpop.f32.mrf.mxu0
    %v3037 = vadd.f32 %v2986, %v3036
    %v3038 = vpop.f32.mrf.mxu0
    %v3039 = vadd.f32 %v2988, %v3038
    %v3040 = vpop.f32.mrf.mxu0
    %v3041 = vadd.f32 %v2990, %v3040
    %3042 = vmatprep.mubr.bf16.mxu0 %v424
    %3043 = vmatmul.mubr.bf16.gmra.mxu0 %v424
    %v3044 = vpop.f32.mrf.mxu0
    %v3045 = vadd.f32 %v2994, %v3044
    %v3046 = vpop.f32.mrf.mxu0
    %v3047 = vadd.f32 %v2996, %v3046
    %v3048 = vpop.f32.mrf.mxu0
    %v3049 = vpop.f32.mrf.mxu0
    %3050 = vdwg.mxu0
    %3051 = vmatprep.subr.bf16.mxu0 0
    %3052 = vmatpush1.bf16.msra.mxu0 0
    %3053 = vmatprep.subr.bf16.mxu0 0
    %3054 = vmatpush1.bf16.msra.mxu0 0
    %3055 = vmatprep.subr.bf16.mxu0 0
    %3056 = vmatpush1.bf16.msra.mxu0 0
    %3057 = vmatprep.subr.bf16.mxu0 0
    %3058 = vmatpush1.bf16.msra.mxu0 0
    %3059 = vmatprep.subr.bf16.mxu0 0
    %3060 = vmatpush1.bf16.msra.mxu0 0
    %3061 = vmatprep.subr.bf16.mxu0 0
    %3062 = vmatpush1.bf16.msra.mxu0 0
    %3063 = vmatprep.subr.bf16.mxu0 %v2254
    %3064 = vmatpush1.bf16.msra.mxu0 %v2253
    %3065 = vmatprep.subr.bf16.mxu0 %v2249
    %3066 = vmatpush1.bf16.msra.mxu0 %v2248
    %3067 = vmatprep.subr.bf16.mxu0 0
    %3068 = vmatpush2.bf16.msra.mxu0 0
    %3069 = vmatprep.subr.bf16.mxu0 0
    %3070 = vmatpush2.bf16.msra.mxu0 0
    %3071 = vmatprep.subr.bf16.mxu0 0
    %3072 = vmatpush2.bf16.msra.mxu0 0
    %3073 = vmatprep.subr.bf16.mxu0 0
    %3074 = vmatpush2.bf16.msra.mxu0 0
    %3075 = vmatprep.subr.bf16.mxu0 0
    %3076 = vmatpush2.bf16.msra.mxu0 0
    %3077 = vmatprep.subr.bf16.mxu0 0
    %3078 = vmatpush2.bf16.msra.mxu0 0
    %3079 = vmatprep.subr.bf16.mxu0 0
    %3080 = vmatpush2.bf16.msra.mxu0 0
    %3081 = vmatprep.subr.bf16.mxu0 0
    %3082 = vmatpush2.bf16.msra.mxu0 0
    %3083 = vmatprep.mubr.bf16.mxu0 0
    %3084 = vmatmul.mubr.bf16.gmra.mxu0 %v2588
    %v3085 = vpop.f32.mrf.mxu0
    %v3086 = vadd.f32 %v3035, %v3085
    %v3087 = vpop.f32.mrf.mxu0
    %v3088 = vadd.f32 %v3037, %v3087
    %v3089 = vpop.f32.mrf.mxu0
    %v3090 = vadd.f32 %v3039, %v3089
    %v3091 = vpop.f32.mrf.mxu0
    %v3092 = vadd.f32 %v3041, %v3091
    %3093 = vmatprep.mubr.bf16.mxu0 0
    %3094 = vmatmul.mubr.bf16.gmra.mxu0 %v2590
    %v3095 = vpop.f32.mrf.mxu0
    %v3096 = vadd.f32 %v3045, %v3095
    %v3097 = vpop.f32.mrf.mxu0
    %v3098 = vadd.f32 %v3047, %v3097
    %v3099 = vpop.f32.mrf.mxu0
    %v3100 = vpop.f32.mrf.mxu0
    %3101 = vdwg.mxu0
    %3102 = vmatprep.subr.bf16.mxu0 0
    %3103 = vmatpush1.bf16.msra.mxu0 %v1965
    %3104 = vmatprep.subr.bf16.mxu0 0
    %3105 = vmatpush1.bf16.msra.mxu0 %v1960
    %3106 = vmatprep.subr.bf16.mxu0 0
    %3107 = vmatpush1.bf16.msra.mxu0 %v1955
    %3108 = vmatprep.subr.bf16.mxu0 0
    %3109 = vmatpush1.bf16.msra.mxu0 %v1950
    %3110 = vmatprep.subr.bf16.mxu0 0
    %3111 = vmatpush1.bf16.msra.mxu0 %v1945
    %3112 = vmatprep.subr.bf16.mxu0 0
    %3113 = vmatpush1.bf16.msra.mxu0 %v1940
    %3114 = vmatprep.subr.bf16.mxu0 0
    %3115 = vmatpush1.bf16.msra.mxu0 %v1935
    %3116 = vmatprep.subr.bf16.mxu0 0
    %3117 = vmatpush1.bf16.msra.mxu0 %v1930
    %3118 = vmatprep.subr.bf16.mxu0 0
    %3119 = vmatpush2.bf16.msra.mxu0 %v2005
    %3120 = vmatprep.subr.bf16.mxu0 0
    %3121 = vmatpush2.bf16.msra.mxu0 %v2000
    %3122 = vmatprep.subr.bf16.mxu0 0
    %3123 = vmatpush2.bf16.msra.mxu0 %v1995
    %3124 = vmatprep.subr.bf16.mxu0 0
    %3125 = vmatpush2.bf16.msra.mxu0 %v1990
    %3126 = vmatprep.subr.bf16.mxu0 0
    %3127 = vmatpush2.bf16.msra.mxu0 %v1985
    %3128 = vmatprep.subr.bf16.mxu0 0
    %3129 = vmatpush2.bf16.msra.mxu0 %v1980
    %3130 = vmatprep.subr.bf16.mxu0 0
    %3131 = vmatpush2.bf16.msra.mxu0 %v1975
    %3132 = vmatprep.subr.bf16.mxu0 0
    %3133 = vmatpush2.bf16.msra.mxu0 %v1970
    %3134 = vmatprep.mubr.bf16.mxu0 %v378
    %3135 = vmatmul.mubr.bf16.gmra.mxu0 %v375
    %v3136 = vpop.f32.mrf.mxu0
    %v3137 = vadd.f32 %v864, %v3136
    %v3138 = vpop.f32.mrf.mxu0
    %v3139 = vpop.f32.mrf.mxu0
    %v3140 = vadd.f32 %v864, %v3139
    %v3141 = vpop.f32.mrf.mxu0
    %3142 = vmatprep.mubr.bf16.mxu0 %v368
    %3143 = vmatmul.mubr.bf16.gmra.mxu0 %v367
    %v3144 = vpop.f32.mrf.mxu0
    %v3145 = vadd.f32 %v864, %v3144
    %v3146 = vpop.f32.mrf.mxu0
    %v3147 = vpop.f32.mrf.mxu0
    %v3148 = vpop.f32.mrf.mxu0
    %3149 = vdwg.mxu0
    %3150 = vmatprep.subr.bf16.mxu0 0
    %3151 = vmatpush1.bf16.msra.mxu0 %v2045
    %3152 = vmatprep.subr.bf16.mxu0 0
    %3153 = vmatpush1.bf16.msra.mxu0 %v2040
    %3154 = vmatprep.subr.bf16.mxu0 0
    %3155 = vmatpush1.bf16.msra.mxu0 %v2035
    %3156 = vmatprep.subr.bf16.mxu0 0
    %3157 = vmatpush1.bf16.msra.mxu0 %v2030
    %3158 = vmatprep.subr.bf16.mxu0 0
    %3159 = vmatpush1.bf16.msra.mxu0 %v2025
    %3160 = vmatprep.subr.bf16.mxu0 0
    %3161 = vmatpush1.bf16.msra.mxu0 %v2020
    %3162 = vmatprep.subr.bf16.mxu0 0
    %3163 = vmatpush1.bf16.msra.mxu0 %v2015
    %3164 = vmatprep.subr.bf16.mxu0 0
    %3165 = vmatpush1.bf16.msra.mxu0 %v2010
    %3166 = vmatprep.subr.bf16.mxu0 0
    %3167 = vmatpush2.bf16.msra.mxu0 %v2085
    %3168 = vmatprep.subr.bf16.mxu0 0
    %3169 = vmatpush2.bf16.msra.mxu0 %v2080
    %3170 = vmatprep.subr.bf16.mxu0 0
    %3171 = vmatpush2.bf16.msra.mxu0 %v2075
    %3172 = vmatprep.subr.bf16.mxu0 0
    %3173 = vmatpush2.bf16.msra.mxu0 %v2070
    %3174 = vmatprep.subr.bf16.mxu0 0
    %3175 = vmatpush2.bf16.msra.mxu0 %v2065
    %3176 = vmatprep.subr.bf16.mxu0 0
    %3177 = vmatpush2.bf16.msra.mxu0 %v2060
    %3178 = vmatprep.subr.bf16.mxu0 0
    %3179 = vmatpush2.bf16.msra.mxu0 %v2055
    %3180 = vmatprep.subr.bf16.mxu0 0
    %3181 = vmatpush2.bf16.msra.mxu0 %v2050
    %3182 = vmatprep.mubr.bf16.mxu0 %v408
    %3183 = vmatmul.mubr.bf16.gmra.mxu0 %v433
    %v3184 = vpop.f32.mrf.mxu0
    %v3185 = vadd.f32 %v3137, %v3184
    %v3186 = vpop.f32.mrf.mxu0
    %v3187 = vpop.f32.mrf.mxu0
    %v3188 = vadd.f32 %v3140, %v3187
    %v3189 = vpop.f32.mrf.mxu0
    %3190 = vmatprep.mubr.bf16.mxu0 %v410
    %3191 = vmatmul.mubr.bf16.gmra.mxu0 %v436
    %v3192 = vpop.f32.mrf.mxu0
    %v3193 = vadd.f32 %v3145, %v3192
    %v3194 = vpop.f32.mrf.mxu0
    %v3195 = vpop.f32.mrf.mxu0
    %v3196 = vpop.f32.mrf.mxu0
    %3197 = vdwg.mxu0
    %3198 = vmatprep.subr.bf16.mxu0 0
    %3199 = vmatpush1.bf16.msra.mxu0 %v2125
    %3200 = vmatprep.subr.bf16.mxu0 0
    %3201 = vmatpush1.bf16.msra.mxu0 %v2120
    %3202 = vmatprep.subr.bf16.mxu0 0
    %3203 = vmatpush1.bf16.msra.mxu0 %v2115
    %3204 = vmatprep.subr.bf16.mxu0 0
    %3205 = vmatpush1.bf16.msra.mxu0 %v2110
    %3206 = vmatprep.subr.bf16.mxu0 0
    %3207 = vmatpush1.bf16.msra.mxu0 %v2105
    %3208 = vmatprep.subr.bf16.mxu0 0
    %3209 = vmatpush1.bf16.msra.mxu0 %v2100
    %3210 = vmatprep.subr.bf16.mxu0 0
    %3211 = vmatpush1.bf16.msra.mxu0 %v2095
    %3212 = vmatprep.subr.bf16.mxu0 0
    %3213 = vmatpush1.bf16.msra.mxu0 %v2090
    %3214 = vmatprep.subr.bf16.mxu0 0
    %3215 = vmatpush2.bf16.msra.mxu0 %v2165
    %3216 = vmatprep.subr.bf16.mxu0 0
    %3217 = vmatpush2.bf16.msra.mxu0 %v2160
    %3218 = vmatprep.subr.bf16.mxu0 0
    %3219 = vmatpush2.bf16.msra.mxu0 %v2155
    %3220 = vmatprep.subr.bf16.mxu0 0
    %3221 = vmatpush2.bf16.msra.mxu0 %v2150
    %3222 = vmatprep.subr.bf16.mxu0 0
    %3223 = vmatpush2.bf16.msra.mxu0 %v2145
    %3224 = vmatprep.subr.bf16.mxu0 0
    %3225 = vmatpush2.bf16.msra.mxu0 %v2140
    %3226 = vmatprep.subr.bf16.mxu0 0
    %3227 = vmatpush2.bf16.msra.mxu0 %v2135
    %3228 = vmatprep.subr.bf16.mxu0 0
    %3229 = vmatpush2.bf16.msra.mxu0 %v2130
    %3230 = vmatprep.mubr.bf16.mxu0 %v441
    %3231 = vmatmul.mubr.bf16.gmra.mxu0 %v409
    %v3232 = vpop.f32.mrf.mxu0
    %v3233 = vadd.f32 %v3185, %v3232
    %v3234 = vpop.f32.mrf.mxu0
    %v3235 = vpop.f32.mrf.mxu0
    %v3236 = vadd.f32 %v3188, %v3235
    %v3237 = vpop.f32.mrf.mxu0
    %3238 = vmatprep.mubr.bf16.mxu0 %v445
    %3239 = vmatmul.mubr.bf16.gmra.mxu0 %v411
    %v3240 = vpop.f32.mrf.mxu0
    %v3241 = vadd.f32 %v3193, %v3240
    %v3242 = vpop.f32.mrf.mxu0
    %v3243 = vpop.f32.mrf.mxu0
    %v3244 = vpop.f32.mrf.mxu0
    %3245 = vdwg.mxu0
    %3246 = vmatprep.subr.bf16.mxu0 0
    %3247 = vmatpush1.bf16.msra.mxu0 %v2205
    %3248 = vmatprep.subr.bf16.mxu0 0
    %3249 = vmatpush1.bf16.msra.mxu0 %v2200
    %3250 = vmatprep.subr.bf16.mxu0 0
    %3251 = vmatpush1.bf16.msra.mxu0 %v2195
    %3252 = vmatprep.subr.bf16.mxu0 0
    %3253 = vmatpush1.bf16.msra.mxu0 %v2190
    %3254 = vmatprep.subr.bf16.mxu0 0
    %3255 = vmatpush1.bf16.msra.mxu0 %v2185
    %3256 = vmatprep.subr.bf16.mxu0 0
    %3257 = vmatpush1.bf16.msra.mxu0 %v2180
    %3258 = vmatprep.subr.bf16.mxu0 0
    %3259 = vmatpush1.bf16.msra.mxu0 %v2175
    %3260 = vmatprep.subr.bf16.mxu0 0
    %3261 = vmatpush1.bf16.msra.mxu0 %v2170
    %3262 = vmatprep.subr.bf16.mxu0 0
    %3263 = vmatpush2.bf16.msra.mxu0 %v2245
    %3264 = vmatprep.subr.bf16.mxu0 0
    %3265 = vmatpush2.bf16.msra.mxu0 %v2240
    %3266 = vmatprep.subr.bf16.mxu0 0
    %3267 = vmatpush2.bf16.msra.mxu0 %v2235
    %3268 = vmatprep.subr.bf16.mxu0 0
    %3269 = vmatpush2.bf16.msra.mxu0 %v2230
    %3270 = vmatprep.subr.bf16.mxu0 0
    %3271 = vmatpush2.bf16.msra.mxu0 %v2225
    %3272 = vmatprep.subr.bf16.mxu0 0
    %3273 = vmatpush2.bf16.msra.mxu0 %v2220
    %3274 = vmatprep.subr.bf16.mxu0 0
    %3275 = vmatpush2.bf16.msra.mxu0 %v2215
    %3276 = vmatprep.subr.bf16.mxu0 0
    %3277 = vmatpush2.bf16.msra.mxu0 %v2210
    %3278 = vmatprep.mubr.bf16.mxu0 %v427
    %3279 = vmatmul.mubr.bf16.gmra.mxu0 %v426
    %v3280 = vpop.f32.mrf.mxu0
    %v3281 = vadd.f32 %v3233, %v3280
    %v3282 = vpop.f32.mrf.mxu0
    %v3283 = vpop.f32.mrf.mxu0
    %v3284 = vadd.f32 %v3236, %v3283
    %v3285 = vpop.f32.mrf.mxu0
    %3286 = vmatprep.mubr.bf16.mxu0 %v424
    %3287 = vmatmul.mubr.bf16.gmra.mxu0 %v424
    %v3288 = vpop.f32.mrf.mxu0
    %v3289 = vadd.f32 %v3241, %v3288
    %v3290 = vpop.f32.mrf.mxu0
    %v3291 = vpop.f32.mrf.mxu0
    %v3292 = vpop.f32.mrf.mxu0
    %3293 = vdwg.mxu0
    %3294 = vmatprep.subr.bf16.mxu0 0
    %3295 = vmatpush1.bf16.msra.mxu0 0
    %3296 = vmatprep.subr.bf16.mxu0 0
    %3297 = vmatpush1.bf16.msra.mxu0 0
    %3298 = vmatprep.subr.bf16.mxu0 0
    %3299 = vmatpush1.bf16.msra.mxu0 0
    %3300 = vmatprep.subr.bf16.mxu0 0
    %3301 = vmatpush1.bf16.msra.mxu0 0
    %3302 = vmatprep.subr.bf16.mxu0 0
    %3303 = vmatpush1.bf16.msra.mxu0 0
    %3304 = vmatprep.subr.bf16.mxu0 0
    %3305 = vmatpush1.bf16.msra.mxu0 0
    %3306 = vmatprep.subr.bf16.mxu0 0
    %3307 = vmatpush1.bf16.msra.mxu0 %v2255
    %3308 = vmatprep.subr.bf16.mxu0 0
    %3309 = vmatpush1.bf16.msra.mxu0 %v2250
    %3310 = vmatprep.subr.bf16.mxu0 0
    %3311 = vmatpush2.bf16.msra.mxu0 0
    %3312 = vmatprep.subr.bf16.mxu0 0
    %3313 = vmatpush2.bf16.msra.mxu0 0
    %3314 = vmatprep.subr.bf16.mxu0 0
    %3315 = vmatpush2.bf16.msra.mxu0 0
    %3316 = vmatprep.subr.bf16.mxu0 0
    %3317 = vmatpush2.bf16.msra.mxu0 0
    %3318 = vmatprep.subr.bf16.mxu0 0
    %3319 = vmatpush2.bf16.msra.mxu0 0
    %3320 = vmatprep.subr.bf16.mxu0 0
    %3321 = vmatpush2.bf16.msra.mxu0 0
    %3322 = vmatprep.subr.bf16.mxu0 0
    %3323 = vmatpush2.bf16.msra.mxu0 0
    %3324 = vmatprep.subr.bf16.mxu0 0
    %3325 = vmatpush2.bf16.msra.mxu0 0
    %3326 = vmatprep.mubr.bf16.mxu0 0
    %3327 = vmatmul.mubr.bf16.gmra.mxu0 %v2588
    %v3328 = vpop.f32.mrf.mxu0
    %v3329 = vadd.f32 %v3281, %v3328
    %v3330 = vpop.f32.mrf.mxu0
    %v3331 = vpop.f32.mrf.mxu0
    %v3332 = vadd.f32 %v3284, %v3331
    %v3333 = vpop.f32.mrf.mxu0
    %3334 = vmatprep.mubr.bf16.mxu0 0
    %3335 = vmatmul.mubr.bf16.gmra.mxu0 %v2590
    %v3336 = vpop.f32.mrf.mxu0
    %v3337 = vadd.f32 %v3289, %v3336
    %v3338 = vpop.f32.mrf.mxu0
    %v3339 = vpop.f32.mrf.mxu0
    %v3340 = vpop.f32.mrf.mxu0
    %3341 = vdwg.mxu0
    %v3342 = vmax.f32 %v2831, 0.0
    %v3343 = vmax.f32 %v2833, 0.0
    %v3344 = vmax.f32 %v3086, 0.0
    %v3345 = vmax.f32 %v3088, 0.0
    %v3346 = vmax.f32 %v3329, 0.0
    %v3347 = vmax.f32 %v2835, 0.0
    %v3348 = vmax.f32 %v2837, 0.0
    %v3349 = vmax.f32 %v3090, 0.0
    %v3350 = vmax.f32 %v3092, 0.0
    %v3351 = vmax.f32 %v3332, 0.0
    %v3352 = vmax.f32 %v2841, 0.0
    %v3353 = vmax.f32 %v2843, 0.0
    %v3354 = vmax.f32 %v3096, 0.0
    %v3355 = vmax.f32 %v3098, 0.0
    %v3356 = vmax.f32 %v3337, 0.0
    %v3357 = vpack.c.bf16 %v3347, %v3342
    %v3358 = vpack.c.bf16 %v3348, %v3343
    %v3359 = vpack.c.bf16 %v3349, %v3344
    %v3360 = vpack.c.bf16 %v3350, %v3345
    %v3361 = vpack.c.bf16 %v3351, %v3346
    %v3362 = vpack.c.bf16 %v3352, %v3352
    %v3363 = vpack.c.bf16 %v3353, %v3353
    %v3364 = vpack.c.bf16 %v3354, %v3354
    %v3365 = vpack.c.bf16 %v3355, %v3355
    %v3366 = vpack.c.bf16 %v3356, %v3356
    %v3367 = vld [vmem:[%s5] sm:$0xf]
    %v3368 = vld [vmem:[%s5 + $0x4] sm:$0xf]
    %v3369 = vld [vmem:[%s5 + $0x8] sm:$0xf]
    %v3370 = vld [vmem:[%s5 + $0xc] sm:$0xf]
    %v3371 = vld [vmem:[%s5 + $0x10] sm:$0xf]
    %v3372 = vld [vmem:[%s5 + $0x14] sm:$0xf]
    %v3373 = vld [vmem:[%s5 + $0x18] sm:$0xf]
    %v3374 = vld [vmem:[%s5 + $0x1c] sm:$0xf]
    %v3375 = vld [vmem:[%s5 + $0x20] sm:$0xf]
    %v3376 = vld [vmem:[%s5 + $0x24] sm:$0xf]
    %v3377 = vld [vmem:[%s5 + $0x28] sm:$0xf]
    %v3378 = vld [vmem:[%s5 + $0x2c] sm:$0xf]
    %v3379 = vld [vmem:[%s5 + $0x30] sm:$0xf]
    %v3380 = vld [vmem:[%s5 + $0x34] sm:$0xf]
    %v3381 = vld [vmem:[%s5 + $0x38] sm:$0xf]
    %v3382 = vld [vmem:[%s5 + $0x3c] sm:$0xf]
    %v3383 = vld [vmem:[%s5 + $0x40] sm:$0xf]
    %v3384 = vld [vmem:[%s5 + $0x44] sm:$0xf]
    %v3385 = vld [vmem:[%s5 + $0x48] sm:$0xf]
    %v3386 = vld [vmem:[%s5 + $0x4c] sm:$0xf]
    %v3387 = vld [vmem:[%s5 + $0x50] sm:$0xf]
    %v3388 = vld [vmem:[%s5 + $0x54] sm:$0xf]
    %v3389 = vld [vmem:[%s5 + $0x58] sm:$0xf]
    %v3390 = vld [vmem:[%s5 + $0x5c] sm:$0xf]
    %v3391 = vld [vmem:[%s5 + $0x60] sm:$0xf]
    %v3392 = vld [vmem:[%s5 + $0x64] sm:$0xf]
    %v3393 = vld [vmem:[%s5 + $0x68] sm:$0xf]
    %v3394 = vld [vmem:[%s5 + $0x6c] sm:$0xf]
    %v3395 = vld [vmem:[%s5 + $0x70] sm:$0xf]
    %v3396 = vld [vmem:[%s5 + $0x74] sm:$0xf]
    %v3397 = vld [vmem:[%s5 + $0x78] sm:$0xf]
    %v3398 = vld [vmem:[%s5 + $0x7c] sm:$0xf]
    %v3399 = vld [vmem:[%s5 + $0x80] sm:$0xf]
    %v3400 = vld [vmem:[%s5 + $0x84] sm:$0xf]
    %v3401 = vld [vmem:[%s5 + $0x88] sm:$0xf]
    %v3402 = vld [vmem:[%s5 + $0x8c] sm:$0xf]
    %v3403 = vld [vmem:[%s5 + $0x90] sm:$0xf]
    %v3404 = vld [vmem:[%s5 + $0x94] sm:$0xf]
    %v3405 = vld [vmem:[%s5 + $0x98] sm:$0xf]
    %v3406 = vld [vmem:[%s5 + $0x9c] sm:$0xf]
    %v3407 = vld [vmem:[%s5 + $0xa0] sm:$0xf]
    %v3408 = vld [vmem:[%s5 + $0xa4] sm:$0xf]
    %v3409 = vld [vmem:[%s5 + $0xa8] sm:$0xf]
    %v3410 = vld [vmem:[%s5 + $0xac] sm:$0xf]
    %v3411 = vld [vmem:[%s5 + $0xb0] sm:$0xf]
    %v3412 = vld [vmem:[%s5 + $0xb4] sm:$0xf]
    %v3413 = vld [vmem:[%s5 + $0xb8] sm:$0xf]
    %v3414 = vld [vmem:[%s5 + $0xbc] sm:$0xf]
    %v3415 = vld [vmem:[%s5 + $0xc0] sm:$0xf]
    %v3416 = vld [vmem:[%s5 + $0xc4] sm:$0xf]
    %v3417 = vld [vmem:[%s5 + $0xc8] sm:$0xf]
    %v3418 = vld [vmem:[%s5 + $0xcc] sm:$0xf]
    %v3419 = vld [vmem:[%s5 + $0xd0] sm:$0xf]
    %v3420 = vld [vmem:[%s5 + $0xd4] sm:$0xf]
    %v3421 = vld [vmem:[%s5 + $0xd8] sm:$0xf]
    %v3422 = vld [vmem:[%s5 + $0xdc] sm:$0xf]
    %v3423 = vld [vmem:[%s5 + $0xe0] sm:$0xf]
    %v3424 = vld [vmem:[%s5 + $0xe4] sm:$0xf]
    %v3425 = vld [vmem:[%s5 + $0xe8] sm:$0xf]
    %v3426 = vld [vmem:[%s5 + $0xec] sm:$0xf]
    %v3427 = vld [vmem:[%s5 + $0xf0] sm:$0xf]
    %v3428 = vld [vmem:[%s5 + $0xf4] sm:$0xf]
    %v3429 = vld [vmem:[%s5 + $0xf8] sm:$0xf]
    %v3430 = vld [vmem:[%s5 + $0xfc] sm:$0xf]
    %v3431 = vld [vmem:[%s5 + $0x100] sm:$0xf]
    %v3432 = vld [vmem:[%s5 + $0x104] sm:$0xf]
    %v3433 = vld [vmem:[%s5 + $0x108] sm:$0xf]
    %v3434 = vld [vmem:[%s5 + $0x10c] sm:$0xf]
    %v3435 = vld [vmem:[%s5 + $0x110] sm:$0xf]
    %v3436 = vld [vmem:[%s5 + $0x114] sm:$0xf]
    %v3437 = vld [vmem:[%s5 + $0x118] sm:$0xf]
    %v3438 = vld [vmem:[%s5 + $0x11c] sm:$0xf]
    %v3511 = vunpack.c.l.b16 %v3367
    %v3512 = vunpack.c.l.b16 %v3368
    %v3513 = vunpack.c.l.b16 %v3369
    %v3514 = vunpack.c.l.b16 %v3370
    %v3515 = vunpack.c.l.b16 %v3371
    %v3516 = vunpack.c.l.b16 %v3372
    %v3517 = vunpack.c.l.b16 %v3373
    %v3518 = vunpack.c.l.b16 %v3374
    %v3519 = vunpack.c.l.b16 %v3375
    %v3520 = vunpack.c.l.b16 %v3376
    %v3521 = vunpack.c.l.b16 %v3377
    %v3522 = vunpack.c.l.b16 %v3378
    %v3523 = vunpack.c.l.b16 %v3379
    %v3524 = vunpack.c.l.b16 %v3380
    %v3525 = vunpack.c.l.b16 %v3381
    %v3526 = vunpack.c.l.b16 %v3382
    %v3527 = vunpack.c.l.b16 %v3383
    %v3528 = vunpack.c.l.b16 %v3384
    %v3529 = vunpack.c.l.b16 %v3385
    %v3530 = vunpack.c.l.b16 %v3386
    %v3531 = vunpack.c.l.b16 %v3387
    %v3532 = vunpack.c.l.b16 %v3388
    %v3533 = vunpack.c.l.b16 %v3389
    %v3534 = vunpack.c.l.b16 %v3390
    %v3535 = vunpack.c.l.b16 %v3391
    %v3536 = vunpack.c.l.b16 %v3392
    %v3537 = vunpack.c.l.b16 %v3393
    %v3538 = vunpack.c.l.b16 %v3394
    %v3539 = vunpack.c.l.b16 %v3395
    %v3540 = vunpack.c.l.b16 %v3396
    %v3541 = vunpack.c.l.b16 %v3397
    %v3542 = vunpack.c.l.b16 %v3398
    %v3543 = vunpack.c.l.b16 %v3399
    %v3544 = vunpack.c.l.b16 %v3400
    %v3545 = vunpack.c.l.b16 %v3401
    %v3546 = vunpack.c.l.b16 %v3402
    %v3547 = vunpack.c.l.b16 %v3403
    %v3548 = vunpack.c.l.b16 %v3404
    %v3549 = vunpack.c.l.b16 %v3405
    %v3550 = vunpack.c.l.b16 %v3406
    %v3551 = vunpack.c.l.b16 %v3407
    %v3552 = vunpack.c.l.b16 %v3408
    %v3553 = vunpack.c.l.b16 %v3409
    %v3554 = vunpack.c.l.b16 %v3410
    %v3555 = vunpack.c.l.b16 %v3411
    %v3556 = vunpack.c.l.b16 %v3412
    %v3557 = vunpack.c.l.b16 %v3413
    %v3558 = vunpack.c.l.b16 %v3414
    %v3559 = vunpack.c.l.b16 %v3415
    %v3560 = vunpack.c.l.b16 %v3416
    %v3561 = vunpack.c.l.b16 %v3417
    %v3562 = vunpack.c.l.b16 %v3418
    %v3563 = vunpack.c.l.b16 %v3419
    %v3564 = vunpack.c.l.b16 %v3420
    %v3565 = vunpack.c.l.b16 %v3421
    %v3566 = vunpack.c.l.b16 %v3422
    %v3567 = vunpack.c.l.b16 %v3423
    %v3568 = vunpack.c.l.b16 %v3424
    %v3569 = vunpack.c.l.b16 %v3425
    %v3570 = vunpack.c.l.b16 %v3426
    %v3571 = vunpack.c.l.b16 %v3427
    %v3572 = vunpack.c.l.b16 %v3428
    %v3573 = vunpack.c.l.b16 %v3429
    %v3574 = vunpack.c.l.b16 %v3430
    %v3575 = vunpack.c.l.b16 %v3431
    %v3576 = vunpack.c.l.b16 %v3432
    %v3577 = vunpack.c.l.b16 %v3433
    %v3578 = vunpack.c.l.b16 %v3434
    %v3579 = vunpack.c.l.b16 %v3435
    %v3580 = vunpack.c.l.b16 %v3436
    %v3581 = vunpack.c.l.b16 %v3437
    %v3582 = vunpack.c.l.b16 %v3438
    %v3583 = vpack.c.b16 %v3512, %v3511
    %v3584 = vpack.c.b16 %v3514, %v3513
    %v3585 = vpack.c.b16 %v3516, %v3515
    %v3586 = vpack.c.b16 %v3518, %v3517
    %v3587 = vpack.c.b16 %v3520, %v3519
    %v3588 = vpack.c.b16 %v3522, %v3521
    %v3589 = vpack.c.b16 %v3524, %v3523
    %v3590 = vpack.c.b16 %v3526, %v3525
    %v3591 = vpack.c.b16 %v3528, %v3527
    %v3592 = vpack.c.b16 %v3530, %v3529
    %v3593 = vpack.c.b16 %v3532, %v3531
    %v3594 = vpack.c.b16 %v3534, %v3533
    %v3595 = vpack.c.b16 %v3536, %v3535
    %v3596 = vpack.c.b16 %v3538, %v3537
    %v3597 = vpack.c.b16 %v3540, %v3539
    %v3598 = vpack.c.b16 %v3542, %v3541
    %v3599 = vpack.c.b16 %v3544, %v3543
    %v3600 = vpack.c.b16 %v3546, %v3545
    %v3601 = vpack.c.b16 %v3548, %v3547
    %v3602 = vpack.c.b16 %v3550, %v3549
    %v3603 = vpack.c.b16 %v3552, %v3551
    %v3604 = vpack.c.b16 %v3554, %v3553
    %v3605 = vpack.c.b16 %v3556, %v3555
    %v3606 = vpack.c.b16 %v3558, %v3557
    %v3607 = vpack.c.b16 %v3560, %v3559
    %v3608 = vpack.c.b16 %v3562, %v3561
    %v3609 = vpack.c.b16 %v3564, %v3563
    %v3610 = vpack.c.b16 %v3566, %v3565
    %v3611 = vpack.c.b16 %v3568, %v3567
    %v3612 = vpack.c.b16 %v3570, %v3569
    %v3613 = vpack.c.b16 %v3572, %v3571
    %v3614 = vpack.c.b16 %v3574, %v3573
    %v3615 = vpack.c.b16 %v3576, %v3575
    %v3616 = vpack.c.b16 %v3578, %v3577
    %v3617 = vpack.c.b16 %v3580, %v3579
    %v3618 = vpack.c.b16 %v3582, %v3581
    %v3656 = vsel %vm438, %v3361, 0
    %v3659 = vsel %vm438, %v3366, 0
    %3661 = vmatprep.subr.bf16.mxu0 0
    %3662 = vmatpush1.bf16.msra.mxu0 %v3590
    %3663 = vmatprep.subr.bf16.mxu0 0
    %3664 = vmatpush1.bf16.msra.mxu0 %v3589
    %3665 = vmatprep.subr.bf16.mxu0 0
    %3666 = vmatpush1.bf16.msra.mxu0 %v3588
    %3667 = vmatprep.subr.bf16.mxu0 0
    %3668 = vmatpush1.bf16.msra.mxu0 %v3587
    %3669 = vmatprep.subr.bf16.mxu0 0
    %3670 = vmatpush1.bf16.msra.mxu0 %v3586
    %3671 = vmatprep.subr.bf16.mxu0 0
    %3672 = vmatpush1.bf16.msra.mxu0 %v3585
    %3673 = vmatprep.subr.bf16.mxu0 0
    %3674 = vmatpush1.bf16.msra.mxu0 %v3584
    %3675 = vmatprep.subr.bf16.mxu0 0
    %3676 = vmatpush1.bf16.msra.mxu0 %v3583
    %3677 = vmatprep.subr.bf16.mxu0 0
    %3678 = vmatpush2.bf16.msra.mxu0 %v3598
    %3679 = vmatprep.subr.bf16.mxu0 0
    %3680 = vmatpush2.bf16.msra.mxu0 %v3597
    %3681 = vmatprep.subr.bf16.mxu0 0
    %3682 = vmatpush2.bf16.msra.mxu0 %v3596
    %3683 = vmatprep.subr.bf16.mxu0 0
    %3684 = vmatpush2.bf16.msra.mxu0 %v3595
    %3685 = vmatprep.subr.bf16.mxu0 0
    %3686 = vmatpush2.bf16.msra.mxu0 %v3594
    %3687 = vmatprep.subr.bf16.mxu0 0
    %3688 = vmatpush2.bf16.msra.mxu0 %v3593
    %3689 = vmatprep.subr.bf16.mxu0 0
    %3690 = vmatpush2.bf16.msra.mxu0 %v3592
    %3691 = vmatprep.subr.bf16.mxu0 0
    %3692 = vmatpush2.bf16.msra.mxu0 %v3591
    %3693 = vmatprep.mubr.bf16.mxu0 %v3358
    %3694 = vmatmul.mubr.bf16.gmra.mxu0 %v3357
    %v3695 = vpop.f32.mrf.mxu0
    %v3696 = vadd.f32 0.0, %v3695
    %v3697 = vpop.f32.mrf.mxu0
    %v3698 = vpop.f32.mrf.mxu0
    %v3699 = vadd.f32 0.0, %v3698
    %v3700 = vpop.f32.mrf.mxu0
    %3701 = vmatprep.mubr.bf16.mxu0 %v3363
    %3702 = vmatmul.mubr.bf16.gmra.mxu0 %v3362
    %v3703 = vpop.f32.mrf.mxu0
    %v3704 = vadd.f32 0.0, %v3703
    %v3705 = vpop.f32.mrf.mxu0
    %v3706 = vpop.f32.mrf.mxu0
    %v3707 = vpop.f32.mrf.mxu0
    %3708 = vdwg.mxu0
    %3709 = vmatprep.subr.bf16.mxu0 0
    %3710 = vmatpush1.bf16.msra.mxu0 %v3606
    %3711 = vmatprep.subr.bf16.mxu0 0
    %3712 = vmatpush1.bf16.msra.mxu0 %v3605
    %3713 = vmatprep.subr.bf16.mxu0 0
    %3714 = vmatpush1.bf16.msra.mxu0 %v3604
    %3715 = vmatprep.subr.bf16.mxu0 0
    %3716 = vmatpush1.bf16.msra.mxu0 %v3603
    %3717 = vmatprep.subr.bf16.mxu0 0
    %3718 = vmatpush1.bf16.msra.mxu0 %v3602
    %3719 = vmatprep.subr.bf16.mxu0 0
    %3720 = vmatpush1.bf16.msra.mxu0 %v3601
    %3721 = vmatprep.subr.bf16.mxu0 0
    %3722 = vmatpush1.bf16.msra.mxu0 %v3600
    %3723 = vmatprep.subr.bf16.mxu0 0
    %3724 = vmatpush1.bf16.msra.mxu0 %v3599
    %3725 = vmatprep.subr.bf16.mxu0 0
    %3726 = vmatpush2.bf16.msra.mxu0 %v3614
    %3727 = vmatprep.subr.bf16.mxu0 0
    %3728 = vmatpush2.bf16.msra.mxu0 %v3613
    %3729 = vmatprep.subr.bf16.mxu0 0
    %3730 = vmatpush2.bf16.msra.mxu0 %v3612
    %3731 = vmatprep.subr.bf16.mxu0 0
    %3732 = vmatpush2.bf16.msra.mxu0 %v3611
    %3733 = vmatprep.subr.bf16.mxu0 0
    %3734 = vmatpush2.bf16.msra.mxu0 %v3610
    %3735 = vmatprep.subr.bf16.mxu0 0
    %3736 = vmatpush2.bf16.msra.mxu0 %v3609
    %3737 = vmatprep.subr.bf16.mxu0 0
    %3738 = vmatpush2.bf16.msra.mxu0 %v3608
    %3739 = vmatprep.subr.bf16.mxu0 0
    %3740 = vmatpush2.bf16.msra.mxu0 %v3607
    %3741 = vmatprep.mubr.bf16.mxu0 %v3360
    %3742 = vmatmul.mubr.bf16.gmra.mxu0 %v3359
    %v3743 = vpop.f32.mrf.mxu0
    %v3744 = vadd.f32 %v3696, %v3743
    %v3745 = vpop.f32.mrf.mxu0
    %v3746 = vpop.f32.mrf.mxu0
    %v3747 = vadd.f32 %v3699, %v3746
    %v3748 = vpop.f32.mrf.mxu0
    %3749 = vmatprep.mubr.bf16.mxu0 %v3365
    %3750 = vmatmul.mubr.bf16.gmra.mxu0 %v3364
    %v3751 = vpop.f32.mrf.mxu0
    %v3752 = vadd.f32 %v3704, %v3751
    %v3753 = vpop.f32.mrf.mxu0
    %v3754 = vpop.f32.mrf.mxu0
    %v3755 = vpop.f32.mrf.mxu0
    %3756 = vdwg.mxu0
    %3757 = vmatprep.subr.bf16.mxu0 0
    %3758 = vmatpush1.bf16.msra.mxu0 0
    %3759 = vmatprep.subr.bf16.mxu0 0
    %3760 = vmatpush1.bf16.msra.mxu0 0
    %3761 = vmatprep.subr.bf16.mxu0 0
    %3762 = vmatpush1.bf16.msra.mxu0 0
    %3763 = vmatprep.subr.bf16.mxu0 0
    %3764 = vmatpush1.bf16.msra.mxu0 0
    %3765 = vmatprep.subr.bf16.mxu0 0
    %3766 = vmatpush1.bf16.msra.mxu0 %v3618
    %3767 = vmatprep.subr.bf16.mxu0 0
    %3768 = vmatpush1.bf16.msra.mxu0 %v3617
    %3769 = vmatprep.subr.bf16.mxu0 0
    %3770 = vmatpush1.bf16.msra.mxu0 %v3616
    %3771 = vmatprep.subr.bf16.mxu0 0
    %3772 = vmatpush1.bf16.msra.mxu0 %v3615
    %3773 = vmatprep.subr.bf16.mxu0 0
    %3774 = vmatpush2.bf16.msra.mxu0 0
    %3775 = vmatprep.subr.bf16.mxu0 0
    %3776 = vmatpush2.bf16.msra.mxu0 0
    %3777 = vmatprep.subr.bf16.mxu0 0
    %3778 = vmatpush2.bf16.msra.mxu0 0
    %3779 = vmatprep.subr.bf16.mxu0 0
    %3780 = vmatpush2.bf16.msra.mxu0 0
    %3781 = vmatprep.subr.bf16.mxu0 0
    %3782 = vmatpush2.bf16.msra.mxu0 0
    %3783 = vmatprep.subr.bf16.mxu0 0
    %3784 = vmatpush2.bf16.msra.mxu0 0
    %3785 = vmatprep.subr.bf16.mxu0 0
    %3786 = vmatpush2.bf16.msra.mxu0 0
    %3787 = vmatprep.subr.bf16.mxu0 0
    %3788 = vmatpush2.bf16.msra.mxu0 0
    %3789 = vmatprep.mubr.bf16.mxu0 0
    %3790 = vmatmul.mubr.bf16.gmra.mxu0 %v3656
    %v3791 = vpop.f32.mrf.mxu0
    %v3792 = vadd.f32 %v3744, %v3791
    %v3793 = vpop.f32.mrf.mxu0
    %v3794 = vpop.f32.mrf.mxu0
    %v3795 = vadd.f32 %v3747, %v3794
    %v3796 = vpop.f32.mrf.mxu0
    %3797 = vmatprep.mubr.bf16.mxu0 0
    %3798 = vmatmul.mubr.bf16.gmra.mxu0 %v3659
    %v3799 = vpop.f32.mrf.mxu0
    %v3800 = vadd.f32 %v3752, %v3799
    %v3801 = vpop.f32.mrf.mxu0
    %v3802 = vpop.f32.mrf.mxu0
    %v3803 = vpop.f32.mrf.mxu0
    %3804 = vdwg.mxu0
    %v3805 = vadd.f32 %v3792, 0.0
    %v3807 = vrot.slane %v3792, 2
    %3808 = vrot.lane.b32.xlu0 %v3807, 126
    %v3809 = vpop.permute.xlu0 %3808
    %v3811 = vadd.f32 %v3805, %v3809
    %v3812 = vrot.slane %v3792, 4
    %3813 = vrot.lane.b32.xlu0 %v3812, 124
    %v3814 = vpop.permute.xlu0 %3813
    %v3816 = vadd.f32 %v3811, %v3814
    %v3817 = vrot.slane %v3792, 6
    %3818 = vrot.lane.b32.xlu0 %v3817, 122
    %v3819 = vpop.permute.xlu0 %3818
    %v3821 = vadd.f32 %v3816, %v3819
    %3823 = vrot.lane.b32.xlu0 %v3795, 120
    %v3824 = vpop.permute.xlu0 %3823
    %v3826 = vadd.f32 %v3821, %v3824
    %v3827 = vrot.slane %v3795, 2
    %3828 = vrot.lane.b32.xlu0 %v3827, 118
    %v3829 = vpop.permute.xlu0 %3828
    %v3831 = vadd.f32 %v3826, %v3829
    %v3832 = vrot.slane %v3795, 4
    %3833 = vrot.lane.b32.xlu0 %v3832, 116
    %v3834 = vpop.permute.xlu0 %3833
    %v3836 = vadd.f32 %v3831, %v3834
    %v3837 = vrot.slane %v3795, 6
    %3838 = vrot.lane.b32.xlu0 %v3837, 114
    %v3839 = vpop.permute.xlu0 %3838
    %v3841 = vadd.f32 %v3836, %v3839
    %3843 = vrot.lane.b32.xlu0 %v3800, 112
    %v3844 = vpop.permute.xlu0 %3843
    %v3846 = vadd.f32 %v3841, %v3844
    %v3847 = vld [vmem:[%s6] sm:$0x1]
    %v3849 = vlaneseq
    %v3850 = vshrl.u32 %v3849, 7
    %v3851 = vsub.s32 0, %v3850
    %v3852 = vrot.slane %v3847, %v3851
    %v3854 = vadd.f32 %v3846, %v3852
    %vm3855 = vcmask 9216
    %3856 = vst.msk [vmem:[#allocation2] sm:$0x3] %vm3855, %v3854
    // Predicated region
    $region30: #{_fused_forward.1} parent=1 // pred_check
      _
    $region31: #{_fused_forward.1} parent=1 // pred_check_branch
      %3858 = sbr.rel (0) target = $region33
    $region32: #{_fused_forward.1} parent=1 // pred_region
      %s3860 = ssub.s32 32, 32
      %3861 = vsyncadd [#allocation3], %s3860
      %s3863 = sshll.u32 [#allocation2], 4
      %s3864 = int_to_ptr.vmem [resolvable:$true] %s3863
      %3866 = dma.vmem_to_hbm [thread:$0]  %s3864, 32, %s7, [#allocation3]
    $region33: #{_fused_forward.1} parent=1 // pred_fallthru
      _
    // Predicated region
    $region34: #{_fused_forward.1} parent=1 // pred_check
      _
    $region35: #{_fused_forward.1} parent=1 // pred_check_branch
      %3868 = sbr.rel (0) target = $region37
    $region36: #{_fused_forward.1} parent=1 // pred_region
      %3869 = dma.done [#allocation3], 32
    $region37: #{_fused_forward.1} parent=1 // pred_fallthru
      _
    %3870 = vsyncpa [#allocation3], 1

</llo_original>
